<compile_context>
chip_gen: v7x
topology: tpu7x:2x2x1
jax: 0.10.0
libtpu: 0.0.40
codegen_flags: <defaults>
</compile_context>

<pallas_src>
import functools

import jax
import jax.numpy as jnp
from jax.experimental import pallas as pl
from jax.experimental.pallas import tpu as pltpu


# ----------------------------- Pallas kernels -----------------------------

def _convT_lrelu_kernel(x_ref, w_ref, b_ref, o_ref):
    # y^T = W^T @ X^T ; lane axis = M = N*Ho*Wo (lane-dense output store).
    y = jnp.dot(w_ref[...], x_ref[...], preferred_element_type=jnp.float32)
    y = y + b_ref[...]                       # (C, 1) broadcast over lanes
    y = jnp.where(y >= 0, y, 0.2 * y)        # LeakyReLU(0.2)
    o_ref[...] = y.astype(o_ref.dtype)


def _convT_bn_lrelu_kernel(x_ref, w_ref, b_ref, g_ref, beta_ref, o_ref, *, eps):
    # Fused conv-as-matmul + train-mode BatchNorm (batch stats over M) + LeakyReLU.
    # Whole M is resident in this single grid step, so stats need no HBM round trip.
    y = jnp.dot(w_ref[...], x_ref[...], preferred_element_type=jnp.float32)
    y = y + b_ref[...]
    mean = jnp.mean(y, axis=1, keepdims=True)            # (C, 1)
    yc = y - mean
    var = jnp.mean(yc * yc, axis=1, keepdims=True)       # biased var (PyTorch train BN)
    var = jnp.maximum(var, 0.0)
    inv = jax.lax.rsqrt(var + eps)
    y = yc * (inv * g_ref[...]) + beta_ref[...]
    y = jnp.where(y >= 0, y, 0.2 * y)
    o_ref[...] = y.astype(o_ref.dtype)


def conv_lrelu(xT, wT, b, *, m_blocks):
    """xT: [K, M] bf16, wT: [C, K] bf16, b: [C, 1] f32 -> lrelu(W^T X^T + b) bf16."""
    C, K = wT.shape
    M = xT.shape[1]
    tm = M // m_blocks
    return pl.pallas_call(
        _convT_lrelu_kernel,
        out_shape=jax.ShapeDtypeStruct((C, M), jnp.bfloat16),
        grid_spec=pltpu.PrefetchScalarGridSpec(
            num_scalar_prefetch=0,
            grid=(m_blocks,),
            in_specs=[
                pl.BlockSpec((K, tm), lambda i: (0, i)),
                pl.BlockSpec((C, K), lambda i: (0, 0)),
                pl.BlockSpec((C, 1), lambda i: (0, 0)),
            ],
            out_specs=pl.BlockSpec((C, tm), lambda i: (0, i)),
        ),
        compiler_params=pltpu.CompilerParams(
            dimension_semantics=("parallel",)),
    )(xT, wT, b)


def conv_bn_lrelu(xT, wT, b, gamma, beta, *, eps=1e-5):
    """Fused conv + BatchNorm(train) + LeakyReLU. Single whole-M block (M is small
    for every BN layer), so no accumulation across grid steps is needed."""
    C, K = wT.shape
    M = xT.shape[1]
    kernel = functools.partial(_convT_bn_lrelu_kernel, eps=eps)
    return pl.pallas_call(
        kernel,
        out_shape=jax.ShapeDtypeStruct((C, M), jnp.bfloat16),
        grid_spec=pltpu.PrefetchScalarGridSpec(
            num_scalar_prefetch=0,
            grid=(1,),
            in_specs=[
                pl.BlockSpec((K, M), lambda i: (0, 0)),
                pl.BlockSpec((C, K), lambda i: (0, 0)),
                pl.BlockSpec((C, 1), lambda i: (0, 0)),
                pl.BlockSpec((C, 1), lambda i: (0, 0)),
                pl.BlockSpec((C, 1), lambda i: (0, 0)),
            ],
            out_specs=pl.BlockSpec((C, M), lambda i: (0, 0)),
        ),
        compiler_params=pltpu.CompilerParams(
            dimension_semantics=("arbitrary",)),
    )(xT, wT, b, gamma, beta)


# ------------------------------- JAX glue ----------------------------------

CONV_CFG = [
    # (kernel, stride, pad, use_batchnorm) for the four stride-2 conv layers.
    (5, 2, 2, False),
    (5, 2, 2, True),
    (5, 2, 2, True),
    (5, 2, 2, True),
]


def im2col_t(x_cnhw, k, stride, pad):
    """Channel-major patch extraction (layout plumbing, not the hot path).

    x: (C, N, H, W) -> X^T: (k*k*C, N*Ho*Wo) with K ordered (kh, kw, cin) and
    M ordered (n, oh, ow). No transposes in the forward loop.
    """
    C, N, H, W = x_cnhw.shape
    xp = jnp.pad(x_cnhw, ((0, 0), (0, 0), (pad, pad), (pad, pad)))
    Ho = (H + 2 * pad - k) // stride + 1
    Wo = (W + 2 * pad - k) // stride + 1
    cols = []
    for kh in range(k):
        for kw in range(k):
            cols.append(
                xp[:, :, kh:kh + stride * Ho:stride, kw:kw + stride * Wo:stride])
    cols = jnp.stack(cols, axis=0)                 # (k*k, C, N, Ho, Wo)
    return cols.reshape(k * k * C, N * Ho * Wo), (N, Ho, Wo)


def init_params(key, in_dim, dim):
    # Deterministic synthetic init mirroring weights_init:
    #   conv weight ~ N(0, 0.02), conv bias ~ U(+-1/sqrt(fan_in)) (torch default),
    #   BN gamma ~ N(1, 0.02), BN beta = 0.
    specs = [
        (in_dim, dim, 5),
        (dim, dim * 2, 5),
        (dim * 2, dim * 4, 5),
        (dim * 4, dim * 8, 5),
        (dim * 8, 1, 4),
    ]
    params = []
    for (cin, cout, k) in specs:
        key, kw_, kb_, kg_ = jax.random.split(key, 4)
        w = 0.02 * jax.random.normal(kw_, (cout, cin, k, k), jnp.float32)  # OIHW
        bound = 1.0 / float((cin * k * k) ** 0.5)
        b = jax.random.uniform(kb_, (cout,), jnp.float32, -bound, bound)
        gamma = 1.0 + 0.02 * jax.random.normal(kg_, (cout,), jnp.float32)
        beta = jnp.zeros((cout,), jnp.float32)
        params.append(dict(w=w, b=b, gamma=gamma, beta=beta))
    return params


def prepare_params(params):
    """Hoist all per-layer weight transposes/reshapes/casts out of the forward."""
    convs = []
    for p, (k, _stride, _pad, _use_bn) in zip(params[:-1], CONV_CFG):
        w = p["w"]                                     # (cout, cin, k, k) OIHW
        cout, cin = w.shape[0], w.shape[1]
        wT = jnp.transpose(w, (0, 2, 3, 1)).reshape(cout, k * k * cin)
        convs.append(dict(
            wT=wT.astype(jnp.bfloat16),                # MXU input in bf16
            b=p["b"].reshape(cout, 1).astype(jnp.float32),
            gamma=p["gamma"].reshape(cout, 1).astype(jnp.float32),
            beta=p["beta"].reshape(cout, 1).astype(jnp.float32),
        ))
    w5 = params[-1]["w"]                               # (1, 8*dim, 4, 4)
    return dict(convs=convs,
                w5=w5[0].astype(jnp.float32),          # (8*dim, 4, 4)
                b5=params[-1]["b"].astype(jnp.float32)[0])


def discriminator_forward(x_nchw, pp):
    # Channel-major activations (C, N, H, W): every kernel's output lane axis is M.
    x = jnp.transpose(x_nchw, (1, 0, 2, 3)).astype(jnp.bfloat16)
    for p, (k, stride, pad, use_bn) in zip(pp["convs"], CONV_CFG):
        xT, (N, Ho, Wo) = im2col_t(x, k, stride, pad)
        C = p["wT"].shape[0]
        if use_bn:
            # Whole-M single block -> BN batch stats fused inside the kernel.
            yT = conv_bn_lrelu(xT, p["wT"], p["b"], p["gamma"], p["beta"])
        else:
            # Layer 1 carries ~80% of the FLOPs: keep a 2-way parallel M split so
            # v7x megacore can shard it; single block otherwise.
            m_blocks = 2 if (xT.shape[1] % 256 == 0) else 1
            yT = conv_lrelu(xT, p["wT"], p["b"], m_blocks=m_blocks)
        x = yT.reshape(C, N, Ho, Wo)
    # Final Conv(8D->1, 4, s1, p0) + Sigmoid: a 4x4 'valid' conv over a 4x4 map is a
    # per-sample dot (M=N, K=16*8D, Cout=1) -> pure launch overhead as a Pallas call,
    # so it is a tiny JAX einsum epilogue instead.
    logits = jnp.einsum("cnhw,chw->n", x.astype(jnp.float32), pp["w5"]) + pp["b5"]
    return jax.nn.sigmoid(logits)                      # (N,)


def reference_forward(x_nchw, params):
    # Pure-JAX f32 reference for validation.
    eps = 1e-5
    cfg = [
        (5, 2, 2, "lrelu", False),
        (5, 2, 2, "lrelu", True),
        (5, 2, 2, "lrelu", True),
        (5, 2, 2, "lrelu", True),
        (4, 1, 0, "sigmoid", False),
    ]
    x = x_nchw
    for p, (k, stride, pad, act, use_bn) in zip(params, cfg):
        x = jax.lax.conv_general_dilated(
            x, p["w"], window_strides=(stride, stride),
            padding=[(pad, pad), (pad, pad)],
            dimension_numbers=("NCHW", "OIHW", "NCHW"))
        x = x + p["b"].reshape(1, -1, 1, 1)
        if use_bn:
            mean = jnp.mean(x, axis=(0, 2, 3), keepdims=True)
            var = jnp.mean((x - mean) ** 2, axis=(0, 2, 3), keepdims=True)
            x = (x - mean) / jnp.sqrt(var + eps) * p["gamma"].reshape(1, -1, 1, 1) \
                + p["beta"].reshape(1, -1, 1, 1)
        if act == "lrelu":
            x = jnp.where(x >= 0, x, 0.2 * x)
        else:
            x = jax.nn.sigmoid(x)
    return x.reshape(-1)


if __name__ == "__main__":
    key = jax.random.PRNGKey(0)
    kx, kp = jax.random.split(key)
    # Spatial 64 is required by the architecture (4x stride-2 then 4x4 valid conv);
    # keep batch and channel width small.
    N, in_dim, dim, S = 2, 3, 8, 64
    x = jax.random.normal(kx, (N, in_dim, S, S), jnp.float32)
    params = init_params(kp, in_dim, dim)
    pp = prepare_params(params)

    fwd = jax.jit(discriminator_forward)
    out = jax.block_until_ready(fwd(x, pp))

    ref = reference_forward(x, params)
    assert out.shape == (N,)
    assert bool(jnp.all(jnp.isfinite(out)))
    # bf16 matmul inputs vs f32 reference -> modestly relaxed atol.
    assert bool(jnp.allclose(out, ref, atol=2e-2, rtol=5e-2)), (out, ref)
    print("KERNEL_OK")
</pallas_src>

<mosaic_0001>
module attributes {stable_mosaic.version = 11 : i64} {
  func.func @_convT_lrelu_kernel(%arg0: i32, %arg1: memref<75x1024xbf16, #tpu.memory_space<vmem>>, %arg2: memref<8x75xbf16, #tpu.memory_space<vmem>>, %arg3: memref<8x1xf32, #tpu.memory_space<vmem>>, %arg4: memref<8x1024xbf16, #tpu.memory_space<vmem>>) attributes {dimension_semantics = [#tpu.dimension_semantics<parallel>], iteration_bounds = array<i64: 2>, scalar_prefetch = 0 : i64, scratch_operands = 0 : i64, tpu.core_type = #tpu.core_type<tc>, window_params = [{transform_indices = @transform_0, window_bounds = array<i64: 75, 1024>}, {pipeline_mode = #tpu.pipeline_mode<synchronous>, transform_indices = @transform_1, window_bounds = array<i64: 8, 75>}, {pipeline_mode = #tpu.pipeline_mode<synchronous>, transform_indices = @transform_2, window_bounds = array<i64: 8, 1>}, {transform_indices = @transform_3, window_bounds = array<i64: 8, 1024>}]} {
    %c0 = arith.constant 0 : index
    %c0_0 = arith.constant 0 : index
    %0 = vector.load %arg2[%c0, %c0_0] : memref<8x75xbf16, #tpu.memory_space<vmem>>, vector<8x75xbf16>
    %c0_1 = arith.constant 0 : index
    %c0_2 = arith.constant 0 : index
    %1 = vector.load %arg1[%c0_1, %c0_2] : memref<75x1024xbf16, #tpu.memory_space<vmem>>, vector<75x1024xbf16>
    %cst = arith.constant dense<0.000000e+00> : vector<8x1024xf32>
    %2 = tpu.matmul %0, %1, %cst {dimension_numbers = #tpu.dot_dimension_numbers<[1], [0], [0], [1], [0, 0, 1, 1], [], []>} : vector<8x75xbf16>, vector<75x1024xbf16>, vector<8x1024xf32> -> vector<8x1024xf32>
    %c0_3 = arith.constant 0 : index
    %c0_4 = arith.constant 0 : index
    %3 = vector.load %arg3[%c0_3, %c0_4] : memref<8x1xf32, #tpu.memory_space<vmem>>, vector<8x1xf32>
    %4 = vector.broadcast %3 : vector<8x1xf32> to vector<8x1024xf32>
    %5 = arith.addf %2, %4 : vector<8x1024xf32>
    %cst_5 = arith.constant 0.000000e+00 : f32
    %6 = vector.broadcast %cst_5 : f32 to vector<8x1024xf32>
    %7 = arith.cmpf oge, %5, %6 : vector<8x1024xf32>
    %cst_6 = arith.constant 2.000000e-01 : f32
    %8 = vector.broadcast %cst_6 : f32 to vector<8x1024xf32>
    %9 = arith.mulf %8, %5 : vector<8x1024xf32>
    %10 = arith.select %7, %5, %9 : vector<8x1024xi1>, vector<8x1024xf32>
    %11 = arith.truncf %10 : vector<8x1024xf32> to vector<8x1024xbf16>
    %c0_7 = arith.constant 0 : index
    %c0_8 = arith.constant 0 : index
    %12 = vector.load %arg4[%c0_7, %c0_8] : memref<8x1024xbf16, #tpu.memory_space<vmem>>, vector<8x1024xbf16>
    tpu.vector_store %arg4[%c0_7, %c0_8], %11 {strides = array<i32>} : memref<8x1024xbf16, #tpu.memory_space<vmem>>, vector<8x1024xbf16>,
    return
  }
  func.func @transform_0(%arg0: i32) -> (i32, i32) {
    %c0_i32 = arith.constant 0 : i32
    %c0_i32_0 = arith.constant 0 : i32
    return %c0_i32, %arg0 : i32, i32
  }
  func.func @transform_1(%arg0: i32) -> (i32, i32) {
    %c0_i32 = arith.constant 0 : i32
    %c0_i32_0 = arith.constant 0 : i32
    %c0_i32_1 = arith.constant 0 : i32
    return %c0_i32, %c0_i32_0 : i32, i32
  }
  func.func @transform_2(%arg0: i32) -> (i32, i32) {
    %c0_i32 = arith.constant 0 : i32
    %c0_i32_0 = arith.constant 0 : i32
    %c0_i32_1 = arith.constant 0 : i32
    return %c0_i32, %c0_i32_0 : i32, i32
  }
  func.func @transform_3(%arg0: i32) -> (i32, i32) {
    %c0_i32 = arith.constant 0 : i32
    %c0_i32_0 = arith.constant 0 : i32
    return %c0_i32, %arg0 : i32, i32
  }
}

module attributes {stable_mosaic.version = 11 : i64} {
  func.func @_convT_bn_lrelu_kernel(%arg0: i32, %arg1: memref<200x512xbf16, #tpu.memory_space<vmem>>, %arg2: memref<16x200xbf16, #tpu.memory_space<vmem>>, %arg3: memref<16x1xf32, #tpu.memory_space<vmem>>, %arg4: memref<16x1xf32, #tpu.memory_space<vmem>>, %arg5: memref<16x1xf32, #tpu.memory_space<vmem>>, %arg6: memref<16x512xbf16, #tpu.memory_space<vmem>>) attributes {dimension_semantics = [#tpu.dimension_semantics<arbitrary>], iteration_bounds = array<i64: 1>, scalar_prefetch = 0 : i64, scratch_operands = 0 : i64, tpu.core_type = #tpu.core_type<tc>, window_params = [{pipeline_mode = #tpu.pipeline_mode<synchronous>, transform_indices = @transform_0, window_bounds = array<i64: 200, 512>}, {pipeline_mode = #tpu.pipeline_mode<synchronous>, transform_indices = @transform_1, window_bounds = array<i64: 16, 200>}, {pipeline_mode = #tpu.pipeline_mode<synchronous>, transform_indices = @transform_2, window_bounds = array<i64: 16, 1>}, {pipeline_mode = #tpu.pipeline_mode<synchronous>, transform_indices = @transform_3, window_bounds = array<i64: 16, 1>}, {pipeline_mode = #tpu.pipeline_mode<synchronous>, transform_indices = @transform_4, window_bounds = array<i64: 16, 1>}, {pipeline_mode = #tpu.pipeline_mode<synchronous>, transform_indices = @transform_5, window_bounds = array<i64: 16, 512>}]} {
    %c0 = arith.constant 0 : index
    %c0_0 = arith.constant 0 : index
    %0 = vector.load %arg2[%c0, %c0_0] : memref<16x200xbf16, #tpu.memory_space<vmem>>, vector<16x200xbf16>
    %c0_1 = arith.constant 0 : index
    %c0_2 = arith.constant 0 : index
    %1 = vector.load %arg1[%c0_1, %c0_2] : memref<200x512xbf16, #tpu.memory_space<vmem>>, vector<200x512xbf16>
    %cst = arith.constant dense<0.000000e+00> : vector<16x512xf32>
    %2 = tpu.matmul %0, %1, %cst {dimension_numbers = #tpu.dot_dimension_numbers<[1], [0], [0], [1], [0, 0, 1, 1], [], []>} : vector<16x200xbf16>, vector<200x512xbf16>, vector<16x512xf32> -> vector<16x512xf32>
    %c0_3 = arith.constant 0 : index
    %c0_4 = arith.constant 0 : index
    %3 = vector.load %arg3[%c0_3, %c0_4] : memref<16x1xf32, #tpu.memory_space<vmem>>, vector<16x1xf32>
    %4 = vector.broadcast %3 : vector<16x1xf32> to vector<16x512xf32>
    %5 = arith.addf %2, %4 : vector<16x512xf32>
    %cst_5 = arith.constant dense<0.000000e+00> : vector<16xf32>
    %6 = vector.multi_reduction <add>, %5, %cst_5 [1] : vector<16x512xf32> to vector<16xf32>
    %7 = vector.shape_cast %6 : vector<16xf32> to vector<16x1xf32>
    %cst_6 = arith.constant 5.120000e+02 : f32
    %8 = vector.broadcast %cst_6 : f32 to vector<16x1xf32>
    %9 = arith.divf %7, %8 : vector<16x1xf32>
    %10 = vector.broadcast %9 : vector<16x1xf32> to vector<16x512xf32>
    %11 = arith.subf %5, %10 : vector<16x512xf32>
    %12 = arith.mulf %11, %11 : vector<16x512xf32>
    %cst_7 = arith.constant dense<0.000000e+00> : vector<16xf32>
    %13 = vector.multi_reduction <add>, %12, %cst_7 [1] : vector<16x512xf32> to vector<16xf32>
    %14 = vector.shape_cast %13 : vector<16xf32> to vector<16x1xf32>
    %cst_8 = arith.constant 5.120000e+02 : f32
    %15 = vector.broadcast %cst_8 : f32 to vector<16x1xf32>
    %16 = arith.divf %14, %15 : vector<16x1xf32>
    %cst_9 = arith.constant 0.000000e+00 : f32
    %17 = vector.broadcast %cst_9 : f32 to vector<16x1xf32>
    %18 = arith.maximumf %16, %17 : vector<16x1xf32>
    %cst_10 = arith.constant 9.99999974E-6 : f32
    %19 = vector.broadcast %cst_10 : f32 to vector<16x1xf32>
    %20 = arith.addf %18, %19 : vector<16x1xf32>
    %21 = math.rsqrt %20 : vector<16x1xf32>
    %c0_11 = arith.constant 0 : index
    %c0_12 = arith.constant 0 : index
    %22 = vector.load %arg4[%c0_11, %c0_12] : memref<16x1xf32, #tpu.memory_space<vmem>>, vector<16x1xf32>
    %23 = arith.mulf %21, %22 : vector<16x1xf32>
    %24 = vector.broadcast %23 : vector<16x1xf32> to vector<16x512xf32>
    %25 = arith.mulf %11, %24 : vector<16x512xf32>
    %c0_13 = arith.constant 0 : index
    %c0_14 = arith.constant 0 : index
    %26 = vector.load %arg5[%c0_13, %c0_14] : memref<16x1xf32, #tpu.memory_space<vmem>>, vector<16x1xf32>
    %27 = vector.broadcast %26 : vector<16x1xf32> to vector<16x512xf32>
    %28 = arith.addf %25, %27 : vector<16x512xf32>
    %cst_15 = arith.constant 0.000000e+00 : f32
    %29 = vector.broadcast %cst_15 : f32 to vector<16x512xf32>
    %30 = arith.cmpf oge, %28, %29 : vector<16x512xf32>
    %cst_16 = arith.constant 2.000000e-01 : f32
    %31 = vector.broadcast %cst_16 : f32 to vector<16x512xf32>
    %32 = arith.mulf %31, %28 : vector<16x512xf32>
    %33 = arith.select %30, %28, %32 : vector<16x512xi1>, vector<16x512xf32>
    %34 = arith.truncf %33 : vector<16x512xf32> to vector<16x512xbf16>
    %c0_17 = arith.constant 0 : index
    %c0_18 = arith.constant 0 : index
    %35 = vector.load %arg6[%c0_17, %c0_18] : memref<16x512xbf16, #tpu.memory_space<vmem>>, vector<16x512xbf16>
    tpu.vector_store %arg6[%c0_17, %c0_18], %34 {strides = array<i32>} : memref<16x512xbf16, #tpu.memory_space<vmem>>, vector<16x512xbf16>,
    return
  }
  func.func @transform_0(%arg0: i32) -> (i32, i32) {
    %c0_i32 = arith.constant 0 : i32
    %c0_i32_0 = arith.constant 0 : i32
    %c0_i32_1 = arith.constant 0 : i32
    return %c0_i32, %c0_i32_0 : i32, i32
  }
  func.func @transform_1(%arg0: i32) -> (i32, i32) {
    %c0_i32 = arith.constant 0 : i32
    %c0_i32_0 = arith.constant 0 : i32
    %c0_i32_1 = arith.constant 0 : i32
    return %c0_i32, %c0_i32_0 : i32, i32
  }
  func.func @transform_2(%arg0: i32) -> (i32, i32) {
    %c0_i32 = arith.constant 0 : i32
    %c0_i32_0 = arith.constant 0 : i32
    %c0_i32_1 = arith.constant 0 : i32
    return %c0_i32, %c0_i32_0 : i32, i32
  }
  func.func @transform_3(%arg0: i32) -> (i32, i32) {
    %c0_i32 = arith.constant 0 : i32
    %c0_i32_0 = arith.constant 0 : i32
    %c0_i32_1 = arith.constant 0 : i32
    return %c0_i32, %c0_i32_0 : i32, i32
  }
  func.func @transform_4(%arg0: i32) -> (i32, i32) {
    %c0_i32 = arith.constant 0 : i32
    %c0_i32_0 = arith.constant 0 : i32
    %c0_i32_1 = arith.constant 0 : i32
    return %c0_i32, %c0_i32_0 : i32, i32
  }
  func.func @transform_5(%arg0: i32) -> (i32, i32) {
    %c0_i32 = arith.constant 0 : i32
    %c0_i32_0 = arith.constant 0 : i32
    %c0_i32_1 = arith.constant 0 : i32
    return %c0_i32, %c0_i32_0 : i32, i32
  }
}

module attributes {stable_mosaic.version = 11 : i64} {
  func.func @_convT_bn_lrelu_kernel(%arg0: i32, %arg1: memref<400x128xbf16, #tpu.memory_space<vmem>>, %arg2: memref<32x400xbf16, #tpu.memory_space<vmem>>, %arg3: memref<32x1xf32, #tpu.memory_space<vmem>>, %arg4: memref<32x1xf32, #tpu.memory_space<vmem>>, %arg5: memref<32x1xf32, #tpu.memory_space<vmem>>, %arg6: memref<32x128xbf16, #tpu.memory_space<vmem>>) attributes {dimension_semantics = [#tpu.dimension_semantics<arbitrary>], iteration_bounds = array<i64: 1>, scalar_prefetch = 0 : i64, scratch_operands = 0 : i64, tpu.core_type = #tpu.core_type<tc>, window_params = [{pipeline_mode = #tpu.pipeline_mode<synchronous>, transform_indices = @transform_0, window_bounds = array<i64: 400, 128>}, {pipeline_mode = #tpu.pipeline_mode<synchronous>, transform_indices = @transform_1, window_bounds = array<i64: 32, 400>}, {pipeline_mode = #tpu.pipeline_mode<synchronous>, transform_indices = @transform_2, window_bounds = array<i64: 32, 1>}, {pipeline_mode = #tpu.pipeline_mode<synchronous>, transform_indices = @transform_3, window_bounds = array<i64: 32, 1>}, {pipeline_mode = #tpu.pipeline_mode<synchronous>, transform_indices = @transform_4, window_bounds = array<i64: 32, 1>}, {pipeline_mode = #tpu.pipeline_mode<synchronous>, transform_indices = @transform_5, window_bounds = array<i64: 32, 128>}]} {
    %c0 = arith.constant 0 : index
    %c0_0 = arith.constant 0 : index
    %0 = vector.load %arg2[%c0, %c0_0] : memref<32x400xbf16, #tpu.memory_space<vmem>>, vector<32x400xbf16>
    %c0_1 = arith.constant 0 : index
    %c0_2 = arith.constant 0 : index
    %1 = vector.load %arg1[%c0_1, %c0_2] : memref<400x128xbf16, #tpu.memory_space<vmem>>, vector<400x128xbf16>
    %cst = arith.constant dense<0.000000e+00> : vector<32x128xf32>
    %2 = tpu.matmul %0, %1, %cst {dimension_numbers = #tpu.dot_dimension_numbers<[1], [0], [0], [1], [0, 0, 1, 1], [], []>} : vector<32x400xbf16>, vector<400x128xbf16>, vector<32x128xf32> -> vector<32x128xf32>
    %c0_3 = arith.constant 0 : index
    %c0_4 = arith.constant 0 : index
    %3 = vector.load %arg3[%c0_3, %c0_4] : memref<32x1xf32, #tpu.memory_space<vmem>>, vector<32x1xf32>
    %4 = vector.broadcast %3 : vector<32x1xf32> to vector<32x128xf32>
    %5 = arith.addf %2, %4 : vector<32x128xf32>
    %cst_5 = arith.constant dense<0.000000e+00> : vector<32xf32>
    %6 = vector.multi_reduction <add>, %5, %cst_5 [1] : vector<32x128xf32> to vector<32xf32>
    %7 = vector.shape_cast %6 : vector<32xf32> to vector<32x1xf32>
    %cst_6 = arith.constant 1.280000e+02 : f32
    %8 = vector.broadcast %cst_6 : f32 to vector<32x1xf32>
    %9 = arith.divf %7, %8 : vector<32x1xf32>
    %10 = vector.broadcast %9 : vector<32x1xf32> to vector<32x128xf32>
    %11 = arith.subf %5, %10 : vector<32x128xf32>
    %12 = arith.mulf %11, %11 : vector<32x128xf32>
    %cst_7 = arith.constant dense<0.000000e+00> : vector<32xf32>
    %13 = vector.multi_reduction <add>, %12, %cst_7 [1] : vector<32x128xf32> to vector<32xf32>
    %14 = vector.shape_cast %13 : vector<32xf32> to vector<32x1xf32>
    %cst_8 = arith.constant 1.280000e+02 : f32
    %15 = vector.broadcast %cst_8 : f32 to vector<32x1xf32>
    %16 = arith.divf %14, %15 : vector<32x1xf32>
    %cst_9 = arith.constant 0.000000e+00 : f32
    %17 = vector.broadcast %cst_9 : f32 to vector<32x1xf32>
    %18 = arith.maximumf %16, %17 : vector<32x1xf32>
    %cst_10 = arith.constant 9.99999974E-6 : f32
    %19 = vector.broadcast %cst_10 : f32 to vector<32x1xf32>
    %20 = arith.addf %18, %19 : vector<32x1xf32>
    %21 = math.rsqrt %20 : vector<32x1xf32>
    %c0_11 = arith.constant 0 : index
    %c0_12 = arith.constant 0 : index
    %22 = vector.load %arg4[%c0_11, %c0_12] : memref<32x1xf32, #tpu.memory_space<vmem>>, vector<32x1xf32>
    %23 = arith.mulf %21, %22 : vector<32x1xf32>
    %24 = vector.broadcast %23 : vector<32x1xf32> to vector<32x128xf32>
    %25 = arith.mulf %11, %24 : vector<32x128xf32>
    %c0_13 = arith.constant 0 : index
    %c0_14 = arith.constant 0 : index
    %26 = vector.load %arg5[%c0_13, %c0_14] : memref<32x1xf32, #tpu.memory_space<vmem>>, vector<32x1xf32>
    %27 = vector.broadcast %26 : vector<32x1xf32> to vector<32x128xf32>
    %28 = arith.addf %25, %27 : vector<32x128xf32>
    %cst_15 = arith.constant 0.000000e+00 : f32
    %29 = vector.broadcast %cst_15 : f32 to vector<32x128xf32>
    %30 = arith.cmpf oge, %28, %29 : vector<32x128xf32>
    %cst_16 = arith.constant 2.000000e-01 : f32
    %31 = vector.broadcast %cst_16 : f32 to vector<32x128xf32>
    %32 = arith.mulf %31, %28 : vector<32x128xf32>
    %33 = arith.select %30, %28, %32 : vector<32x128xi1>, vector<32x128xf32>
    %34 = arith.truncf %33 : vector<32x128xf32> to vector<32x128xbf16>
    %c0_17 = arith.constant 0 : index
    %c0_18 = arith.constant 0 : index
    %35 = vector.load %arg6[%c0_17, %c0_18] : memref<32x128xbf16, #tpu.memory_space<vmem>>, vector<32x128xbf16>
    tpu.vector_store %arg6[%c0_17, %c0_18], %34 {strides = array<i32>} : memref<32x128xbf16, #tpu.memory_space<vmem>>, vector<32x128xbf16>,
    return
  }
  func.func @transform_0(%arg0: i32) -> (i32, i32) {
    %c0_i32 = arith.constant 0 : i32
    %c0_i32_0 = arith.constant 0 : i32
    %c0_i32_1 = arith.constant 0 : i32
    return %c0_i32, %c0_i32_0 : i32, i32
  }
  func.func @transform_1(%arg0: i32) -> (i32, i32) {
    %c0_i32 = arith.constant 0 : i32
    %c0_i32_0 = arith.constant 0 : i32
    %c0_i32_1 = arith.constant 0 : i32
    return %c0_i32, %c0_i32_0 : i32, i32
  }
  func.func @transform_2(%arg0: i32) -> (i32, i32) {
    %c0_i32 = arith.constant 0 : i32
    %c0_i32_0 = arith.constant 0 : i32
    %c0_i32_1 = arith.constant 0 : i32
    return %c0_i32, %c0_i32_0 : i32, i32
  }
  func.func @transform_3(%arg0: i32) -> (i32, i32) {
    %c0_i32 = arith.constant 0 : i32
    %c0_i32_0 = arith.constant 0 : i32
    %c0_i32_1 = arith.constant 0 : i32
    return %c0_i32, %c0_i32_0 : i32, i32
  }
  func.func @transform_4(%arg0: i32) -> (i32, i32) {
    %c0_i32 = arith.constant 0 : i32
    %c0_i32_0 = arith.constant 0 : i32
    %c0_i32_1 = arith.constant 0 : i32
    return %c0_i32, %c0_i32_0 : i32, i32
  }
  func.func @transform_5(%arg0: i32) -> (i32, i32) {
    %c0_i32 = arith.constant 0 : i32
    %c0_i32_0 = arith.constant 0 : i32
    %c0_i32_1 = arith.constant 0 : i32
    return %c0_i32, %c0_i32_0 : i32, i32
  }
}

module attributes {stable_mosaic.version = 11 : i64} {
  func.func @_convT_bn_lrelu_kernel(%arg0: i32, %arg1: memref<800x32xbf16, #tpu.memory_space<vmem>>, %arg2: memref<64x800xbf16, #tpu.memory_space<vmem>>, %arg3: memref<64x1xf32, #tpu.memory_space<vmem>>, %arg4: memref<64x1xf32, #tpu.memory_space<vmem>>, %arg5: memref<64x1xf32, #tpu.memory_space<vmem>>, %arg6: memref<64x32xbf16, #tpu.memory_space<vmem>>) attributes {dimension_semantics = [#tpu.dimension_semantics<arbitrary>], iteration_bounds = array<i64: 1>, scalar_prefetch = 0 : i64, scratch_operands = 0 : i64, tpu.core_type = #tpu.core_type<tc>, window_params = [{pipeline_mode = #tpu.pipeline_mode<synchronous>, transform_indices = @transform_0, window_bounds = array<i64: 800, 32>}, {pipeline_mode = #tpu.pipeline_mode<synchronous>, transform_indices = @transform_1, window_bounds = array<i64: 64, 800>}, {pipeline_mode = #tpu.pipeline_mode<synchronous>, transform_indices = @transform_2, window_bounds = array<i64: 64, 1>}, {pipeline_mode = #tpu.pipeline_mode<synchronous>, transform_indices = @transform_3, window_bounds = array<i64: 64, 1>}, {pipeline_mode = #tpu.pipeline_mode<synchronous>, transform_indices = @transform_4, window_bounds = array<i64: 64, 1>}, {pipeline_mode = #tpu.pipeline_mode<synchronous>, transform_indices = @transform_5, window_bounds = array<i64: 64, 32>}]} {
    %c0 = arith.constant 0 : index
    %c0_0 = arith.constant 0 : index
    %0 = vector.load %arg2[%c0, %c0_0] : memref<64x800xbf16, #tpu.memory_space<vmem>>, vector<64x800xbf16>
    %c0_1 = arith.constant 0 : index
    %c0_2 = arith.constant 0 : index
    %1 = vector.load %arg1[%c0_1, %c0_2] : memref<800x32xbf16, #tpu.memory_space<vmem>>, vector<800x32xbf16>
    %cst = arith.constant dense<0.000000e+00> : vector<64x32xf32>
    %2 = tpu.matmul %0, %1, %cst {dimension_numbers = #tpu.dot_dimension_numbers<[1], [0], [0], [1], [0, 0, 1, 1], [], []>} : vector<64x800xbf16>, vector<800x32xbf16>, vector<64x32xf32> -> vector<64x32xf32>
    %c0_3 = arith.constant 0 : index
    %c0_4 = arith.constant 0 : index
    %3 = vector.load %arg3[%c0_3, %c0_4] : memref<64x1xf32, #tpu.memory_space<vmem>>, vector<64x1xf32>
    %4 = vector.broadcast %3 : vector<64x1xf32> to vector<64x32xf32>
    %5 = arith.addf %2, %4 : vector<64x32xf32>
    %cst_5 = arith.constant dense<0.000000e+00> : vector<64xf32>
    %6 = vector.multi_reduction <add>, %5, %cst_5 [1] : vector<64x32xf32> to vector<64xf32>
    %7 = vector.shape_cast %6 : vector<64xf32> to vector<64x1xf32>
    %cst_6 = arith.constant 3.200000e+01 : f32
    %8 = vector.broadcast %cst_6 : f32 to vector<64x1xf32>
    %9 = arith.divf %7, %8 : vector<64x1xf32>
    %10 = vector.broadcast %9 : vector<64x1xf32> to vector<64x32xf32>
    %11 = arith.subf %5, %10 : vector<64x32xf32>
    %12 = arith.mulf %11, %11 : vector<64x32xf32>
    %cst_7 = arith.constant dense<0.000000e+00> : vector<64xf32>
    %13 = vector.multi_reduction <add>, %12, %cst_7 [1] : vector<64x32xf32> to vector<64xf32>
    %14 = vector.shape_cast %13 : vector<64xf32> to vector<64x1xf32>
    %cst_8 = arith.constant 3.200000e+01 : f32
    %15 = vector.broadcast %cst_8 : f32 to vector<64x1xf32>
    %16 = arith.divf %14, %15 : vector<64x1xf32>
    %cst_9 = arith.constant 0.000000e+00 : f32
    %17 = vector.broadcast %cst_9 : f32 to vector<64x1xf32>
    %18 = arith.maximumf %16, %17 : vector<64x1xf32>
    %cst_10 = arith.constant 9.99999974E-6 : f32
    %19 = vector.broadcast %cst_10 : f32 to vector<64x1xf32>
    %20 = arith.addf %18, %19 : vector<64x1xf32>
    %21 = math.rsqrt %20 : vector<64x1xf32>
    %c0_11 = arith.constant 0 : index
    %c0_12 = arith.constant 0 : index
    %22 = vector.load %arg4[%c0_11, %c0_12] : memref<64x1xf32, #tpu.memory_space<vmem>>, vector<64x1xf32>
    %23 = arith.mulf %21, %22 : vector<64x1xf32>
    %24 = vector.broadcast %23 : vector<64x1xf32> to vector<64x32xf32>
    %25 = arith.mulf %11, %24 : vector<64x32xf32>
    %c0_13 = arith.constant 0 : index
    %c0_14 = arith.constant 0 : index
    %26 = vector.load %arg5[%c0_13, %c0_14] : memref<64x1xf32, #tpu.memory_space<vmem>>, vector<64x1xf32>
    %27 = vector.broadcast %26 : vector<64x1xf32> to vector<64x32xf32>
    %28 = arith.addf %25, %27 : vector<64x32xf32>
    %cst_15 = arith.constant 0.000000e+00 : f32
    %29 = vector.broadcast %cst_15 : f32 to vector<64x32xf32>
    %30 = arith.cmpf oge, %28, %29 : vector<64x32xf32>
    %cst_16 = arith.constant 2.000000e-01 : f32
    %31 = vector.broadcast %cst_16 : f32 to vector<64x32xf32>
    %32 = arith.mulf %31, %28 : vector<64x32xf32>
    %33 = arith.select %30, %28, %32 : vector<64x32xi1>, vector<64x32xf32>
    %34 = arith.truncf %33 : vector<64x32xf32> to vector<64x32xbf16>
    %c0_17 = arith.constant 0 : index
    %c0_18 = arith.constant 0 : index
    %35 = vector.load %arg6[%c0_17, %c0_18] : memref<64x32xbf16, #tpu.memory_space<vmem>>, vector<64x32xbf16>
    tpu.vector_store %arg6[%c0_17, %c0_18], %34 {strides = array<i32>} : memref<64x32xbf16, #tpu.memory_space<vmem>>, vector<64x32xbf16>,
    return
  }
  func.func @transform_0(%arg0: i32) -> (i32, i32) {
    %c0_i32 = arith.constant 0 : i32
    %c0_i32_0 = arith.constant 0 : i32
    %c0_i32_1 = arith.constant 0 : i32
    return %c0_i32, %c0_i32_0 : i32, i32
  }
  func.func @transform_1(%arg0: i32) -> (i32, i32) {
    %c0_i32 = arith.constant 0 : i32
    %c0_i32_0 = arith.constant 0 : i32
    %c0_i32_1 = arith.constant 0 : i32
    return %c0_i32, %c0_i32_0 : i32, i32
  }
  func.func @transform_2(%arg0: i32) -> (i32, i32) {
    %c0_i32 = arith.constant 0 : i32
    %c0_i32_0 = arith.constant 0 : i32
    %c0_i32_1 = arith.constant 0 : i32
    return %c0_i32, %c0_i32_0 : i32, i32
  }
  func.func @transform_3(%arg0: i32) -> (i32, i32) {
    %c0_i32 = arith.constant 0 : i32
    %c0_i32_0 = arith.constant 0 : i32
    %c0_i32_1 = arith.constant 0 : i32
    return %c0_i32, %c0_i32_0 : i32, i32
  }
  func.func @transform_4(%arg0: i32) -> (i32, i32) {
    %c0_i32 = arith.constant 0 : i32
    %c0_i32_0 = arith.constant 0 : i32
    %c0_i32_1 = arith.constant 0 : i32
    return %c0_i32, %c0_i32_0 : i32, i32
  }
  func.func @transform_5(%arg0: i32) -> (i32, i32) {
    %c0_i32 = arith.constant 0 : i32
    %c0_i32_0 = arith.constant 0 : i32
    %c0_i32_1 = arith.constant 0 : i32
    return %c0_i32, %c0_i32_0 : i32, i32
  }
}

</mosaic_0001>

<llo_original>
// kernel: discriminator_forward.4
$region0: #{discriminator_forward.4}
  #allocation0 [shape = 'u32[]', space=smem, size = 0x4, offset = 0x4, fixed_abs, tag = 'smem constant byte address 0x4 - core index']
  #allocation1 [shape = 'u32[144,128]{1,0:T(1,128)}', space=vmem, size = 0x12000, scoped, tag = 'internal scratch']
  %s0 = inlined_call_operand.vmem [shape: bf16[75,2048], index: 0, kind: input, shape index: {}]
  %s1 = inlined_call_operand.vmem [shape: bf16[8,75], index: 1, kind: input, shape index: {}]
  %s2 = inlined_call_operand.vmem [shape: f32[8,1], index: 2, kind: input, shape index: {}]
  %s3 = inlined_call_operand.vmem [shape: bf16[8,2048], index: 3, kind: output, shape index: {}]
  %s4 = sld [smem:[#allocation0]]
  $region68: #{discriminator_forward.4} parent=0
    _
  %s6 = ssub.s32 1, %s4
  %s7 = scalar_select 0, %s6, %s4
  $region1: #{discriminator_forward.4} parent=0
    #allocation2 [shape = 'u8[327680]{0}', space=vmem, size = 0x50000, scoped, tag = 'input window, operand 0']
    loop: start=0, step=1, limit=4
    $region2: #{discriminator_forward.4} parent=1 // loop_pre_header
      _
    $region3: #{discriminator_forward.4} parent=1 // loop_header
      %s9 = sphi 0, %s13
      %p10 = scmp.ge.s32.totalorder %s9, 4
      %s19 = sphi 0, %s21
      %s22 = sphi 0, %s19
      %s23 = sphi 0, %s22
      %s39 = sphi 0, %s23
      %s43 = sphi 0, %s43
      %s45 = sphi 0, %s43
      %s46 = sphi 0, %s45
      %s60 = sphi 0, %s46
      %s64 = sphi 0, %s64
      %s66 = sphi 0, %s64
      %s67 = sphi 0, %s66
      %s81 = sphi 0, %s67
      %s87 = sphi 0, %s89
      %s90 = sphi 0, %s87
      %s91 = sphi 0, %s90
      %s107 = sphi 0, %s91
    $region4: #{discriminator_forward.4} parent=1 // loop_header_branch
      %12 = sbr.rel (%p10) target = $region8
    $region5: #{discriminator_forward.4} parent=1 // loop_body
      %s14 = ssub.s32 %s9, 1
      %s15 = ssub.s32 %s9, 2
      %s16 = sadd.s32 %s9, 1
      %s17 = ssub.s32 %s9, %s16
      %p18 = scmp.eq.s32.totalorder %s17, 0
      %s20 = sadd.s32 %s19, 1
      %s21 = scalar_select %p18, %s19, %s20
      %p24 = pneg %p18
      %p25 = scmp.eq.s32.totalorder %s9, 1
      %p26 = por %p24, %p25
      %p27 = scmp.ne.s32.totalorder %s19, %s22
      %p28 = scmp.eq.s32.totalorder %s9, 0
      %p29 = por %p27, %p28
      %p30 = scmp.ne.s32.totalorder %s19, %s22
      %p31 = scmp.eq.s32.totalorder %s14, 1
      %p32 = por %p30, %p31
      %p33 = scmp.ne.s32.totalorder %s22, %s23
      %p34 = scmp.eq.s32.totalorder %s14, 0
      %p35 = por %p33, %p34
      %p36 = scmp.ne.s32.totalorder %s22, %s23
      %p37 = scmp.eq.s32.totalorder %s15, 1
      %p38 = por %p36, %p37
      %p40 = scmp.ne.s32.totalorder %s23, %s39
      %p41 = scmp.eq.s32.totalorder %s15, 0
      %p42 = por %p40, %p41
      %s44 = sadd.s32 %s43, 1
      %p47 = scmp.eq.s32.totalorder %s9, 1
      %p48 = scmp.ne.s32.totalorder %s43, %s45
      %p49 = scmp.eq.s32.totalorder %s9, 0
      %p50 = por %p48, %p49
      %p51 = scmp.ne.s32.totalorder %s43, %s45
      %p52 = scmp.eq.s32.totalorder %s14, 1
      %p53 = por %p51, %p52
      %p54 = scmp.ne.s32.totalorder %s45, %s46
      %p55 = scmp.eq.s32.totalorder %s14, 0
      %p56 = por %p54, %p55
      %p57 = scmp.ne.s32.totalorder %s45, %s46
      %p58 = scmp.eq.s32.totalorder %s15, 1
      %p59 = por %p57, %p58
      %p61 = scmp.ne.s32.totalorder %s46, %s60
      %p62 = scmp.eq.s32.totalorder %s15, 0
      %p63 = por %p61, %p62
      %s65 = sadd.s32 %s64, 1
      %p68 = scmp.eq.s32.totalorder %s9, 1
      %p69 = scmp.ne.s32.totalorder %s64, %s66
      %p70 = scmp.eq.s32.totalorder %s9, 0
      %p71 = por %p69, %p70
      %p72 = scmp.ne.s32.totalorder %s64, %s66
      %p73 = scmp.eq.s32.totalorder %s14, 1
      %p74 = por %p72, %p73
      %p75 = scmp.ne.s32.totalorder %s66, %s67
      %p76 = scmp.eq.s32.totalorder %s14, 0
      %p77 = por %p75, %p76
      %p78 = scmp.ne.s32.totalorder %s66, %s67
      %p79 = scmp.eq.s32.totalorder %s15, 1
      %p80 = por %p78, %p79
      %p82 = scmp.ne.s32.totalorder %s67, %s81
      %p83 = scmp.eq.s32.totalorder %s15, 0
      %p84 = por %p82, %p83
      %s85 = ssub.s32 %s9, %s16
      %p86 = scmp.eq.s32.totalorder %s85, 0
      %s88 = sadd.s32 %s87, 1
      %s89 = scalar_select %p86, %s87, %s88
      %p92 = pneg %p86
      %p93 = scmp.eq.s32.totalorder %s9, 1
      %p94 = por %p92, %p93
      %p95 = scmp.ne.s32.totalorder %s87, %s90
      %p96 = scmp.eq.s32.totalorder %s9, 0
      %p97 = por %p95, %p96
      %p98 = scmp.ne.s32.totalorder %s87, %s90
      %p99 = scmp.eq.s32.totalorder %s14, 1
      %p100 = por %p98, %p99
      %p101 = scmp.ne.s32.totalorder %s90, %s91
      %p102 = scmp.eq.s32.totalorder %s14, 0
      %p103 = por %p101, %p102
      %p104 = scmp.ne.s32.totalorder %s90, %s91
      %p105 = scmp.eq.s32.totalorder %s15, 1
      %p106 = por %p104, %p105
      %p108 = scmp.ne.s32.totalorder %s91, %s107
      %p109 = scmp.eq.s32.totalorder %s15, 0
      %p110 = por %p108, %p109
      %p111 = scmp.le.s32.totalorder 1, %s9
      %p112 = scmp.lt.s32.totalorder %s9, 3
      %p113 = pnand %p111, %p112
      %p114 = pneg %p113
      // Predicated region
      $region9: #{discriminator_forward.4} parent=5 // pred_check
        _
      $region10: #{discriminator_forward.4} parent=5 // pred_check_branch
        %116 = sbr.rel (%p113) target = $region12
      $region11: #{discriminator_forward.4} parent=5 // pred_region
        %s117 = ssub.s32 %s9, 1
        // Predicated region
        $region13: #{discriminator_forward.4} parent=11 // pred_check
          %p118 = pneg %p56
        $region14: #{discriminator_forward.4} parent=11 // pred_check_branch
          %120 = sbr.rel (%p118) target = $region16
        $region15: #{discriminator_forward.4} parent=11 // pred_region
          _
        $region16: #{discriminator_forward.4} parent=11 // pred_fallthru
          _
        // Predicated region
        $region17: #{discriminator_forward.4} parent=11 // pred_check
          %p121 = pneg %p77
        $region18: #{discriminator_forward.4} parent=11 // pred_check_branch
          %123 = sbr.rel (%p121) target = $region20
        $region19: #{discriminator_forward.4} parent=11 // pred_region
          _
        $region20: #{discriminator_forward.4} parent=11 // pred_fallthru
          _
      $region12: #{discriminator_forward.4} parent=5 // pred_fallthru
        _
      %p124 = scmp.lt.s32.totalorder %s9, 2
      // Predicated region
      $region21: #{discriminator_forward.4} parent=5 // pred_check
        %p125 = pneg %p124
      $region22: #{discriminator_forward.4} parent=5 // pred_check_branch
        %127 = sbr.rel (%p125) target = $region24
      $region23: #{discriminator_forward.4} parent=5 // pred_region
        // Predicated region
        $region25: #{discriminator_forward.4} parent=23 // pred_check
          %p128 = pneg %p29
        $region26: #{discriminator_forward.4} parent=23 // pred_check_branch
          %130 = sbr.rel (%p128) target = $region28
        $region27: #{discriminator_forward.4} parent=23 // pred_region
          %s131 = sand.u32 %s19, 1
          %s132 = sand.u32 %s19, 1
          %s133 = smul.addr %s132, 320
          %s134 = scalar_lea.vmem [#allocation2], %s133
          %s135 = smul.u32 8, %s9
          %s136 = smul.addr %s135, 4
          %s137 = scalar_lea.vmem %s0, %s136
          // Predicated region
          $region29: #{discriminator_forward.4} parent=27 // pred_check
            _
          $region30: #{discriminator_forward.4} parent=27 // pred_check_branch
            %139 = sbr.rel (0) target = $region32
          $region31: #{discriminator_forward.4} parent=27 // pred_region
            // Predicated region
            $region33: #{discriminator_forward.4} parent=31 // pred_check
              _
            $region34: #{discriminator_forward.4} parent=31 // pred_check_branch
              %141 = sbr.rel (0) target = $region36
            $region35: #{discriminator_forward.4} parent=31 // pred_region
              loop: start=0, step=1, limit=1
              $region37: #{discriminator_forward.4} parent=35 // loop_pre_header
                _
              $region38: #{discriminator_forward.4} parent=35 // loop_header
                %s143 = sphi 0, %s147
                %p144 = scmp.ge.s32.totalorder %s143, 1
                %s148 = sphi %s137, %s137
                %s149 = sphi %s134, %s134
              $region39: #{discriminator_forward.4} parent=35 // loop_header_branch
                %146 = sbr.rel (%p144) target = $region43
              $region40: #{discriminator_forward.4} parent=35 // loop_body
                %v150 = vld [vmem:[%s148] sm:$0xff]
                %151 = vst [vmem:[%s149] sm:$0xff] %v150
                %v152 = vld [vmem:[%s148 + $0x8] sm:$0xff]
                %153 = vst [vmem:[%s149 + $0x8] sm:$0xff] %v152
                %v154 = vld [vmem:[%s148 + $0x10] sm:$0xff]
                %155 = vst [vmem:[%s149 + $0x10] sm:$0xff] %v154
                %v156 = vld [vmem:[%s148 + $0x18] sm:$0xff]
                %157 = vst [vmem:[%s149 + $0x18] sm:$0xff] %v156
                %v158 = vld [vmem:[%s148 + $0x40] sm:$0xff]
                %159 = vst [vmem:[%s149 + $0x20] sm:$0xff] %v158
                %v160 = vld [vmem:[%s148 + $0x48] sm:$0xff]
                %161 = vst [vmem:[%s149 + $0x28] sm:$0xff] %v160
                %v162 = vld [vmem:[%s148 + $0x50] sm:$0xff]
                %163 = vst [vmem:[%s149 + $0x30] sm:$0xff] %v162
                %v164 = vld [vmem:[%s148 + $0x58] sm:$0xff]
                %165 = vst [vmem:[%s149 + $0x38] sm:$0xff] %v164
                %v166 = vld [vmem:[%s148 + $0x80] sm:$0xff]
                %167 = vst [vmem:[%s149 + $0x40] sm:$0xff] %v166
                %v168 = vld [vmem:[%s148 + $0x88] sm:$0xff]
                %169 = vst [vmem:[%s149 + $0x48] sm:$0xff] %v168
                %v170 = vld [vmem:[%s148 + $0x90] sm:$0xff]
                %171 = vst [vmem:[%s149 + $0x50] sm:$0xff] %v170
                %v172 = vld [vmem:[%s148 + $0x98] sm:$0xff]
                %173 = vst [vmem:[%s149 + $0x58] sm:$0xff] %v172
                %v174 = vld [vmem:[%s148 + $0xc0] sm:$0xff]
                %175 = vst [vmem:[%s149 + $0x60] sm:$0xff] %v174
                %v176 = vld [vmem:[%s148 + $0xc8] sm:$0xff]
                %177 = vst [vmem:[%s149 + $0x68] sm:$0xff] %v176
                %v178 = vld [vmem:[%s148 + $0xd0] sm:$0xff]
                %179 = vst [vmem:[%s149 + $0x70] sm:$0xff] %v178
                %v180 = vld [vmem:[%s148 + $0xd8] sm:$0xff]
                %181 = vst [vmem:[%s149 + $0x78] sm:$0xff] %v180
                %v182 = vld [vmem:[%s148 + $0x100] sm:$0xff]
                %183 = vst [vmem:[%s149 + $0x80] sm:$0xff] %v182
                %v184 = vld [vmem:[%s148 + $0x108] sm:$0xff]
                %185 = vst [vmem:[%s149 + $0x88] sm:$0xff] %v184
                %v186 = vld [vmem:[%s148 + $0x110] sm:$0xff]
                %187 = vst [vmem:[%s149 + $0x90] sm:$0xff] %v186
                %v188 = vld [vmem:[%s148 + $0x118] sm:$0xff]
                %189 = vst [vmem:[%s149 + $0x98] sm:$0xff] %v188
                %v190 = vld [vmem:[%s148 + $0x140] sm:$0xff]
                %191 = vst [vmem:[%s149 + $0xa0] sm:$0xff] %v190
                %v192 = vld [vmem:[%s148 + $0x148] sm:$0xff]
                %193 = vst [vmem:[%s149 + $0xa8] sm:$0xff] %v192
                %v194 = vld [vmem:[%s148 + $0x150] sm:$0xff]
                %195 = vst [vmem:[%s149 + $0xb0] sm:$0xff] %v194
                %v196 = vld [vmem:[%s148 + $0x158] sm:$0xff]
                %197 = vst [vmem:[%s149 + $0xb8] sm:$0xff] %v196
                %v198 = vld [vmem:[%s148 + $0x180] sm:$0xff]
                %199 = vst [vmem:[%s149 + $0xc0] sm:$0xff] %v198
                %v200 = vld [vmem:[%s148 + $0x188] sm:$0xff]
                %201 = vst [vmem:[%s149 + $0xc8] sm:$0xff] %v200
                %v202 = vld [vmem:[%s148 + $0x190] sm:$0xff]
                %203 = vst [vmem:[%s149 + $0xd0] sm:$0xff] %v202
                %v204 = vld [vmem:[%s148 + $0x198] sm:$0xff]
                %205 = vst [vmem:[%s149 + $0xd8] sm:$0xff] %v204
                %v206 = vld [vmem:[%s148 + $0x1c0] sm:$0xff]
                %207 = vst [vmem:[%s149 + $0xe0] sm:$0xff] %v206
                %v208 = vld [vmem:[%s148 + $0x1c8] sm:$0xff]
                %209 = vst [vmem:[%s149 + $0xe8] sm:$0xff] %v208
                %v210 = vld [vmem:[%s148 + $0x1d0] sm:$0xff]
                %211 = vst [vmem:[%s149 + $0xf0] sm:$0xff] %v210
                %v212 = vld [vmem:[%s148 + $0x1d8] sm:$0xff]
                %213 = vst [vmem:[%s149 + $0xf8] sm:$0xff] %v212
                %v214 = vld [vmem:[%s148 + $0x200] sm:$0xff]
                %215 = vst [vmem:[%s149 + $0x100] sm:$0xff] %v214
                %v216 = vld [vmem:[%s148 + $0x208] sm:$0xff]
                %217 = vst [vmem:[%s149 + $0x108] sm:$0xff] %v216
                %v218 = vld [vmem:[%s148 + $0x210] sm:$0xff]
                %219 = vst [vmem:[%s149 + $0x110] sm:$0xff] %v218
                %v220 = vld [vmem:[%s148 + $0x218] sm:$0xff]
                %221 = vst [vmem:[%s149 + $0x118] sm:$0xff] %v220
                %v222 = vld [vmem:[%s148 + $0x240] sm:$0xff]
                %223 = vst [vmem:[%s149 + $0x120] sm:$0xff] %v222
                %v224 = vld [vmem:[%s148 + $0x248] sm:$0xff]
                %225 = vst [vmem:[%s149 + $0x128] sm:$0xff] %v224
                %v226 = vld [vmem:[%s148 + $0x250] sm:$0xff]
                %227 = vst [vmem:[%s149 + $0x130] sm:$0xff] %v226
                %v228 = vld [vmem:[%s148 + $0x258] sm:$0xff]
                %229 = vst [vmem:[%s149 + $0x138] sm:$0xff] %v228
              $region41: #{discriminator_forward.4} parent=35 // loop_footer
                %s147 = sadd.s32 1, %s143
              $region42: #{discriminator_forward.4} parent=35 // loop_footer_branch
                %142 = sbr.rel target = $region38
              $region43: #{discriminator_forward.4} parent=35 // loop_exit
                _
            $region36: #{discriminator_forward.4} parent=31 // pred_fallthru
              _
            // Predicated region
            $region44: #{discriminator_forward.4} parent=31 // pred_check
              _
            $region45: #{discriminator_forward.4} parent=31 // pred_check_branch
              %231 = sbr.rel target = $region47
            $region46: #{discriminator_forward.4} parent=31 // pred_region
              _
            $region47: #{discriminator_forward.4} parent=31 // pred_fallthru
              _
          $region32: #{discriminator_forward.4} parent=27 // pred_fallthru
            _
          %232 = vnop
        $region28: #{discriminator_forward.4} parent=23 // pred_fallthru
          _
      $region24: #{discriminator_forward.4} parent=5 // pred_fallthru
        _
      %p233 = scmp.le.s32.totalorder 1, %s9
      %p234 = scmp.lt.s32.totalorder %s9, 3
      %p235 = pnand %p233, %p234
      %p236 = pneg %p235
      // Predicated region
      $region48: #{discriminator_forward.4} parent=5 // pred_check
        _
      $region49: #{discriminator_forward.4} parent=5 // pred_check_branch
        %238 = sbr.rel (%p235) target = $region51
      $region50: #{discriminator_forward.4} parent=5 // pred_region
        %s239 = ssub.s32 %s9, 1
        %s240 = sand.u32 %s22, 1
        %s241 = sand.u32 %s22, 1
        %s242 = smul.addr %s241, 320
        %s243 = scalar_lea.vmem [#allocation2], %s242
        // Predicated region
        $region52: #{discriminator_forward.4} parent=50 // pred_check
          %p244 = pneg %p35
        $region53: #{discriminator_forward.4} parent=50 // pred_check_branch
          %246 = sbr.rel (%p244) target = $region55
        $region54: #{discriminator_forward.4} parent=50 // pred_region
          _
        $region55: #{discriminator_forward.4} parent=50 // pred_fallthru
          _
        %s247 = sand.u32 %s22, 1
        %s248 = sand.u32 %s22, 1
        %s249 = smul.addr %s248, 320
        %s250 = scalar_lea.vmem [#allocation2], %s249
        %p251 = pneg %p35
        %p252 = pneg %p32
        %p253 = pneg %p56
        %p254 = pneg %p53
        %p255 = pneg %p77
        %p256 = pneg %p74
        %p257 = pneg %p103
        %p258 = pneg %p100
        %s259 = smul.u32 8, %s14
        %p260 = scmp.lt.s32.totalorder %s259, 15
        %s261 = scalar_select %p260, %s259, 15
        %s262 = smul.addr %s261, 4
        %s263 = scalar_lea.vmem %s3, %s262
        %s264 = smul.u32 8, %s14
        %s265 = smul.u32 8, %s14
        %p266 = scmp.lt.s32.totalorder %s265, 15
        %s267 = scalar_select %p266, %s265, 15
        %s268 = smul.addr %s267, 4
        %s269 = scalar_lea.vmem %s3, %s268
        %s270 = smul.u32 8, %s14
        %v272 = vld [vmem:[%s1] sm:$0xf]
        %v273 = vld [vmem:[%s243] sm:$0xff]
        %v274 = vld [vmem:[%s243 + $0x8] sm:$0xff]
        %v275 = vld [vmem:[%s243 + $0x10] sm:$0xff]
        %v276 = vld [vmem:[%s243 + $0x18] sm:$0xff]
        %v277 = vld [vmem:[%s243 + $0x20] sm:$0xff]
        %v278 = vld [vmem:[%s243 + $0x28] sm:$0xff]
        %v279 = vld [vmem:[%s243 + $0x30] sm:$0xff]
        %v280 = vld [vmem:[%s243 + $0x38] sm:$0xff]
        %v281 = vld [vmem:[%s243 + $0x40] sm:$0xff]
        %v282 = vld [vmem:[%s243 + $0x48] sm:$0xff]
        %v283 = vld [vmem:[%s243 + $0x50] sm:$0xff]
        %v284 = vld [vmem:[%s243 + $0x58] sm:$0xff]
        %v285 = vld [vmem:[%s243 + $0x60] sm:$0xff]
        %v286 = vld [vmem:[%s243 + $0x68] sm:$0xff]
        %v287 = vld [vmem:[%s243 + $0x70] sm:$0xff]
        %v288 = vld [vmem:[%s243 + $0x78] sm:$0xff]
        %v289 = vld [vmem:[%s243 + $0x80] sm:$0xff]
        %v290 = vld [vmem:[%s243 + $0x88] sm:$0xff]
        %v291 = vld [vmem:[%s243 + $0x90] sm:$0xff]
        %v292 = vld [vmem:[%s243 + $0x98] sm:$0xff]
        %v293 = vld [vmem:[%s243 + $0xa0] sm:$0xff]
        %v294 = vld [vmem:[%s243 + $0xa8] sm:$0xff]
        %v295 = vld [vmem:[%s243 + $0xb0] sm:$0xff]
        %v296 = vld [vmem:[%s243 + $0xb8] sm:$0xff]
        %v297 = vld [vmem:[%s243 + $0xc0] sm:$0xff]
        %v298 = vld [vmem:[%s243 + $0xc8] sm:$0xff]
        %v299 = vld [vmem:[%s243 + $0xd0] sm:$0xff]
        %v300 = vld [vmem:[%s243 + $0xd8] sm:$0xff]
        %v301 = vld [vmem:[%s243 + $0xe0] sm:$0xff]
        %v302 = vld [vmem:[%s243 + $0xe8] sm:$0xff]
        %v303 = vld [vmem:[%s243 + $0xf0] sm:$0xff]
        %v304 = vld [vmem:[%s243 + $0xf8] sm:$0xff]
        %v305 = vld [vmem:[%s243 + $0x100] sm:$0xff]
        %v306 = vld [vmem:[%s243 + $0x108] sm:$0xff]
        %v307 = vld [vmem:[%s243 + $0x110] sm:$0xff]
        %v308 = vld [vmem:[%s243 + $0x118] sm:$0xff]
        %v309 = vld [vmem:[%s243 + $0x120] sm:$0x33]
        %v310 = vld [vmem:[%s243 + $0x128] sm:$0x33]
        %v311 = vld [vmem:[%s243 + $0x130] sm:$0x33]
        %v312 = vld [vmem:[%s243 + $0x138] sm:$0x33]
        %v313 = vld [vmem:[%s2] sm:$0xff]
        %315 = vset.pattern.permute.xlu0 0
        %316 = vperm.xlu0 %315, %v313
        %v317 = vpop.permute.xlu0 %316
        %v359 = vunpack.c.l.b16 %v273
        %v360 = vunpack.c.h.b16 %v273
        %v361 = vunpack.c.l.b16 %v274
        %v362 = vunpack.c.h.b16 %v274
        %v363 = vunpack.c.l.b16 %v275
        %v364 = vunpack.c.h.b16 %v275
        %v365 = vunpack.c.l.b16 %v276
        %v366 = vunpack.c.h.b16 %v276
        %v367 = vunpack.c.l.b16 %v277
        %v368 = vunpack.c.h.b16 %v277
        %v369 = vunpack.c.l.b16 %v278
        %v370 = vunpack.c.h.b16 %v278
        %v371 = vunpack.c.l.b16 %v279
        %v372 = vunpack.c.h.b16 %v279
        %v373 = vunpack.c.l.b16 %v280
        %v374 = vunpack.c.h.b16 %v280
        %v375 = vunpack.c.l.b16 %v281
        %v376 = vunpack.c.h.b16 %v281
        %v377 = vunpack.c.l.b16 %v282
        %v378 = vunpack.c.h.b16 %v282
        %v379 = vunpack.c.l.b16 %v283
        %v380 = vunpack.c.h.b16 %v283
        %v381 = vunpack.c.l.b16 %v284
        %v382 = vunpack.c.h.b16 %v284
        %v383 = vunpack.c.l.b16 %v285
        %v384 = vunpack.c.h.b16 %v285
        %v385 = vunpack.c.l.b16 %v286
        %v386 = vunpack.c.h.b16 %v286
        %v387 = vunpack.c.l.b16 %v287
        %v388 = vunpack.c.h.b16 %v287
        %v389 = vunpack.c.l.b16 %v288
        %v390 = vunpack.c.h.b16 %v288
        %v391 = vunpack.c.l.b16 %v289
        %v392 = vunpack.c.h.b16 %v289
        %v393 = vunpack.c.l.b16 %v290
        %v394 = vunpack.c.h.b16 %v290
        %v395 = vunpack.c.l.b16 %v291
        %v396 = vunpack.c.h.b16 %v291
        %v397 = vunpack.c.l.b16 %v292
        %v398 = vunpack.c.h.b16 %v292
        %v399 = vunpack.c.l.b16 %v293
        %v400 = vunpack.c.h.b16 %v293
        %v401 = vunpack.c.l.b16 %v294
        %v402 = vunpack.c.h.b16 %v294
        %v403 = vunpack.c.l.b16 %v295
        %v404 = vunpack.c.h.b16 %v295
        %v405 = vunpack.c.l.b16 %v296
        %v406 = vunpack.c.h.b16 %v296
        %v407 = vunpack.c.l.b16 %v297
        %v408 = vunpack.c.h.b16 %v297
        %v409 = vunpack.c.l.b16 %v298
        %v410 = vunpack.c.h.b16 %v298
        %v411 = vunpack.c.l.b16 %v299
        %v412 = vunpack.c.h.b16 %v299
        %v413 = vunpack.c.l.b16 %v300
        %v414 = vunpack.c.h.b16 %v300
        %v415 = vunpack.c.l.b16 %v301
        %v416 = vunpack.c.h.b16 %v301
        %v417 = vunpack.c.l.b16 %v302
        %v418 = vunpack.c.h.b16 %v302
        %v419 = vunpack.c.l.b16 %v303
        %v420 = vunpack.c.h.b16 %v303
        %v421 = vunpack.c.l.b16 %v304
        %v422 = vunpack.c.h.b16 %v304
        %v423 = vunpack.c.l.b16 %v305
        %v424 = vunpack.c.h.b16 %v305
        %v425 = vunpack.c.l.b16 %v306
        %v426 = vunpack.c.h.b16 %v306
        %v427 = vunpack.c.l.b16 %v307
        %v428 = vunpack.c.h.b16 %v307
        %v429 = vunpack.c.l.b16 %v308
        %v430 = vunpack.c.h.b16 %v308
        %v431 = vunpack.c.l.b16 %v309
        %v432 = vunpack.c.h.b16 %v309
        %v433 = vunpack.c.l.b16 %v310
        %v434 = vunpack.c.h.b16 %v310
        %v435 = vunpack.c.l.b16 %v311
        %v436 = vunpack.c.h.b16 %v311
        %v437 = vunpack.c.l.b16 %v312
        %v438 = vunpack.c.h.b16 %v312
        %v439 = vpack.c.b16 %v367, %v359
        %v440 = vpack.c.b16 %v368, %v360
        %v441 = vpack.c.b16 %v369, %v361
        %v442 = vpack.c.b16 %v370, %v362
        %v443 = vpack.c.b16 %v371, %v363
        %v444 = vpack.c.b16 %v372, %v364
        %v445 = vpack.c.b16 %v373, %v365
        %v446 = vpack.c.b16 %v374, %v366
        %v447 = vpack.c.b16 %v383, %v375
        %v448 = vpack.c.b16 %v384, %v376
        %v449 = vpack.c.b16 %v385, %v377
        %v450 = vpack.c.b16 %v386, %v378
        %v451 = vpack.c.b16 %v387, %v379
        %v452 = vpack.c.b16 %v388, %v380
        %v453 = vpack.c.b16 %v389, %v381
        %v454 = vpack.c.b16 %v390, %v382
        %v455 = vpack.c.b16 %v399, %v391
        %v456 = vpack.c.b16 %v400, %v392
        %v457 = vpack.c.b16 %v401, %v393
        %v458 = vpack.c.b16 %v402, %v394
        %v459 = vpack.c.b16 %v403, %v395
        %v460 = vpack.c.b16 %v404, %v396
        %v461 = vpack.c.b16 %v405, %v397
        %v462 = vpack.c.b16 %v406, %v398
        %v463 = vpack.c.b16 %v415, %v407
        %v464 = vpack.c.b16 %v416, %v408
        %v465 = vpack.c.b16 %v417, %v409
        %v466 = vpack.c.b16 %v418, %v410
        %v467 = vpack.c.b16 %v419, %v411
        %v468 = vpack.c.b16 %v420, %v412
        %v469 = vpack.c.b16 %v421, %v413
        %v470 = vpack.c.b16 %v422, %v414
        %v471 = vpack.c.b16 %v431, %v423
        %v472 = vpack.c.b16 %v432, %v424
        %v473 = vpack.c.b16 %v433, %v425
        %v474 = vpack.c.b16 %v434, %v426
        %v475 = vpack.c.b16 %v435, %v427
        %v476 = vpack.c.b16 %v436, %v428
        %v477 = vpack.c.b16 %v437, %v429
        %v478 = vpack.c.b16 %v438, %v430
        %vm511 = vcmask 613376
        %v513 = vsel %vm511, %v272, 0
        %vm515 = vcmask 1044480
        %vm516 = vcmask 1045504
        %v517 = vsel %vm515, 4294967295, 65535
        %v518 = vsel %vm516, %v517, 0
        %v520 = vand.u32 %v471, %v518
        %v523 = vand.u32 %v472, %v518
        %v526 = vand.u32 %v473, %v518
        %v529 = vand.u32 %v474, %v518
        %v532 = vand.u32 %v475, %v518
        %v535 = vand.u32 %v476, %v518
        %v538 = vand.u32 %v477, %v518
        %v541 = vand.u32 %v478, %v518
        %543 = vmatprep.subr.bf16.mxu0 %v440
        %544 = vmatpush1.bf16.msra.mxu0 %v439
        %545 = vmatprep.subr.bf16.mxu0 %v448
        %546 = vmatpush1.bf16.msra.mxu0 %v447
        %547 = vmatprep.subr.bf16.mxu0 %v456
        %548 = vmatpush1.bf16.msra.mxu0 %v455
        %549 = vmatprep.subr.bf16.mxu0 %v464
        %550 = vmatpush1.bf16.msra.mxu0 %v463
        %551 = vmatprep.subr.bf16.mxu0 %v523
        %552 = vmatpush1.bf16.msra.mxu0 %v520
        %553 = vmatprep.subr.bf16.mxu0 0
        %554 = vmatpush1.bf16.msra.mxu0 0
        %555 = vmatprep.subr.bf16.mxu0 0
        %556 = vmatpush1.bf16.msra.mxu0 0
        %557 = vmatprep.subr.bf16.mxu0 0
        %558 = vmatpush1.bf16.msra.mxu0 0
        %559 = vmatprep.subr.bf16.mxu0 0
        %560 = vmatpush1.bf16.msra.mxu0 0
        %561 = vmatprep.subr.bf16.mxu0 0
        %562 = vmatpush1.bf16.msra.mxu0 0
        %563 = vmatprep.subr.bf16.mxu0 0
        %564 = vmatpush1.bf16.msra.mxu0 0
        %565 = vmatprep.subr.bf16.mxu0 0
        %566 = vmatpush1.bf16.msra.mxu0 0
        %567 = vmatprep.subr.bf16.mxu0 0
        %568 = vmatpush1.bf16.msra.mxu0 0
        %569 = vmatprep.subr.bf16.mxu0 0
        %570 = vmatpush1.bf16.msra.mxu0 0
        %571 = vmatprep.subr.bf16.mxu0 0
        %572 = vmatpush1.bf16.msra.mxu0 0
        %573 = vmatprep.subr.bf16.mxu0 0
        %574 = vmatpush1.bf16.msra.mxu0 0
        %575 = vmatprep.mubr.bf16.mxu0 0
        %576 = vmatmul.mubr.bf16.gmra.mrb[0].mxu0 %v513
        %v577 = vpop.f32.mrb[0].mxu0
        %v578 = vadd.f32 %v317, %v577
        %v579 = vpop.f32.mrb[0].mxu0
        %v580 = vadd.f32 %v317, %v579
        %v581 = vpop.f32.mrb[0].mxu0
        %v582 = vpop.f32.mrb[0].mxu0
        %583 = vdwg.mxu0
        %584 = vmatprep.subr.bf16.mxu0 %v442
        %585 = vmatpush1.bf16.msra.mxu0 %v441
        %586 = vmatprep.subr.bf16.mxu0 %v450
        %587 = vmatpush1.bf16.msra.mxu0 %v449
        %588 = vmatprep.subr.bf16.mxu0 %v458
        %589 = vmatpush1.bf16.msra.mxu0 %v457
        %590 = vmatprep.subr.bf16.mxu0 %v466
        %591 = vmatpush1.bf16.msra.mxu0 %v465
        %592 = vmatprep.subr.bf16.mxu0 %v529
        %593 = vmatpush1.bf16.msra.mxu0 %v526
        %594 = vmatprep.subr.bf16.mxu0 0
        %595 = vmatpush1.bf16.msra.mxu0 0
        %596 = vmatprep.subr.bf16.mxu0 0
        %597 = vmatpush1.bf16.msra.mxu0 0
        %598 = vmatprep.subr.bf16.mxu0 0
        %599 = vmatpush1.bf16.msra.mxu0 0
        %600 = vmatprep.subr.bf16.mxu0 0
        %601 = vmatpush1.bf16.msra.mxu0 0
        %602 = vmatprep.subr.bf16.mxu0 0
        %603 = vmatpush1.bf16.msra.mxu0 0
        %604 = vmatprep.subr.bf16.mxu0 0
        %605 = vmatpush1.bf16.msra.mxu0 0
        %606 = vmatprep.subr.bf16.mxu0 0
        %607 = vmatpush1.bf16.msra.mxu0 0
        %608 = vmatprep.subr.bf16.mxu0 0
        %609 = vmatpush1.bf16.msra.mxu0 0
        %610 = vmatprep.subr.bf16.mxu0 0
        %611 = vmatpush1.bf16.msra.mxu0 0
        %612 = vmatprep.subr.bf16.mxu0 0
        %613 = vmatpush1.bf16.msra.mxu0 0
        %614 = vmatprep.subr.bf16.mxu0 0
        %615 = vmatpush1.bf16.msra.mxu0 0
        %616 = vmatprep.mubr.bf16.mxu0 0
        %617 = vmatmul.mubr.bf16.gmra.mrb[0].mxu0 %v513
        %v618 = vpop.f32.mrb[0].mxu0
        %v619 = vadd.f32 %v317, %v618
        %v620 = vpop.f32.mrb[0].mxu0
        %v621 = vadd.f32 %v317, %v620
        %v622 = vpop.f32.mrb[0].mxu0
        %v623 = vpop.f32.mrb[0].mxu0
        %624 = vdwg.mxu0
        %625 = vmatprep.subr.bf16.mxu0 %v444
        %626 = vmatpush1.bf16.msra.mxu0 %v443
        %627 = vmatprep.subr.bf16.mxu0 %v452
        %628 = vmatpush1.bf16.msra.mxu0 %v451
        %629 = vmatprep.subr.bf16.mxu0 %v460
        %630 = vmatpush1.bf16.msra.mxu0 %v459
        %631 = vmatprep.subr.bf16.mxu0 %v468
        %632 = vmatpush1.bf16.msra.mxu0 %v467
        %633 = vmatprep.subr.bf16.mxu0 %v535
        %634 = vmatpush1.bf16.msra.mxu0 %v532
        %635 = vmatprep.subr.bf16.mxu0 0
        %636 = vmatpush1.bf16.msra.mxu0 0
        %637 = vmatprep.subr.bf16.mxu0 0
        %638 = vmatpush1.bf16.msra.mxu0 0
        %639 = vmatprep.subr.bf16.mxu0 0
        %640 = vmatpush1.bf16.msra.mxu0 0
        %641 = vmatprep.subr.bf16.mxu0 0
        %642 = vmatpush1.bf16.msra.mxu0 0
        %643 = vmatprep.subr.bf16.mxu0 0
        %644 = vmatpush1.bf16.msra.mxu0 0
        %645 = vmatprep.subr.bf16.mxu0 0
        %646 = vmatpush1.bf16.msra.mxu0 0
        %647 = vmatprep.subr.bf16.mxu0 0
        %648 = vmatpush1.bf16.msra.mxu0 0
        %649 = vmatprep.subr.bf16.mxu0 0
        %650 = vmatpush1.bf16.msra.mxu0 0
        %651 = vmatprep.subr.bf16.mxu0 0
        %652 = vmatpush1.bf16.msra.mxu0 0
        %653 = vmatprep.subr.bf16.mxu0 0
        %654 = vmatpush1.bf16.msra.mxu0 0
        %655 = vmatprep.subr.bf16.mxu0 0
        %656 = vmatpush1.bf16.msra.mxu0 0
        %657 = vmatprep.mubr.bf16.mxu0 0
        %658 = vmatmul.mubr.bf16.gmra.mrb[0].mxu0 %v513
        %v659 = vpop.f32.mrb[0].mxu0
        %v660 = vadd.f32 %v317, %v659
        %v661 = vpop.f32.mrb[0].mxu0
        %v662 = vadd.f32 %v317, %v661
        %v663 = vpop.f32.mrb[0].mxu0
        %v664 = vpop.f32.mrb[0].mxu0
        %665 = vdwg.mxu0
        %666 = vmatprep.subr.bf16.mxu0 %v446
        %667 = vmatpush1.bf16.msra.mxu0 %v445
        %668 = vmatprep.subr.bf16.mxu0 %v454
        %669 = vmatpush1.bf16.msra.mxu0 %v453
        %670 = vmatprep.subr.bf16.mxu0 %v462
        %671 = vmatpush1.bf16.msra.mxu0 %v461
        %672 = vmatprep.subr.bf16.mxu0 %v470
        %673 = vmatpush1.bf16.msra.mxu0 %v469
        %674 = vmatprep.subr.bf16.mxu0 %v541
        %675 = vmatpush1.bf16.msra.mxu0 %v538
        %676 = vmatprep.subr.bf16.mxu0 0
        %677 = vmatpush1.bf16.msra.mxu0 0
        %678 = vmatprep.subr.bf16.mxu0 0
        %679 = vmatpush1.bf16.msra.mxu0 0
        %680 = vmatprep.subr.bf16.mxu0 0
        %681 = vmatpush1.bf16.msra.mxu0 0
        %682 = vmatprep.subr.bf16.mxu0 0
        %683 = vmatpush1.bf16.msra.mxu0 0
        %684 = vmatprep.subr.bf16.mxu0 0
        %685 = vmatpush1.bf16.msra.mxu0 0
        %686 = vmatprep.subr.bf16.mxu0 0
        %687 = vmatpush1.bf16.msra.mxu0 0
        %688 = vmatprep.subr.bf16.mxu0 0
        %689 = vmatpush1.bf16.msra.mxu0 0
        %690 = vmatprep.subr.bf16.mxu0 0
        %691 = vmatpush1.bf16.msra.mxu0 0
        %692 = vmatprep.subr.bf16.mxu0 0
        %693 = vmatpush1.bf16.msra.mxu0 0
        %694 = vmatprep.subr.bf16.mxu0 0
        %695 = vmatpush1.bf16.msra.mxu0 0
        %696 = vmatprep.subr.bf16.mxu0 0
        %697 = vmatpush1.bf16.msra.mxu0 0
        %698 = vmatprep.mubr.bf16.mxu0 0
        %699 = vmatmul.mubr.bf16.gmra.mrb[0].mxu0 %v513
        %v700 = vpop.f32.mrb[0].mxu0
        %v701 = vadd.f32 %v317, %v700
        %v702 = vpop.f32.mrb[0].mxu0
        %v703 = vadd.f32 %v317, %v702
        %v704 = vpop.f32.mrb[0].mxu0
        %v705 = vpop.f32.mrb[0].mxu0
        %706 = vdwg.mxu0
        %vm707 = vcmp.ge.f32.partialorder %v578, 0.0
        %vm708 = vcmp.ge.f32.partialorder %v580, 0.0
        %vm709 = vcmp.ge.f32.partialorder %v619, 0.0
        %vm710 = vcmp.ge.f32.partialorder %v621, 0.0
        %vm711 = vcmp.ge.f32.partialorder %v660, 0.0
        %vm712 = vcmp.ge.f32.partialorder %v662, 0.0
        %vm713 = vcmp.ge.f32.partialorder %v701, 0.0
        %vm714 = vcmp.ge.f32.partialorder %v703, 0.0
        %v715 = vmul.f32 %v578, 0.2
        %v716 = vmul.f32 %v580, 0.2
        %v717 = vmul.f32 %v619, 0.2
        %v718 = vmul.f32 %v621, 0.2
        %v719 = vmul.f32 %v660, 0.2
        %v720 = vmul.f32 %v662, 0.2
        %v721 = vmul.f32 %v701, 0.2
        %v722 = vmul.f32 %v703, 0.2
        %v723 = vsel %vm707, %v578, %v715
        %v724 = vsel %vm708, %v580, %v716
        %v725 = vsel %vm709, %v619, %v717
        %v726 = vsel %vm710, %v621, %v718
        %v727 = vsel %vm711, %v660, %v719
        %v728 = vsel %vm712, %v662, %v720
        %v729 = vsel %vm713, %v701, %v721
        %v730 = vsel %vm714, %v703, %v722
        %v731 = vpack.c.bf16 %v723, %v723
        %v732 = vpack.c.bf16 %v724, %v724
        %v733 = vpack.c.bf16 %v725, %v725
        %v734 = vpack.c.bf16 %v726, %v726
        %v735 = vpack.c.bf16 %v727, %v727
        %v736 = vpack.c.bf16 %v728, %v728
        %v737 = vpack.c.bf16 %v729, %v729
        %v738 = vpack.c.bf16 %v730, %v730
        %v747 = vunpack.c.l.b16 %v731
        %v748 = vunpack.c.l.b16 %v732
        %v749 = vunpack.c.l.b16 %v733
        %v750 = vunpack.c.l.b16 %v734
        %v751 = vunpack.c.l.b16 %v735
        %v752 = vunpack.c.l.b16 %v736
        %v753 = vunpack.c.l.b16 %v737
        %v754 = vunpack.c.l.b16 %v738
        %v755 = vpack.c.b16 %v748, %v747
        %v756 = vpack.c.b16 %v750, %v749
        %v757 = vpack.c.b16 %v752, %v751
        %v758 = vpack.c.b16 %v754, %v753
        %763 = vst [vmem:[%s269] sm:$0xff] %v755
        %764 = vst [vmem:[%s269 + $0x8] sm:$0xff] %v756
        %765 = vst [vmem:[%s269 + $0x10] sm:$0xff] %v757
        %766 = vst [vmem:[%s269 + $0x18] sm:$0xff] %v758
        %s767 = smul.u32 8, %s14
        %p768 = scmp.lt.s32.totalorder %s767, 15
        %s769 = scalar_select %p768, %s767, 15
        %s770 = smul.addr %s769, 4
        %s771 = scalar_lea.vmem %s3, %s770
        // Predicated region
        $region56: #{discriminator_forward.4} parent=50 // pred_check
          %p772 = pneg %p100
        $region57: #{discriminator_forward.4} parent=50 // pred_check_branch
          %774 = sbr.rel (%p772) target = $region59
        $region58: #{discriminator_forward.4} parent=50 // pred_region
          %s775 = smul.u32 8, %s14
        $region59: #{discriminator_forward.4} parent=50 // pred_fallthru
          _
      $region51: #{discriminator_forward.4} parent=5 // pred_fallthru
        _
      %p776 = scmp.le.s32.totalorder 2, %s9
      // Predicated region
      $region60: #{discriminator_forward.4} parent=5 // pred_check
        %p777 = pneg %p776
      $region61: #{discriminator_forward.4} parent=5 // pred_check_branch
        %779 = sbr.rel (%p777) target = $region63
      $region62: #{discriminator_forward.4} parent=5 // pred_region
        %s780 = ssub.s32 %s9, 2
        // Predicated region
        $region64: #{discriminator_forward.4} parent=62 // pred_check
          %p781 = pneg %p106
        $region65: #{discriminator_forward.4} parent=62 // pred_check_branch
          %783 = sbr.rel (%p781) target = $region67
        $region66: #{discriminator_forward.4} parent=62 // pred_region
          %s784 = smul.u32 8, %s15
          %p785 = scmp.lt.s32.totalorder %s784, 15
          %s786 = scalar_select %p785, %s784, 15
          %s787 = smul.addr %s786, 4
          %s788 = scalar_lea.vmem %s3, %s787
        $region67: #{discriminator_forward.4} parent=62 // pred_fallthru
          _
      $region63: #{discriminator_forward.4} parent=5 // pred_fallthru
        _
    $region6: #{discriminator_forward.4} parent=1 // loop_footer
      %s13 = sadd.s32 1, %s9
    $region7: #{discriminator_forward.4} parent=1 // loop_footer_branch
      %8 = sbr.rel target = $region3
    $region8: #{discriminator_forward.4} parent=1 // loop_exit
      _

// kernel: discriminator_forward.5
$region0: #{discriminator_forward.5}
  #allocation0 [shape = 'u32[]', space=smem, size = 0x4, offset = 0x4, fixed_abs, tag = 'smem constant byte address 0x4 - core index']
  #allocation1 [shape = 'u32[144,128]{1,0:T(1,128)}', space=vmem, size = 0x12000, scoped, tag = 'internal scratch']
  %s0 = inlined_call_operand.vmem [shape: bf16[200,512], index: 0, kind: input, shape index: {}]
  %s1 = inlined_call_operand.vmem [shape: bf16[16,200], index: 1, kind: input, shape index: {}]
  %s2 = inlined_call_operand.vmem [shape: f32[16,1], index: 2, kind: input, shape index: {}]
  %s3 = inlined_call_operand.vmem [shape: f32[16,1], index: 3, kind: input, shape index: {}]
  %s4 = inlined_call_operand.vmem [shape: f32[16,1], index: 4, kind: input, shape index: {}]
  %s5 = inlined_call_operand.vmem [shape: bf16[16,512], index: 5, kind: output, shape index: {}]
  %s6 = sld [smem:[#allocation0]]
  $region30: #{discriminator_forward.5} parent=0
    _
  %s8 = ssub.s32 1, %s6
  %s9 = scalar_select 0, %s8, %s6
  // Predicated region
  $region2: #{discriminator_forward.5} parent=0 // pred_check
    _
  $region3: #{discriminator_forward.5} parent=0 // pred_check_branch
    %11 = sbr.rel (0) target = $region5
  $region4: #{discriminator_forward.5} parent=0 // pred_region
    _
  $region5: #{discriminator_forward.5} parent=0 // pred_fallthru
    _
  // Predicated region
  $region6: #{discriminator_forward.5} parent=0 // pred_check
    _
  $region7: #{discriminator_forward.5} parent=0 // pred_check_branch
    %13 = sbr.rel (0) target = $region9
  $region8: #{discriminator_forward.5} parent=0 // pred_region
    _
  $region9: #{discriminator_forward.5} parent=0 // pred_fallthru
    _
  // Predicated region
  $region10: #{discriminator_forward.5} parent=0 // pred_check
    _
  $region11: #{discriminator_forward.5} parent=0 // pred_check_branch
    %15 = sbr.rel (0) target = $region13
  $region12: #{discriminator_forward.5} parent=0 // pred_region
    _
  $region13: #{discriminator_forward.5} parent=0 // pred_fallthru
    _
  // Predicated region
  $region14: #{discriminator_forward.5} parent=0 // pred_check
    _
  $region15: #{discriminator_forward.5} parent=0 // pred_check_branch
    %17 = sbr.rel (0) target = $region17
  $region16: #{discriminator_forward.5} parent=0 // pred_region
    _
  $region17: #{discriminator_forward.5} parent=0 // pred_fallthru
    _
  // Predicated region
  $region18: #{discriminator_forward.5} parent=0 // pred_check
    _
  $region19: #{discriminator_forward.5} parent=0 // pred_check_branch
    %19 = sbr.rel (0) target = $region21
  $region20: #{discriminator_forward.5} parent=0 // pred_region
    _
  $region21: #{discriminator_forward.5} parent=0 // pred_fallthru
    _
  %v21 = vld [vmem:[%s1] sm:$0xff]
  %v22 = vld [vmem:[%s1 + $0x8] sm:$0xff]
  %v23 = vld [vmem:[%s0] sm:$0xff]
  %v24 = vld [vmem:[%s0 + $0x8] sm:$0xff]
  %v25 = vld [vmem:[%s0 + $0x10] sm:$0xff]
  %v26 = vld [vmem:[%s0 + $0x18] sm:$0xff]
  %v27 = vld [vmem:[%s0 + $0x20] sm:$0xff]
  %v28 = vld [vmem:[%s0 + $0x28] sm:$0xff]
  %v29 = vld [vmem:[%s0 + $0x30] sm:$0xff]
  %v30 = vld [vmem:[%s0 + $0x38] sm:$0xff]
  %v31 = vld [vmem:[%s0 + $0x40] sm:$0xff]
  %v32 = vld [vmem:[%s0 + $0x48] sm:$0xff]
  %v33 = vld [vmem:[%s0 + $0x50] sm:$0xff]
  %v34 = vld [vmem:[%s0 + $0x58] sm:$0xff]
  %v35 = vld [vmem:[%s0 + $0x60] sm:$0xff]
  %v36 = vld [vmem:[%s0 + $0x68] sm:$0xff]
  %v37 = vld [vmem:[%s0 + $0x70] sm:$0xff]
  %v38 = vld [vmem:[%s0 + $0x78] sm:$0xff]
  %v39 = vld [vmem:[%s0 + $0x80] sm:$0xff]
  %v40 = vld [vmem:[%s0 + $0x88] sm:$0xff]
  %v41 = vld [vmem:[%s0 + $0x90] sm:$0xff]
  %v42 = vld [vmem:[%s0 + $0x98] sm:$0xff]
  %v43 = vld [vmem:[%s0 + $0xa0] sm:$0xff]
  %v44 = vld [vmem:[%s0 + $0xa8] sm:$0xff]
  %v45 = vld [vmem:[%s0 + $0xb0] sm:$0xff]
  %v46 = vld [vmem:[%s0 + $0xb8] sm:$0xff]
  %v47 = vld [vmem:[%s0 + $0xc0] sm:$0xff]
  %v48 = vld [vmem:[%s0 + $0xc8] sm:$0xff]
  %v49 = vld [vmem:[%s0 + $0xd0] sm:$0xff]
  %v50 = vld [vmem:[%s0 + $0xd8] sm:$0xff]
  %v51 = vld [vmem:[%s0 + $0xe0] sm:$0xff]
  %v52 = vld [vmem:[%s0 + $0xe8] sm:$0xff]
  %v53 = vld [vmem:[%s0 + $0xf0] sm:$0xff]
  %v54 = vld [vmem:[%s0 + $0xf8] sm:$0xff]
  %v55 = vld [vmem:[%s0 + $0x100] sm:$0xff]
  %v56 = vld [vmem:[%s0 + $0x108] sm:$0xff]
  %v57 = vld [vmem:[%s0 + $0x110] sm:$0xff]
  %v58 = vld [vmem:[%s0 + $0x118] sm:$0xff]
  %v59 = vld [vmem:[%s0 + $0x120] sm:$0xff]
  %v60 = vld [vmem:[%s0 + $0x128] sm:$0xff]
  %v61 = vld [vmem:[%s0 + $0x130] sm:$0xff]
  %v62 = vld [vmem:[%s0 + $0x138] sm:$0xff]
  %v63 = vld [vmem:[%s0 + $0x140] sm:$0xff]
  %v64 = vld [vmem:[%s0 + $0x148] sm:$0xff]
  %v65 = vld [vmem:[%s0 + $0x150] sm:$0xff]
  %v66 = vld [vmem:[%s0 + $0x158] sm:$0xff]
  %v67 = vld [vmem:[%s0 + $0x160] sm:$0xff]
  %v68 = vld [vmem:[%s0 + $0x168] sm:$0xff]
  %v69 = vld [vmem:[%s0 + $0x170] sm:$0xff]
  %v70 = vld [vmem:[%s0 + $0x178] sm:$0xff]
  %v71 = vld [vmem:[%s0 + $0x180] sm:$0xff]
  %v72 = vld [vmem:[%s0 + $0x188] sm:$0xff]
  %v73 = vld [vmem:[%s2] sm:$0xff]
  %v74 = vld [vmem:[%s2 + $0x8] sm:$0xff]
  %76 = vset.pattern.permute.xlu0 0
  %77 = vperm.xlu0 %76, %v73
  %v78 = vpop.permute.xlu0 %77
  %81 = vset.pattern.permute.xlu0 0
  %82 = vperm.xlu0 %81, %v74
  %v83 = vpop.permute.xlu0 %82
  %v87 = vunpack.c.l.b16 %v21
  %v88 = vunpack.c.h.b16 %v21
  %v89 = vunpack.c.l.b16 %v22
  %v90 = vunpack.c.h.b16 %v22
  %v91 = vpack.c.b16 %v89, %v87
  %v92 = vpack.c.b16 %v90, %v88
  %v144 = vunpack.c.l.b16 %v23
  %v145 = vunpack.c.h.b16 %v23
  %v146 = vunpack.c.l.b16 %v24
  %v147 = vunpack.c.h.b16 %v24
  %v148 = vunpack.c.l.b16 %v25
  %v149 = vunpack.c.h.b16 %v25
  %v150 = vunpack.c.l.b16 %v26
  %v151 = vunpack.c.h.b16 %v26
  %v152 = vunpack.c.l.b16 %v27
  %v153 = vunpack.c.h.b16 %v27
  %v154 = vunpack.c.l.b16 %v28
  %v155 = vunpack.c.h.b16 %v28
  %v156 = vunpack.c.l.b16 %v29
  %v157 = vunpack.c.h.b16 %v29
  %v158 = vunpack.c.l.b16 %v30
  %v159 = vunpack.c.h.b16 %v30
  %v160 = vunpack.c.l.b16 %v31
  %v161 = vunpack.c.h.b16 %v31
  %v162 = vunpack.c.l.b16 %v32
  %v163 = vunpack.c.h.b16 %v32
  %v164 = vunpack.c.l.b16 %v33
  %v165 = vunpack.c.h.b16 %v33
  %v166 = vunpack.c.l.b16 %v34
  %v167 = vunpack.c.h.b16 %v34
  %v168 = vunpack.c.l.b16 %v35
  %v169 = vunpack.c.h.b16 %v35
  %v170 = vunpack.c.l.b16 %v36
  %v171 = vunpack.c.h.b16 %v36
  %v172 = vunpack.c.l.b16 %v37
  %v173 = vunpack.c.h.b16 %v37
  %v174 = vunpack.c.l.b16 %v38
  %v175 = vunpack.c.h.b16 %v38
  %v176 = vunpack.c.l.b16 %v39
  %v177 = vunpack.c.h.b16 %v39
  %v178 = vunpack.c.l.b16 %v40
  %v179 = vunpack.c.h.b16 %v40
  %v180 = vunpack.c.l.b16 %v41
  %v181 = vunpack.c.h.b16 %v41
  %v182 = vunpack.c.l.b16 %v42
  %v183 = vunpack.c.h.b16 %v42
  %v184 = vunpack.c.l.b16 %v43
  %v185 = vunpack.c.h.b16 %v43
  %v186 = vunpack.c.l.b16 %v44
  %v187 = vunpack.c.h.b16 %v44
  %v188 = vunpack.c.l.b16 %v45
  %v189 = vunpack.c.h.b16 %v45
  %v190 = vunpack.c.l.b16 %v46
  %v191 = vunpack.c.h.b16 %v46
  %v192 = vunpack.c.l.b16 %v47
  %v193 = vunpack.c.h.b16 %v47
  %v194 = vunpack.c.l.b16 %v48
  %v195 = vunpack.c.h.b16 %v48
  %v196 = vunpack.c.l.b16 %v49
  %v197 = vunpack.c.h.b16 %v49
  %v198 = vunpack.c.l.b16 %v50
  %v199 = vunpack.c.h.b16 %v50
  %v200 = vunpack.c.l.b16 %v51
  %v201 = vunpack.c.h.b16 %v51
  %v202 = vunpack.c.l.b16 %v52
  %v203 = vunpack.c.h.b16 %v52
  %v204 = vunpack.c.l.b16 %v53
  %v205 = vunpack.c.h.b16 %v53
  %v206 = vunpack.c.l.b16 %v54
  %v207 = vunpack.c.h.b16 %v54
  %v208 = vunpack.c.l.b16 %v55
  %v209 = vunpack.c.h.b16 %v55
  %v210 = vunpack.c.l.b16 %v56
  %v211 = vunpack.c.h.b16 %v56
  %v212 = vunpack.c.l.b16 %v57
  %v213 = vunpack.c.h.b16 %v57
  %v214 = vunpack.c.l.b16 %v58
  %v215 = vunpack.c.h.b16 %v58
  %v216 = vunpack.c.l.b16 %v59
  %v217 = vunpack.c.h.b16 %v59
  %v218 = vunpack.c.l.b16 %v60
  %v219 = vunpack.c.h.b16 %v60
  %v220 = vunpack.c.l.b16 %v61
  %v221 = vunpack.c.h.b16 %v61
  %v222 = vunpack.c.l.b16 %v62
  %v223 = vunpack.c.h.b16 %v62
  %v224 = vunpack.c.l.b16 %v63
  %v225 = vunpack.c.h.b16 %v63
  %v226 = vunpack.c.l.b16 %v64
  %v227 = vunpack.c.h.b16 %v64
  %v228 = vunpack.c.l.b16 %v65
  %v229 = vunpack.c.h.b16 %v65
  %v230 = vunpack.c.l.b16 %v66
  %v231 = vunpack.c.h.b16 %v66
  %v232 = vunpack.c.l.b16 %v67
  %v233 = vunpack.c.h.b16 %v67
  %v234 = vunpack.c.l.b16 %v68
  %v235 = vunpack.c.h.b16 %v68
  %v236 = vunpack.c.l.b16 %v69
  %v237 = vunpack.c.h.b16 %v69
  %v238 = vunpack.c.l.b16 %v70
  %v239 = vunpack.c.h.b16 %v70
  %v240 = vunpack.c.l.b16 %v71
  %v241 = vunpack.c.h.b16 %v71
  %v242 = vunpack.c.l.b16 %v72
  %v243 = vunpack.c.h.b16 %v72
  %v244 = vpack.c.b16 %v148, %v144
  %v245 = vpack.c.b16 %v149, %v145
  %v246 = vpack.c.b16 %v150, %v146
  %v247 = vpack.c.b16 %v151, %v147
  %v248 = vpack.c.b16 %v156, %v152
  %v249 = vpack.c.b16 %v157, %v153
  %v250 = vpack.c.b16 %v158, %v154
  %v251 = vpack.c.b16 %v159, %v155
  %v252 = vpack.c.b16 %v164, %v160
  %v253 = vpack.c.b16 %v165, %v161
  %v254 = vpack.c.b16 %v166, %v162
  %v255 = vpack.c.b16 %v167, %v163
  %v256 = vpack.c.b16 %v172, %v168
  %v257 = vpack.c.b16 %v173, %v169
  %v258 = vpack.c.b16 %v174, %v170
  %v259 = vpack.c.b16 %v175, %v171
  %v260 = vpack.c.b16 %v180, %v176
  %v261 = vpack.c.b16 %v181, %v177
  %v262 = vpack.c.b16 %v182, %v178
  %v263 = vpack.c.b16 %v183, %v179
  %v264 = vpack.c.b16 %v188, %v184
  %v265 = vpack.c.b16 %v189, %v185
  %v266 = vpack.c.b16 %v190, %v186
  %v267 = vpack.c.b16 %v191, %v187
  %v268 = vpack.c.b16 %v196, %v192
  %v269 = vpack.c.b16 %v197, %v193
  %v270 = vpack.c.b16 %v198, %v194
  %v271 = vpack.c.b16 %v199, %v195
  %v272 = vpack.c.b16 %v204, %v200
  %v273 = vpack.c.b16 %v205, %v201
  %v274 = vpack.c.b16 %v206, %v202
  %v275 = vpack.c.b16 %v207, %v203
  %v276 = vpack.c.b16 %v212, %v208
  %v277 = vpack.c.b16 %v213, %v209
  %v278 = vpack.c.b16 %v214, %v210
  %v279 = vpack.c.b16 %v215, %v211
  %v280 = vpack.c.b16 %v220, %v216
  %v281 = vpack.c.b16 %v221, %v217
  %v282 = vpack.c.b16 %v222, %v218
  %v283 = vpack.c.b16 %v223, %v219
  %v284 = vpack.c.b16 %v228, %v224
  %v285 = vpack.c.b16 %v229, %v225
  %v286 = vpack.c.b16 %v230, %v226
  %v287 = vpack.c.b16 %v231, %v227
  %v288 = vpack.c.b16 %v236, %v232
  %v289 = vpack.c.b16 %v237, %v233
  %v290 = vpack.c.b16 %v238, %v234
  %v291 = vpack.c.b16 %v239, %v235
  %v292 = vpack.c.b16 %v240, %v240
  %v293 = vpack.c.b16 %v241, %v241
  %v294 = vpack.c.b16 %v242, %v242
  %v295 = vpack.c.b16 %v243, %v243
  %vm344 = vcmask 588800
  %v346 = vsel %vm344, %v92, 0
  %vm348 = vcmask 1043456
  %v350 = vsel %vm348, %v292, 0
  %v353 = vsel %vm348, %v293, 0
  %v356 = vsel %vm348, %v294, 0
  %v359 = vsel %vm348, %v295, 0
  %361 = vmatprep.subr.bf16.mxu0 %v245
  %362 = vmatpush1.bf16.msra.mxu0 %v244
  %363 = vmatprep.subr.bf16.mxu0 %v249
  %364 = vmatpush1.bf16.msra.mxu0 %v248
  %365 = vmatprep.subr.bf16.mxu0 %v253
  %366 = vmatpush1.bf16.msra.mxu0 %v252
  %367 = vmatprep.subr.bf16.mxu0 %v257
  %368 = vmatpush1.bf16.msra.mxu0 %v256
  %369 = vmatprep.subr.bf16.mxu0 %v261
  %370 = vmatpush1.bf16.msra.mxu0 %v260
  %371 = vmatprep.subr.bf16.mxu0 %v265
  %372 = vmatpush1.bf16.msra.mxu0 %v264
  %373 = vmatprep.subr.bf16.mxu0 %v269
  %374 = vmatpush1.bf16.msra.mxu0 %v268
  %375 = vmatprep.subr.bf16.mxu0 %v273
  %376 = vmatpush1.bf16.msra.mxu0 %v272
  %377 = vmatprep.subr.bf16.mxu0 %v277
  %378 = vmatpush1.bf16.msra.mxu0 %v276
  %379 = vmatprep.subr.bf16.mxu0 %v281
  %380 = vmatpush1.bf16.msra.mxu0 %v280
  %381 = vmatprep.subr.bf16.mxu0 %v285
  %382 = vmatpush1.bf16.msra.mxu0 %v284
  %383 = vmatprep.subr.bf16.mxu0 %v289
  %384 = vmatpush1.bf16.msra.mxu0 %v288
  %385 = vmatprep.subr.bf16.mxu0 %v353
  %386 = vmatpush1.bf16.msra.mxu0 %v350
  %387 = vmatprep.subr.bf16.mxu0 0
  %388 = vmatpush1.bf16.msra.mxu0 0
  %389 = vmatprep.subr.bf16.mxu0 0
  %390 = vmatpush1.bf16.msra.mxu0 0
  %391 = vmatprep.subr.bf16.mxu0 0
  %392 = vmatpush1.bf16.msra.mxu0 0
  %393 = vmatprep.mubr.bf16.mxu0 %v346
  %394 = vmatmul.mubr.bf16.gmra.mrb[0].mxu0 %v91
  %v395 = vpop.f32.mrb[0].mxu0
  %v396 = vadd.f32 %v78, %v395
  %v397 = vpop.f32.mrb[0].mxu0
  %v398 = vadd.f32 %v78, %v397
  %v399 = vpop.f32.mrb[0].mxu0
  %v400 = vadd.f32 %v83, %v399
  %v401 = vpop.f32.mrb[0].mxu0
  %v402 = vadd.f32 %v83, %v401
  %403 = vdwg.mxu0
  %404 = vmatprep.subr.bf16.mxu0 %v247
  %405 = vmatpush1.bf16.msra.mxu0 %v246
  %406 = vmatprep.subr.bf16.mxu0 %v251
  %407 = vmatpush1.bf16.msra.mxu0 %v250
  %408 = vmatprep.subr.bf16.mxu0 %v255
  %409 = vmatpush1.bf16.msra.mxu0 %v254
  %410 = vmatprep.subr.bf16.mxu0 %v259
  %411 = vmatpush1.bf16.msra.mxu0 %v258
  %412 = vmatprep.subr.bf16.mxu0 %v263
  %413 = vmatpush1.bf16.msra.mxu0 %v262
  %414 = vmatprep.subr.bf16.mxu0 %v267
  %415 = vmatpush1.bf16.msra.mxu0 %v266
  %416 = vmatprep.subr.bf16.mxu0 %v271
  %417 = vmatpush1.bf16.msra.mxu0 %v270
  %418 = vmatprep.subr.bf16.mxu0 %v275
  %419 = vmatpush1.bf16.msra.mxu0 %v274
  %420 = vmatprep.subr.bf16.mxu0 %v279
  %421 = vmatpush1.bf16.msra.mxu0 %v278
  %422 = vmatprep.subr.bf16.mxu0 %v283
  %423 = vmatpush1.bf16.msra.mxu0 %v282
  %424 = vmatprep.subr.bf16.mxu0 %v287
  %425 = vmatpush1.bf16.msra.mxu0 %v286
  %426 = vmatprep.subr.bf16.mxu0 %v291
  %427 = vmatpush1.bf16.msra.mxu0 %v290
  %428 = vmatprep.subr.bf16.mxu0 %v359
  %429 = vmatpush1.bf16.msra.mxu0 %v356
  %430 = vmatprep.subr.bf16.mxu0 0
  %431 = vmatpush1.bf16.msra.mxu0 0
  %432 = vmatprep.subr.bf16.mxu0 0
  %433 = vmatpush1.bf16.msra.mxu0 0
  %434 = vmatprep.subr.bf16.mxu0 0
  %435 = vmatpush1.bf16.msra.mxu0 0
  %436 = vmatprep.mubr.bf16.mxu0 %v346
  %437 = vmatmul.mubr.bf16.gmra.mrb[0].mxu0 %v91
  %v438 = vpop.f32.mrb[0].mxu0
  %v439 = vadd.f32 %v78, %v438
  %v440 = vpop.f32.mrb[0].mxu0
  %v441 = vadd.f32 %v78, %v440
  %v442 = vpop.f32.mrb[0].mxu0
  %v443 = vadd.f32 %v83, %v442
  %v444 = vpop.f32.mrb[0].mxu0
  %v445 = vadd.f32 %v83, %v444
  %446 = vdwg.mxu0
  %v447 = vadd.f32 %v396, %v398
  %v448 = vadd.f32 %v447, %v439
  %v449 = vadd.f32 %v448, %v441
  %450 = vadd.xlane.f32.xlu0 %v449
  %v451 = vpop.xlane.xlu0 %450
  %v452 = vadd.f32 %v400, %v402
  %v453 = vadd.f32 %v452, %v443
  %v454 = vadd.f32 %v453, %v445
  %455 = vadd.xlane.f32.xlu0 %v454
  %v456 = vpop.xlane.xlu0 %455
  %v457 = vrcp.pop 512.0
  %v458 = vmul.f32 %v451, %v457
  %v459 = vmul.f32 %v456, %v457
  %v460 = vsub.f32 %v396, %v458
  %v461 = vsub.f32 %v398, %v458
  %v462 = vsub.f32 %v439, %v458
  %v463 = vsub.f32 %v441, %v458
  %v464 = vsub.f32 %v400, %v459
  %v465 = vsub.f32 %v402, %v459
  %v466 = vsub.f32 %v443, %v459
  %v467 = vsub.f32 %v445, %v459
  %v468 = vmul.f32 %v460, %v460
  %v469 = vmul.f32 %v461, %v461
  %v470 = vmul.f32 %v462, %v462
  %v471 = vmul.f32 %v463, %v463
  %v472 = vmul.f32 %v464, %v464
  %v473 = vmul.f32 %v465, %v465
  %v474 = vmul.f32 %v466, %v466
  %v475 = vmul.f32 %v467, %v467
  %v476 = vadd.f32 %v468, %v469
  %v477 = vadd.f32 %v476, %v470
  %v478 = vadd.f32 %v477, %v471
  %479 = vadd.xlane.f32.xlu0 %v478
  %v480 = vpop.xlane.xlu0 %479
  %v481 = vadd.f32 %v472, %v473
  %v482 = vadd.f32 %v481, %v474
  %v483 = vadd.f32 %v482, %v475
  %484 = vadd.xlane.f32.xlu0 %v483
  %v485 = vpop.xlane.xlu0 %484
  %v486 = vmul.f32 %v480, %v457
  %v487 = vmul.f32 %v485, %v457
  %v488 = vmax.f32 %v486, 0.0
  %v489 = vmax.f32 %v487, 0.0
  %v490 = vadd.f32 %v488, 1e-05
  %v491 = vadd.f32 %v489, 1e-05
  %v492 = vrsqrt.pop %v490
  %v493 = vrsqrt.pop %v491
  %v494 = vld [vmem:[%s3] sm:$0xff]
  %v495 = vld [vmem:[%s3 + $0x8] sm:$0xff]
  %v496 = vmul.f32 %v492, %v494
  %v497 = vmul.f32 %v493, %v495
  %499 = vset.pattern.permute.xlu0 0
  %500 = vperm.xlu0 %499, %v496
  %v501 = vpop.permute.xlu0 %500
  %504 = vset.pattern.permute.xlu0 0
  %505 = vperm.xlu0 %504, %v497
  %v506 = vpop.permute.xlu0 %505
  %v508 = vmul.f32 %v460, %v501
  %v509 = vmul.f32 %v461, %v501
  %v510 = vmul.f32 %v462, %v501
  %v511 = vmul.f32 %v463, %v501
  %v512 = vmul.f32 %v464, %v506
  %v513 = vmul.f32 %v465, %v506
  %v514 = vmul.f32 %v466, %v506
  %v515 = vmul.f32 %v467, %v506
  %v516 = vld [vmem:[%s4] sm:$0xff]
  %v517 = vld [vmem:[%s4 + $0x8] sm:$0xff]
  %519 = vset.pattern.permute.xlu0 0
  %520 = vperm.xlu0 %519, %v516
  %v521 = vpop.permute.xlu0 %520
  %524 = vset.pattern.permute.xlu0 0
  %525 = vperm.xlu0 %524, %v517
  %v526 = vpop.permute.xlu0 %525
  %v528 = vadd.f32 %v508, %v521
  %v529 = vadd.f32 %v509, %v521
  %v530 = vadd.f32 %v510, %v521
  %v531 = vadd.f32 %v511, %v521
  %v532 = vadd.f32 %v512, %v526
  %v533 = vadd.f32 %v513, %v526
  %v534 = vadd.f32 %v514, %v526
  %v535 = vadd.f32 %v515, %v526
  %vm536 = vcmp.ge.f32.partialorder %v528, 0.0
  %vm537 = vcmp.ge.f32.partialorder %v529, 0.0
  %vm538 = vcmp.ge.f32.partialorder %v530, 0.0
  %vm539 = vcmp.ge.f32.partialorder %v531, 0.0
  %vm540 = vcmp.ge.f32.partialorder %v532, 0.0
  %vm541 = vcmp.ge.f32.partialorder %v533, 0.0
  %vm542 = vcmp.ge.f32.partialorder %v534, 0.0
  %vm543 = vcmp.ge.f32.partialorder %v535, 0.0
  %v544 = vmul.f32 %v528, 0.2
  %v545 = vmul.f32 %v529, 0.2
  %v546 = vmul.f32 %v530, 0.2
  %v547 = vmul.f32 %v531, 0.2
  %v548 = vmul.f32 %v532, 0.2
  %v549 = vmul.f32 %v533, 0.2
  %v550 = vmul.f32 %v534, 0.2
  %v551 = vmul.f32 %v535, 0.2
  %v552 = vsel %vm536, %v528, %v544
  %v553 = vsel %vm537, %v529, %v545
  %v554 = vsel %vm538, %v530, %v546
  %v555 = vsel %vm539, %v531, %v547
  %v556 = vsel %vm540, %v532, %v548
  %v557 = vsel %vm541, %v533, %v549
  %v558 = vsel %vm542, %v534, %v550
  %v559 = vsel %vm543, %v535, %v551
  %v560 = vpack.c.bf16 %v556, %v552
  %v561 = vpack.c.bf16 %v557, %v553
  %v562 = vpack.c.bf16 %v558, %v554
  %v563 = vpack.c.bf16 %v559, %v555
  %v568 = vunpack.c.l.b16 %v560
  %v569 = vunpack.c.l.b16 %v561
  %v570 = vunpack.c.l.b16 %v562
  %v571 = vunpack.c.l.b16 %v563
  %v572 = vunpack.c.h.b16 %v560
  %v573 = vunpack.c.h.b16 %v561
  %v574 = vunpack.c.h.b16 %v562
  %v575 = vunpack.c.h.b16 %v563
  %v576 = vpack.c.b16 %v569, %v568
  %v577 = vpack.c.b16 %v571, %v570
  %v578 = vpack.c.b16 %v573, %v572
  %v579 = vpack.c.b16 %v575, %v574
  %584 = vst [vmem:[%s5] sm:$0xff] %v576
  %585 = vst [vmem:[%s5 + $0x8] sm:$0xff] %v577
  %586 = vst [vmem:[%s5 + $0x10] sm:$0xff] %v578
  %587 = vst [vmem:[%s5 + $0x18] sm:$0xff] %v579
  // Predicated region
  $region22: #{discriminator_forward.5} parent=0 // pred_check
    _
  $region23: #{discriminator_forward.5} parent=0 // pred_check_branch
    %589 = sbr.rel (0) target = $region25
  $region24: #{discriminator_forward.5} parent=0 // pred_region
    _
  $region25: #{discriminator_forward.5} parent=0 // pred_fallthru
    _
  // Predicated region
  $region26: #{discriminator_forward.5} parent=0 // pred_check
    _
  $region27: #{discriminator_forward.5} parent=0 // pred_check_branch
    %591 = sbr.rel (0) target = $region29
  $region28: #{discriminator_forward.5} parent=0 // pred_region
    _
  $region29: #{discriminator_forward.5} parent=0 // pred_fallthru
    _

// kernel: discriminator_forward.6
$region0: #{discriminator_forward.6}
  #allocation0 [shape = 'u32[]', space=smem, size = 0x4, offset = 0x4, fixed_abs, tag = 'smem constant byte address 0x4 - core index']
  #allocation1 [shape = 'u32[144,128]{1,0:T(1,128)}', space=vmem, size = 0x12000, scoped, tag = 'internal scratch']
  %s0 = inlined_call_operand.vmem [shape: bf16[400,128], index: 0, kind: input, shape index: {}]
  %s1 = inlined_call_operand.vmem [shape: bf16[32,400], index: 1, kind: input, shape index: {}]
  %s2 = inlined_call_operand.vmem [shape: f32[32,1], index: 2, kind: input, shape index: {}]
  %s3 = inlined_call_operand.vmem [shape: f32[32,1], index: 3, kind: input, shape index: {}]
  %s4 = inlined_call_operand.vmem [shape: f32[32,1], index: 4, kind: input, shape index: {}]
  %s5 = inlined_call_operand.vmem [shape: bf16[32,128], index: 5, kind: output, shape index: {}]
  %s6 = sld [smem:[#allocation0]]
  $region30: #{discriminator_forward.6} parent=0
    _
  %s8 = ssub.s32 1, %s6
  %s9 = scalar_select 0, %s8, %s6
  // Predicated region
  $region2: #{discriminator_forward.6} parent=0 // pred_check
    _
  $region3: #{discriminator_forward.6} parent=0 // pred_check_branch
    %11 = sbr.rel (0) target = $region5
  $region4: #{discriminator_forward.6} parent=0 // pred_region
    _
  $region5: #{discriminator_forward.6} parent=0 // pred_fallthru
    _
  // Predicated region
  $region6: #{discriminator_forward.6} parent=0 // pred_check
    _
  $region7: #{discriminator_forward.6} parent=0 // pred_check_branch
    %13 = sbr.rel (0) target = $region9
  $region8: #{discriminator_forward.6} parent=0 // pred_region
    _
  $region9: #{discriminator_forward.6} parent=0 // pred_fallthru
    _
  // Predicated region
  $region10: #{discriminator_forward.6} parent=0 // pred_check
    _
  $region11: #{discriminator_forward.6} parent=0 // pred_check_branch
    %15 = sbr.rel (0) target = $region13
  $region12: #{discriminator_forward.6} parent=0 // pred_region
    _
  $region13: #{discriminator_forward.6} parent=0 // pred_fallthru
    _
  // Predicated region
  $region14: #{discriminator_forward.6} parent=0 // pred_check
    _
  $region15: #{discriminator_forward.6} parent=0 // pred_check_branch
    %17 = sbr.rel (0) target = $region17
  $region16: #{discriminator_forward.6} parent=0 // pred_region
    _
  $region17: #{discriminator_forward.6} parent=0 // pred_fallthru
    _
  // Predicated region
  $region18: #{discriminator_forward.6} parent=0 // pred_check
    _
  $region19: #{discriminator_forward.6} parent=0 // pred_check_branch
    %19 = sbr.rel (0) target = $region21
  $region20: #{discriminator_forward.6} parent=0 // pred_region
    _
  $region21: #{discriminator_forward.6} parent=0 // pred_fallthru
    _
  %v21 = vld [vmem:[%s1] sm:$0xff]
  %v22 = vld [vmem:[%s1 + $0x8] sm:$0xff]
  %v23 = vld [vmem:[%s1 + $0x10] sm:$0xff]
  %v24 = vld [vmem:[%s1 + $0x18] sm:$0xff]
  %v25 = vld [vmem:[%s1 + $0x20] sm:$0xff]
  %v26 = vld [vmem:[%s1 + $0x28] sm:$0xff]
  %v27 = vld [vmem:[%s1 + $0x30] sm:$0xff]
  %v28 = vld [vmem:[%s1 + $0x38] sm:$0xff]
  %v29 = vld [vmem:[%s0] sm:$0xf]
  %v30 = vld [vmem:[%s0 + $0x4] sm:$0xf]
  %v31 = vld [vmem:[%s0 + $0x8] sm:$0xf]
  %v32 = vld [vmem:[%s0 + $0xc] sm:$0xf]
  %v33 = vld [vmem:[%s0 + $0x10] sm:$0xf]
  %v34 = vld [vmem:[%s0 + $0x14] sm:$0xf]
  %v35 = vld [vmem:[%s0 + $0x18] sm:$0xf]
  %v36 = vld [vmem:[%s0 + $0x1c] sm:$0xf]
  %v37 = vld [vmem:[%s0 + $0x20] sm:$0xf]
  %v38 = vld [vmem:[%s0 + $0x24] sm:$0xf]
  %v39 = vld [vmem:[%s0 + $0x28] sm:$0xf]
  %v40 = vld [vmem:[%s0 + $0x2c] sm:$0xf]
  %v41 = vld [vmem:[%s0 + $0x30] sm:$0xf]
  %v42 = vld [vmem:[%s0 + $0x34] sm:$0xf]
  %v43 = vld [vmem:[%s0 + $0x38] sm:$0xf]
  %v44 = vld [vmem:[%s0 + $0x3c] sm:$0xf]
  %v45 = vld [vmem:[%s0 + $0x40] sm:$0xf]
  %v46 = vld [vmem:[%s0 + $0x44] sm:$0xf]
  %v47 = vld [vmem:[%s0 + $0x48] sm:$0xf]
  %v48 = vld [vmem:[%s0 + $0x4c] sm:$0xf]
  %v49 = vld [vmem:[%s0 + $0x50] sm:$0xf]
  %v50 = vld [vmem:[%s0 + $0x54] sm:$0xf]
  %v51 = vld [vmem:[%s0 + $0x58] sm:$0xf]
  %v52 = vld [vmem:[%s0 + $0x5c] sm:$0xf]
  %v53 = vld [vmem:[%s0 + $0x60] sm:$0xf]
  %v54 = vld [vmem:[%s0 + $0x64] sm:$0xf]
  %v55 = vld [vmem:[%s0 + $0x68] sm:$0xf]
  %v56 = vld [vmem:[%s0 + $0x6c] sm:$0xf]
  %v57 = vld [vmem:[%s0 + $0x70] sm:$0xf]
  %v58 = vld [vmem:[%s0 + $0x74] sm:$0xf]
  %v59 = vld [vmem:[%s0 + $0x78] sm:$0xf]
  %v60 = vld [vmem:[%s0 + $0x7c] sm:$0xf]
  %v61 = vld [vmem:[%s0 + $0x80] sm:$0xf]
  %v62 = vld [vmem:[%s0 + $0x84] sm:$0xf]
  %v63 = vld [vmem:[%s0 + $0x88] sm:$0xf]
  %v64 = vld [vmem:[%s0 + $0x8c] sm:$0xf]
  %v65 = vld [vmem:[%s0 + $0x90] sm:$0xf]
  %v66 = vld [vmem:[%s0 + $0x94] sm:$0xf]
  %v67 = vld [vmem:[%s0 + $0x98] sm:$0xf]
  %v68 = vld [vmem:[%s0 + $0x9c] sm:$0xf]
  %v69 = vld [vmem:[%s0 + $0xa0] sm:$0xf]
  %v70 = vld [vmem:[%s0 + $0xa4] sm:$0xf]
  %v71 = vld [vmem:[%s0 + $0xa8] sm:$0xf]
  %v72 = vld [vmem:[%s0 + $0xac] sm:$0xf]
  %v73 = vld [vmem:[%s0 + $0xb0] sm:$0xf]
  %v74 = vld [vmem:[%s0 + $0xb4] sm:$0xf]
  %v75 = vld [vmem:[%s0 + $0xb8] sm:$0xf]
  %v76 = vld [vmem:[%s0 + $0xbc] sm:$0xf]
  %v77 = vld [vmem:[%s0 + $0xc0] sm:$0xf]
  %v78 = vld [vmem:[%s0 + $0xc4] sm:$0xf]
  %v79 = vld [vmem:[%s2] sm:$0xff]
  %v80 = vld [vmem:[%s2 + $0x8] sm:$0xff]
  %v81 = vld [vmem:[%s2 + $0x10] sm:$0xff]
  %v82 = vld [vmem:[%s2 + $0x18] sm:$0xff]
  %84 = vset.pattern.permute.xlu0 0
  %85 = vperm.xlu0 %84, %v79
  %v86 = vpop.permute.xlu0 %85
  %89 = vset.pattern.permute.xlu0 0
  %90 = vperm.xlu0 %89, %v80
  %v91 = vpop.permute.xlu0 %90
  %94 = vset.pattern.permute.xlu0 0
  %95 = vperm.xlu0 %94, %v81
  %v96 = vpop.permute.xlu0 %95
  %99 = vset.pattern.permute.xlu0 0
  %100 = vperm.xlu0 %99, %v82
  %v101 = vpop.permute.xlu0 %100
  %v111 = vunpack.c.l.b16 %v21
  %v112 = vunpack.c.h.b16 %v21
  %v113 = vunpack.c.l.b16 %v22
  %v114 = vunpack.c.h.b16 %v22
  %v115 = vunpack.c.l.b16 %v23
  %v116 = vunpack.c.h.b16 %v23
  %v117 = vunpack.c.l.b16 %v24
  %v118 = vunpack.c.h.b16 %v24
  %v119 = vunpack.c.l.b16 %v25
  %v120 = vunpack.c.h.b16 %v25
  %v121 = vunpack.c.l.b16 %v26
  %v122 = vunpack.c.h.b16 %v26
  %v123 = vunpack.c.l.b16 %v27
  %v124 = vunpack.c.h.b16 %v27
  %v125 = vunpack.c.l.b16 %v28
  %v126 = vunpack.c.h.b16 %v28
  %v127 = vpack.c.b16 %v115, %v111
  %v128 = vpack.c.b16 %v116, %v112
  %v129 = vpack.c.b16 %v117, %v113
  %v130 = vpack.c.b16 %v118, %v114
  %v131 = vpack.c.b16 %v123, %v119
  %v132 = vpack.c.b16 %v124, %v120
  %v133 = vpack.c.b16 %v125, %v121
  %v134 = vpack.c.b16 %v126, %v122
  %v191 = vunpack.c.l.b16 %v29
  %v192 = vunpack.c.l.b16 %v30
  %v193 = vunpack.c.l.b16 %v31
  %v194 = vunpack.c.l.b16 %v32
  %v195 = vunpack.c.l.b16 %v33
  %v196 = vunpack.c.l.b16 %v34
  %v197 = vunpack.c.l.b16 %v35
  %v198 = vunpack.c.l.b16 %v36
  %v199 = vunpack.c.l.b16 %v37
  %v200 = vunpack.c.l.b16 %v38
  %v201 = vunpack.c.l.b16 %v39
  %v202 = vunpack.c.l.b16 %v40
  %v203 = vunpack.c.l.b16 %v41
  %v204 = vunpack.c.l.b16 %v42
  %v205 = vunpack.c.l.b16 %v43
  %v206 = vunpack.c.l.b16 %v44
  %v207 = vunpack.c.l.b16 %v45
  %v208 = vunpack.c.l.b16 %v46
  %v209 = vunpack.c.l.b16 %v47
  %v210 = vunpack.c.l.b16 %v48
  %v211 = vunpack.c.l.b16 %v49
  %v212 = vunpack.c.l.b16 %v50
  %v213 = vunpack.c.l.b16 %v51
  %v214 = vunpack.c.l.b16 %v52
  %v215 = vunpack.c.l.b16 %v53
  %v216 = vunpack.c.l.b16 %v54
  %v217 = vunpack.c.l.b16 %v55
  %v218 = vunpack.c.l.b16 %v56
  %v219 = vunpack.c.l.b16 %v57
  %v220 = vunpack.c.l.b16 %v58
  %v221 = vunpack.c.l.b16 %v59
  %v222 = vunpack.c.l.b16 %v60
  %v223 = vunpack.c.l.b16 %v61
  %v224 = vunpack.c.l.b16 %v62
  %v225 = vunpack.c.l.b16 %v63
  %v226 = vunpack.c.l.b16 %v64
  %v227 = vunpack.c.l.b16 %v65
  %v228 = vunpack.c.l.b16 %v66
  %v229 = vunpack.c.l.b16 %v67
  %v230 = vunpack.c.l.b16 %v68
  %v231 = vunpack.c.l.b16 %v69
  %v232 = vunpack.c.l.b16 %v70
  %v233 = vunpack.c.l.b16 %v71
  %v234 = vunpack.c.l.b16 %v72
  %v235 = vunpack.c.l.b16 %v73
  %v236 = vunpack.c.l.b16 %v74
  %v237 = vunpack.c.l.b16 %v75
  %v238 = vunpack.c.l.b16 %v76
  %v239 = vunpack.c.l.b16 %v77
  %v240 = vunpack.c.l.b16 %v78
  %v241 = vpack.c.b16 %v192, %v191
  %v242 = vpack.c.b16 %v194, %v193
  %v243 = vpack.c.b16 %v196, %v195
  %v244 = vpack.c.b16 %v198, %v197
  %v245 = vpack.c.b16 %v200, %v199
  %v246 = vpack.c.b16 %v202, %v201
  %v247 = vpack.c.b16 %v204, %v203
  %v248 = vpack.c.b16 %v206, %v205
  %v249 = vpack.c.b16 %v208, %v207
  %v250 = vpack.c.b16 %v210, %v209
  %v251 = vpack.c.b16 %v212, %v211
  %v252 = vpack.c.b16 %v214, %v213
  %v253 = vpack.c.b16 %v216, %v215
  %v254 = vpack.c.b16 %v218, %v217
  %v255 = vpack.c.b16 %v220, %v219
  %v256 = vpack.c.b16 %v222, %v221
  %v257 = vpack.c.b16 %v224, %v223
  %v258 = vpack.c.b16 %v226, %v225
  %v259 = vpack.c.b16 %v228, %v227
  %v260 = vpack.c.b16 %v230, %v229
  %v261 = vpack.c.b16 %v232, %v231
  %v262 = vpack.c.b16 %v234, %v233
  %v263 = vpack.c.b16 %v236, %v235
  %v264 = vpack.c.b16 %v238, %v237
  %v265 = vpack.c.b16 %v240, %v239
  %vm291 = vcmask 130048
  %v293 = vsel %vm291, %v130, 0
  %v296 = vsel %vm291, %v134, 0
  %298 = vmatprep.subr.bf16.mxu0 0
  %299 = vmatpush1.bf16.msra.mxu0 %v241
  %300 = vmatprep.subr.bf16.mxu0 0
  %301 = vmatpush1.bf16.msra.mxu0 %v242
  %302 = vmatprep.subr.bf16.mxu0 0
  %303 = vmatpush1.bf16.msra.mxu0 %v243
  %304 = vmatprep.subr.bf16.mxu0 0
  %305 = vmatpush1.bf16.msra.mxu0 %v244
  %306 = vmatprep.subr.bf16.mxu0 0
  %307 = vmatpush1.bf16.msra.mxu0 %v245
  %308 = vmatprep.subr.bf16.mxu0 0
  %309 = vmatpush1.bf16.msra.mxu0 %v246
  %310 = vmatprep.subr.bf16.mxu0 0
  %311 = vmatpush1.bf16.msra.mxu0 %v247
  %312 = vmatprep.subr.bf16.mxu0 0
  %313 = vmatpush1.bf16.msra.mxu0 %v248
  %314 = vmatprep.subr.bf16.mxu0 0
  %315 = vmatpush1.bf16.msra.mxu0 %v249
  %316 = vmatprep.subr.bf16.mxu0 0
  %317 = vmatpush1.bf16.msra.mxu0 %v250
  %318 = vmatprep.subr.bf16.mxu0 0
  %319 = vmatpush1.bf16.msra.mxu0 %v251
  %320 = vmatprep.subr.bf16.mxu0 0
  %321 = vmatpush1.bf16.msra.mxu0 %v252
  %322 = vmatprep.subr.bf16.mxu0 0
  %323 = vmatpush1.bf16.msra.mxu0 %v253
  %324 = vmatprep.subr.bf16.mxu0 0
  %325 = vmatpush1.bf16.msra.mxu0 %v254
  %326 = vmatprep.subr.bf16.mxu0 0
  %327 = vmatpush1.bf16.msra.mxu0 %v255
  %328 = vmatprep.subr.bf16.mxu0 0
  %329 = vmatpush1.bf16.msra.mxu0 %v256
  %330 = vmatprep.mubr.bf16.mxu0 %v128
  %331 = vmatmul.mubr.bf16.gmra.mrb[0].mxu0 %v127
  %v332 = vpop.f32.mrb[0].mxu0
  %v333 = vadd.f32 %v86, %v332
  %v334 = vpop.f32.mrb[0].mxu0
  %v335 = vpop.f32.mrb[0].mxu0
  %v336 = vadd.f32 %v91, %v335
  %v337 = vpop.f32.mrb[0].mxu0
  %338 = vmatprep.mubr.bf16.mxu0 %v132
  %339 = vmatmul.mubr.bf16.gmra.mrb[0].mxu0 %v131
  %v340 = vpop.f32.mrb[0].mxu0
  %v341 = vadd.f32 %v96, %v340
  %v342 = vpop.f32.mrb[0].mxu0
  %v343 = vpop.f32.mrb[0].mxu0
  %v344 = vadd.f32 %v101, %v343
  %v345 = vpop.f32.mrb[0].mxu0
  %346 = vdwg.mxu0
  %347 = vmatprep.subr.bf16.mxu0 0
  %348 = vmatpush1.bf16.msra.mxu0 %v257
  %349 = vmatprep.subr.bf16.mxu0 0
  %350 = vmatpush1.bf16.msra.mxu0 %v258
  %351 = vmatprep.subr.bf16.mxu0 0
  %352 = vmatpush1.bf16.msra.mxu0 %v259
  %353 = vmatprep.subr.bf16.mxu0 0
  %354 = vmatpush1.bf16.msra.mxu0 %v260
  %355 = vmatprep.subr.bf16.mxu0 0
  %356 = vmatpush1.bf16.msra.mxu0 %v261
  %357 = vmatprep.subr.bf16.mxu0 0
  %358 = vmatpush1.bf16.msra.mxu0 %v262
  %359 = vmatprep.subr.bf16.mxu0 0
  %360 = vmatpush1.bf16.msra.mxu0 %v263
  %361 = vmatprep.subr.bf16.mxu0 0
  %362 = vmatpush1.bf16.msra.mxu0 %v264
  %363 = vmatprep.subr.bf16.mxu0 0
  %364 = vmatpush1.bf16.msra.mxu0 %v265
  %365 = vmatprep.subr.bf16.mxu0 0
  %366 = vmatpush1.bf16.msra.mxu0 0
  %367 = vmatprep.subr.bf16.mxu0 0
  %368 = vmatpush1.bf16.msra.mxu0 0
  %369 = vmatprep.subr.bf16.mxu0 0
  %370 = vmatpush1.bf16.msra.mxu0 0
  %371 = vmatprep.subr.bf16.mxu0 0
  %372 = vmatpush1.bf16.msra.mxu0 0
  %373 = vmatprep.subr.bf16.mxu0 0
  %374 = vmatpush1.bf16.msra.mxu0 0
  %375 = vmatprep.subr.bf16.mxu0 0
  %376 = vmatpush1.bf16.msra.mxu0 0
  %377 = vmatprep.subr.bf16.mxu0 0
  %378 = vmatpush1.bf16.msra.mxu0 0
  %379 = vmatprep.mubr.bf16.mxu0 %v293
  %380 = vmatmul.mubr.bf16.gmra.mrb[0].mxu0 %v129
  %v381 = vpop.f32.mrb[0].mxu0
  %v382 = vadd.f32 %v333, %v381
  %v383 = vpop.f32.mrb[0].mxu0
  %v384 = vpop.f32.mrb[0].mxu0
  %v385 = vadd.f32 %v336, %v384
  %v386 = vpop.f32.mrb[0].mxu0
  %387 = vmatprep.mubr.bf16.mxu0 %v296
  %388 = vmatmul.mubr.bf16.gmra.mrb[0].mxu0 %v133
  %v389 = vpop.f32.mrb[0].mxu0
  %v390 = vadd.f32 %v341, %v389
  %v391 = vpop.f32.mrb[0].mxu0
  %v392 = vpop.f32.mrb[0].mxu0
  %v393 = vadd.f32 %v344, %v392
  %v394 = vpop.f32.mrb[0].mxu0
  %395 = vdwg.mxu0
  %396 = vadd.xlane.f32.xlu0 %v382
  %v397 = vpop.xlane.xlu0 %396
  %398 = vadd.xlane.f32.xlu0 %v385
  %v399 = vpop.xlane.xlu0 %398
  %400 = vadd.xlane.f32.xlu0 %v390
  %v401 = vpop.xlane.xlu0 %400
  %402 = vadd.xlane.f32.xlu0 %v393
  %v403 = vpop.xlane.xlu0 %402
  %v404 = vrcp.pop 128.0
  %v405 = vmul.f32 %v397, %v404
  %v406 = vmul.f32 %v399, %v404
  %v407 = vmul.f32 %v401, %v404
  %v408 = vmul.f32 %v403, %v404
  %v409 = vsub.f32 %v382, %v405
  %v410 = vsub.f32 %v385, %v406
  %v411 = vsub.f32 %v390, %v407
  %v412 = vsub.f32 %v393, %v408
  %v413 = vmul.f32 %v409, %v409
  %v414 = vmul.f32 %v410, %v410
  %v415 = vmul.f32 %v411, %v411
  %v416 = vmul.f32 %v412, %v412
  %417 = vadd.xlane.f32.xlu0 %v413
  %v418 = vpop.xlane.xlu0 %417
  %419 = vadd.xlane.f32.xlu0 %v414
  %v420 = vpop.xlane.xlu0 %419
  %421 = vadd.xlane.f32.xlu0 %v415
  %v422 = vpop.xlane.xlu0 %421
  %423 = vadd.xlane.f32.xlu0 %v416
  %v424 = vpop.xlane.xlu0 %423
  %v425 = vmul.f32 %v418, %v404
  %v426 = vmul.f32 %v420, %v404
  %v427 = vmul.f32 %v422, %v404
  %v428 = vmul.f32 %v424, %v404
  %v429 = vmax.f32 %v425, 0.0
  %v430 = vmax.f32 %v426, 0.0
  %v431 = vmax.f32 %v427, 0.0
  %v432 = vmax.f32 %v428, 0.0
  %v433 = vadd.f32 %v429, 1e-05
  %v434 = vadd.f32 %v430, 1e-05
  %v435 = vadd.f32 %v431, 1e-05
  %v436 = vadd.f32 %v432, 1e-05
  %v437 = vrsqrt.pop %v433
  %v438 = vrsqrt.pop %v434
  %v439 = vrsqrt.pop %v435
  %v440 = vrsqrt.pop %v436
  %v441 = vld [vmem:[%s3] sm:$0xff]
  %v442 = vld [vmem:[%s3 + $0x8] sm:$0xff]
  %v443 = vld [vmem:[%s3 + $0x10] sm:$0xff]
  %v444 = vld [vmem:[%s3 + $0x18] sm:$0xff]
  %v445 = vmul.f32 %v437, %v441
  %v446 = vmul.f32 %v438, %v442
  %v447 = vmul.f32 %v439, %v443
  %v448 = vmul.f32 %v440, %v444
  %450 = vset.pattern.permute.xlu0 0
  %451 = vperm.xlu0 %450, %v445
  %v452 = vpop.permute.xlu0 %451
  %455 = vset.pattern.permute.xlu0 0
  %456 = vperm.xlu0 %455, %v446
  %v457 = vpop.permute.xlu0 %456
  %460 = vset.pattern.permute.xlu0 0
  %461 = vperm.xlu0 %460, %v447
  %v462 = vpop.permute.xlu0 %461
  %465 = vset.pattern.permute.xlu0 0
  %466 = vperm.xlu0 %465, %v448
  %v467 = vpop.permute.xlu0 %466
  %v469 = vmul.f32 %v409, %v452
  %v470 = vmul.f32 %v410, %v457
  %v471 = vmul.f32 %v411, %v462
  %v472 = vmul.f32 %v412, %v467
  %v473 = vld [vmem:[%s4] sm:$0xff]
  %v474 = vld [vmem:[%s4 + $0x8] sm:$0xff]
  %v475 = vld [vmem:[%s4 + $0x10] sm:$0xff]
  %v476 = vld [vmem:[%s4 + $0x18] sm:$0xff]
  %478 = vset.pattern.permute.xlu0 0
  %479 = vperm.xlu0 %478, %v473
  %v480 = vpop.permute.xlu0 %479
  %483 = vset.pattern.permute.xlu0 0
  %484 = vperm.xlu0 %483, %v474
  %v485 = vpop.permute.xlu0 %484
  %488 = vset.pattern.permute.xlu0 0
  %489 = vperm.xlu0 %488, %v475
  %v490 = vpop.permute.xlu0 %489
  %493 = vset.pattern.permute.xlu0 0
  %494 = vperm.xlu0 %493, %v476
  %v495 = vpop.permute.xlu0 %494
  %v497 = vadd.f32 %v469, %v480
  %v498 = vadd.f32 %v470, %v485
  %v499 = vadd.f32 %v471, %v490
  %v500 = vadd.f32 %v472, %v495
  %vm501 = vcmp.ge.f32.partialorder %v497, 0.0
  %vm502 = vcmp.ge.f32.partialorder %v498, 0.0
  %vm503 = vcmp.ge.f32.partialorder %v499, 0.0
  %vm504 = vcmp.ge.f32.partialorder %v500, 0.0
  %v505 = vmul.f32 %v497, 0.2
  %v506 = vmul.f32 %v498, 0.2
  %v507 = vmul.f32 %v499, 0.2
  %v508 = vmul.f32 %v500, 0.2
  %v509 = vsel %vm501, %v497, %v505
  %v510 = vsel %vm502, %v498, %v506
  %v511 = vsel %vm503, %v499, %v507
  %v512 = vsel %vm504, %v500, %v508
  %v513 = vpack.c.bf16 %v510, %v509
  %v514 = vpack.c.bf16 %v512, %v511
  %v517 = vunpack.c.l.b16 %v513
  %v518 = vunpack.c.h.b16 %v513
  %v519 = vunpack.c.l.b16 %v514
  %v520 = vunpack.c.h.b16 %v514
  %v521 = vpack.c.b16 %v517, %v517
  %v522 = vpack.c.b16 %v518, %v518
  %v523 = vpack.c.b16 %v519, %v519
  %v524 = vpack.c.b16 %v520, %v520
  %529 = vst [vmem:[%s5] sm:$0xf] %v521
  %530 = vst [vmem:[%s5 + $0x4] sm:$0xf] %v522
  %531 = vst [vmem:[%s5 + $0x8] sm:$0xf] %v523
  %532 = vst [vmem:[%s5 + $0xc] sm:$0xf] %v524
  // Predicated region
  $region22: #{discriminator_forward.6} parent=0 // pred_check
    _
  $region23: #{discriminator_forward.6} parent=0 // pred_check_branch
    %534 = sbr.rel (0) target = $region25
  $region24: #{discriminator_forward.6} parent=0 // pred_region
    _
  $region25: #{discriminator_forward.6} parent=0 // pred_fallthru
    _
  // Predicated region
  $region26: #{discriminator_forward.6} parent=0 // pred_check
    _
  $region27: #{discriminator_forward.6} parent=0 // pred_check_branch
    %536 = sbr.rel (0) target = $region29
  $region28: #{discriminator_forward.6} parent=0 // pred_region
    _
  $region29: #{discriminator_forward.6} parent=0 // pred_fallthru
    _

// kernel: discriminator_forward.7
$region0: #{discriminator_forward.7}
  #allocation0 [shape = 'u32[]', space=smem, size = 0x4, offset = 0x4, fixed_abs, tag = 'smem constant byte address 0x4 - core index']
  #allocation1 [shape = 'u32[144,128]{1,0:T(1,128)}', space=vmem, size = 0x12000, scoped, tag = 'internal scratch']
  %s0 = inlined_call_operand.vmem [shape: bf16[800,32], index: 0, kind: input, shape index: {}]
  %s1 = inlined_call_operand.vmem [shape: bf16[64,800], index: 1, kind: input, shape index: {}]
  %s2 = inlined_call_operand.vmem [shape: f32[64,1], index: 2, kind: input, shape index: {}]
  %s3 = inlined_call_operand.vmem [shape: f32[64,1], index: 3, kind: input, shape index: {}]
  %s4 = inlined_call_operand.vmem [shape: f32[64,1], index: 4, kind: input, shape index: {}]
  %s5 = inlined_call_operand.vmem [shape: bf16[64,32], index: 5, kind: output, shape index: {}]
  %s6 = sld [smem:[#allocation0]]
  $region30: #{discriminator_forward.7} parent=0
    _
  %s8 = ssub.s32 1, %s6
  %s9 = scalar_select 0, %s8, %s6
  // Predicated region
  $region2: #{discriminator_forward.7} parent=0 // pred_check
    _
  $region3: #{discriminator_forward.7} parent=0 // pred_check_branch
    %11 = sbr.rel (0) target = $region5
  $region4: #{discriminator_forward.7} parent=0 // pred_region
    _
  $region5: #{discriminator_forward.7} parent=0 // pred_fallthru
    _
  // Predicated region
  $region6: #{discriminator_forward.7} parent=0 // pred_check
    _
  $region7: #{discriminator_forward.7} parent=0 // pred_check_branch
    %13 = sbr.rel (0) target = $region9
  $region8: #{discriminator_forward.7} parent=0 // pred_region
    _
  $region9: #{discriminator_forward.7} parent=0 // pred_fallthru
    _
  // Predicated region
  $region10: #{discriminator_forward.7} parent=0 // pred_check
    _
  $region11: #{discriminator_forward.7} parent=0 // pred_check_branch
    %15 = sbr.rel (0) target = $region13
  $region12: #{discriminator_forward.7} parent=0 // pred_region
    _
  $region13: #{discriminator_forward.7} parent=0 // pred_fallthru
    _
  // Predicated region
  $region14: #{discriminator_forward.7} parent=0 // pred_check
    _
  $region15: #{discriminator_forward.7} parent=0 // pred_check_branch
    %17 = sbr.rel (0) target = $region17
  $region16: #{discriminator_forward.7} parent=0 // pred_region
    _
  $region17: #{discriminator_forward.7} parent=0 // pred_fallthru
    _
  // Predicated region
  $region18: #{discriminator_forward.7} parent=0 // pred_check
    _
  $region19: #{discriminator_forward.7} parent=0 // pred_check_branch
    %19 = sbr.rel (0) target = $region21
  $region20: #{discriminator_forward.7} parent=0 // pred_region
    _
  $region21: #{discriminator_forward.7} parent=0 // pred_fallthru
    _
  %v21 = vld [vmem:[%s1] sm:$0xff]
  %v22 = vld [vmem:[%s1 + $0x8] sm:$0xff]
  %v23 = vld [vmem:[%s1 + $0x10] sm:$0xff]
  %v24 = vld [vmem:[%s1 + $0x18] sm:$0xf]
  %v25 = vld [vmem:[%s1 + $0x1c] sm:$0xff]
  %v26 = vld [vmem:[%s1 + $0x24] sm:$0xff]
  %v27 = vld [vmem:[%s1 + $0x2c] sm:$0xff]
  %v28 = vld [vmem:[%s1 + $0x34] sm:$0xf]
  %v29 = vld [vmem:[%s1 + $0x38] sm:$0xff]
  %v30 = vld [vmem:[%s1 + $0x40] sm:$0xff]
  %v31 = vld [vmem:[%s1 + $0x48] sm:$0xff]
  %v32 = vld [vmem:[%s1 + $0x50] sm:$0xf]
  %v33 = vld [vmem:[%s1 + $0x54] sm:$0xff]
  %v34 = vld [vmem:[%s1 + $0x5c] sm:$0xff]
  %v35 = vld [vmem:[%s1 + $0x64] sm:$0xff]
  %v36 = vld [vmem:[%s1 + $0x6c] sm:$0xf]
  %v37 = vld [vmem:[%s1 + $0x70] sm:$0xff]
  %v38 = vld [vmem:[%s1 + $0x78] sm:$0xff]
  %v39 = vld [vmem:[%s1 + $0x80] sm:$0xff]
  %v40 = vld [vmem:[%s1 + $0x88] sm:$0xf]
  %v41 = vld [vmem:[%s1 + $0x8c] sm:$0xff]
  %v42 = vld [vmem:[%s1 + $0x94] sm:$0xff]
  %v43 = vld [vmem:[%s1 + $0x9c] sm:$0xff]
  %v44 = vld [vmem:[%s1 + $0xa4] sm:$0xf]
  %v45 = vld [vmem:[%s1 + $0xa8] sm:$0xff]
  %v46 = vld [vmem:[%s1 + $0xb0] sm:$0xff]
  %v47 = vld [vmem:[%s1 + $0xb8] sm:$0xff]
  %v48 = vld [vmem:[%s1 + $0xc0] sm:$0xf]
  %v49 = vld [vmem:[%s1 + $0xc4] sm:$0xff]
  %v50 = vld [vmem:[%s1 + $0xcc] sm:$0xff]
  %v51 = vld [vmem:[%s1 + $0xd4] sm:$0xff]
  %v52 = vld [vmem:[%s1 + $0xdc] sm:$0xf]
  %v53 = vld [vmem:[%s0] sm:$0xf]
  %v54 = vld [vmem:[%s0 + $0x4] sm:$0xf]
  %v55 = vld [vmem:[%s0 + $0x8] sm:$0xf]
  %v56 = vld [vmem:[%s0 + $0xc] sm:$0xf]
  %v57 = vld [vmem:[%s0 + $0x10] sm:$0xf]
  %v58 = vld [vmem:[%s0 + $0x14] sm:$0xf]
  %v59 = vld [vmem:[%s0 + $0x18] sm:$0xf]
  %v60 = vld [vmem:[%s0 + $0x1c] sm:$0xf]
  %v61 = vld [vmem:[%s0 + $0x20] sm:$0xf]
  %v62 = vld [vmem:[%s0 + $0x24] sm:$0xf]
  %v63 = vld [vmem:[%s0 + $0x28] sm:$0xf]
  %v64 = vld [vmem:[%s0 + $0x2c] sm:$0xf]
  %v65 = vld [vmem:[%s0 + $0x30] sm:$0xf]
  %v66 = vld [vmem:[%s0 + $0x34] sm:$0xf]
  %v67 = vld [vmem:[%s0 + $0x38] sm:$0xf]
  %v68 = vld [vmem:[%s0 + $0x3c] sm:$0xf]
  %v69 = vld [vmem:[%s0 + $0x40] sm:$0xf]
  %v70 = vld [vmem:[%s0 + $0x44] sm:$0xf]
  %v71 = vld [vmem:[%s0 + $0x48] sm:$0xf]
  %v72 = vld [vmem:[%s0 + $0x4c] sm:$0xf]
  %v73 = vld [vmem:[%s0 + $0x50] sm:$0xf]
  %v74 = vld [vmem:[%s0 + $0x54] sm:$0xf]
  %v75 = vld [vmem:[%s0 + $0x58] sm:$0xf]
  %v76 = vld [vmem:[%s0 + $0x5c] sm:$0xf]
  %v77 = vld [vmem:[%s0 + $0x60] sm:$0xf]
  %v78 = vld [vmem:[%s0 + $0x64] sm:$0xf]
  %v79 = vld [vmem:[%s0 + $0x68] sm:$0xf]
  %v80 = vld [vmem:[%s0 + $0x6c] sm:$0xf]
  %v81 = vld [vmem:[%s0 + $0x70] sm:$0xf]
  %v82 = vld [vmem:[%s0 + $0x74] sm:$0xf]
  %v83 = vld [vmem:[%s0 + $0x78] sm:$0xf]
  %v84 = vld [vmem:[%s0 + $0x7c] sm:$0xf]
  %v85 = vld [vmem:[%s0 + $0x80] sm:$0xf]
  %v86 = vld [vmem:[%s0 + $0x84] sm:$0xf]
  %v87 = vld [vmem:[%s0 + $0x88] sm:$0xf]
  %v88 = vld [vmem:[%s0 + $0x8c] sm:$0xf]
  %v89 = vld [vmem:[%s0 + $0x90] sm:$0xf]
  %v90 = vld [vmem:[%s0 + $0x94] sm:$0xf]
  %v91 = vld [vmem:[%s0 + $0x98] sm:$0xf]
  %v92 = vld [vmem:[%s0 + $0x9c] sm:$0xf]
  %v93 = vld [vmem:[%s0 + $0xa0] sm:$0xf]
  %v94 = vld [vmem:[%s0 + $0xa4] sm:$0xf]
  %v95 = vld [vmem:[%s0 + $0xa8] sm:$0xf]
  %v96 = vld [vmem:[%s0 + $0xac] sm:$0xf]
  %v97 = vld [vmem:[%s0 + $0xb0] sm:$0xf]
  %v98 = vld [vmem:[%s0 + $0xb4] sm:$0xf]
  %v99 = vld [vmem:[%s0 + $0xb8] sm:$0xf]
  %v100 = vld [vmem:[%s0 + $0xbc] sm:$0xf]
  %v101 = vld [vmem:[%s0 + $0xc0] sm:$0xf]
  %v102 = vld [vmem:[%s0 + $0xc4] sm:$0xf]
  %v103 = vld [vmem:[%s0 + $0xc8] sm:$0xf]
  %v104 = vld [vmem:[%s0 + $0xcc] sm:$0xf]
  %v105 = vld [vmem:[%s0 + $0xd0] sm:$0xf]
  %v106 = vld [vmem:[%s0 + $0xd4] sm:$0xf]
  %v107 = vld [vmem:[%s0 + $0xd8] sm:$0xf]
  %v108 = vld [vmem:[%s0 + $0xdc] sm:$0xf]
  %v109 = vld [vmem:[%s0 + $0xe0] sm:$0xf]
  %v110 = vld [vmem:[%s0 + $0xe4] sm:$0xf]
  %v111 = vld [vmem:[%s0 + $0xe8] sm:$0xf]
  %v112 = vld [vmem:[%s0 + $0xec] sm:$0xf]
  %v113 = vld [vmem:[%s0 + $0xf0] sm:$0xf]
  %v114 = vld [vmem:[%s0 + $0xf4] sm:$0xf]
  %v115 = vld [vmem:[%s0 + $0xf8] sm:$0xf]
  %v116 = vld [vmem:[%s0 + $0xfc] sm:$0xf]
  %v117 = vld [vmem:[%s0 + $0x100] sm:$0xf]
  %v118 = vld [vmem:[%s0 + $0x104] sm:$0xf]
  %v119 = vld [vmem:[%s0 + $0x108] sm:$0xf]
  %v120 = vld [vmem:[%s0 + $0x10c] sm:$0xf]
  %v121 = vld [vmem:[%s0 + $0x110] sm:$0xf]
  %v122 = vld [vmem:[%s0 + $0x114] sm:$0xf]
  %v123 = vld [vmem:[%s0 + $0x118] sm:$0xf]
  %v124 = vld [vmem:[%s0 + $0x11c] sm:$0xf]
  %v125 = vld [vmem:[%s0 + $0x120] sm:$0xf]
  %v126 = vld [vmem:[%s0 + $0x124] sm:$0xf]
  %v127 = vld [vmem:[%s0 + $0x128] sm:$0xf]
  %v128 = vld [vmem:[%s0 + $0x12c] sm:$0xf]
  %v129 = vld [vmem:[%s0 + $0x130] sm:$0xf]
  %v130 = vld [vmem:[%s0 + $0x134] sm:$0xf]
  %v131 = vld [vmem:[%s0 + $0x138] sm:$0xf]
  %v132 = vld [vmem:[%s0 + $0x13c] sm:$0xf]
  %v133 = vld [vmem:[%s0 + $0x140] sm:$0xf]
  %v134 = vld [vmem:[%s0 + $0x144] sm:$0xf]
  %v135 = vld [vmem:[%s0 + $0x148] sm:$0xf]
  %v136 = vld [vmem:[%s0 + $0x14c] sm:$0xf]
  %v137 = vld [vmem:[%s0 + $0x150] sm:$0xf]
  %v138 = vld [vmem:[%s0 + $0x154] sm:$0xf]
  %v139 = vld [vmem:[%s0 + $0x158] sm:$0xf]
  %v140 = vld [vmem:[%s0 + $0x15c] sm:$0xf]
  %v141 = vld [vmem:[%s0 + $0x160] sm:$0xf]
  %v142 = vld [vmem:[%s0 + $0x164] sm:$0xf]
  %v143 = vld [vmem:[%s0 + $0x168] sm:$0xf]
  %v144 = vld [vmem:[%s0 + $0x16c] sm:$0xf]
  %v145 = vld [vmem:[%s0 + $0x170] sm:$0xf]
  %v146 = vld [vmem:[%s0 + $0x174] sm:$0xf]
  %v147 = vld [vmem:[%s0 + $0x178] sm:$0xf]
  %v148 = vld [vmem:[%s0 + $0x17c] sm:$0xf]
  %v149 = vld [vmem:[%s0 + $0x180] sm:$0xf]
  %v150 = vld [vmem:[%s0 + $0x184] sm:$0xf]
  %v151 = vld [vmem:[%s0 + $0x188] sm:$0xf]
  %v152 = vld [vmem:[%s0 + $0x18c] sm:$0xf]
  %v153 = vld [vmem:[%s2] sm:$0xff]
  %v154 = vld [vmem:[%s2 + $0x8] sm:$0xff]
  %v155 = vld [vmem:[%s2 + $0x10] sm:$0xff]
  %v156 = vld [vmem:[%s2 + $0x18] sm:$0xff]
  %v157 = vld [vmem:[%s2 + $0x20] sm:$0xff]
  %v158 = vld [vmem:[%s2 + $0x28] sm:$0xff]
  %v159 = vld [vmem:[%s2 + $0x30] sm:$0xff]
  %v160 = vld [vmem:[%s2 + $0x38] sm:$0xff]
  %162 = vset.pattern.permute.xlu0 0
  %163 = vperm.xlu0 %162, %v153
  %v164 = vpop.permute.xlu0 %163
  %167 = vset.pattern.permute.xlu0 0
  %168 = vperm.xlu0 %167, %v154
  %v169 = vpop.permute.xlu0 %168
  %172 = vset.pattern.permute.xlu0 0
  %173 = vperm.xlu0 %172, %v155
  %v174 = vpop.permute.xlu0 %173
  %177 = vset.pattern.permute.xlu0 0
  %178 = vperm.xlu0 %177, %v156
  %v179 = vpop.permute.xlu0 %178
  %182 = vset.pattern.permute.xlu0 0
  %183 = vperm.xlu0 %182, %v157
  %v184 = vpop.permute.xlu0 %183
  %187 = vset.pattern.permute.xlu0 0
  %188 = vperm.xlu0 %187, %v158
  %v189 = vpop.permute.xlu0 %188
  %192 = vset.pattern.permute.xlu0 0
  %193 = vperm.xlu0 %192, %v159
  %v194 = vpop.permute.xlu0 %193
  %197 = vset.pattern.permute.xlu0 0
  %198 = vperm.xlu0 %197, %v160
  %v199 = vpop.permute.xlu0 %198
  %v233 = vunpack.c.l.b16 %v21
  %v234 = vunpack.c.h.b16 %v21
  %v235 = vunpack.c.l.b16 %v22
  %v236 = vunpack.c.h.b16 %v22
  %v237 = vunpack.c.l.b16 %v23
  %v238 = vunpack.c.h.b16 %v23
  %v239 = vunpack.c.l.b16 %v24
  %v240 = vunpack.c.l.b16 %v25
  %v241 = vunpack.c.h.b16 %v25
  %v242 = vunpack.c.l.b16 %v26
  %v243 = vunpack.c.h.b16 %v26
  %v244 = vunpack.c.l.b16 %v27
  %v245 = vunpack.c.h.b16 %v27
  %v246 = vunpack.c.l.b16 %v28
  %v247 = vunpack.c.l.b16 %v29
  %v248 = vunpack.c.h.b16 %v29
  %v249 = vunpack.c.l.b16 %v30
  %v250 = vunpack.c.h.b16 %v30
  %v251 = vunpack.c.l.b16 %v31
  %v252 = vunpack.c.h.b16 %v31
  %v253 = vunpack.c.l.b16 %v32
  %v254 = vunpack.c.l.b16 %v33
  %v255 = vunpack.c.h.b16 %v33
  %v256 = vunpack.c.l.b16 %v34
  %v257 = vunpack.c.h.b16 %v34
  %v258 = vunpack.c.l.b16 %v35
  %v259 = vunpack.c.h.b16 %v35
  %v260 = vunpack.c.l.b16 %v36
  %v261 = vunpack.c.l.b16 %v37
  %v262 = vunpack.c.h.b16 %v37
  %v263 = vunpack.c.l.b16 %v38
  %v264 = vunpack.c.h.b16 %v38
  %v265 = vunpack.c.l.b16 %v39
  %v266 = vunpack.c.h.b16 %v39
  %v267 = vunpack.c.l.b16 %v40
  %v268 = vunpack.c.l.b16 %v41
  %v269 = vunpack.c.h.b16 %v41
  %v270 = vunpack.c.l.b16 %v42
  %v271 = vunpack.c.h.b16 %v42
  %v272 = vunpack.c.l.b16 %v43
  %v273 = vunpack.c.h.b16 %v43
  %v274 = vunpack.c.l.b16 %v44
  %v275 = vunpack.c.l.b16 %v45
  %v276 = vunpack.c.h.b16 %v45
  %v277 = vunpack.c.l.b16 %v46
  %v278 = vunpack.c.h.b16 %v46
  %v279 = vunpack.c.l.b16 %v47
  %v280 = vunpack.c.h.b16 %v47
  %v281 = vunpack.c.l.b16 %v48
  %v282 = vunpack.c.l.b16 %v49
  %v283 = vunpack.c.h.b16 %v49
  %v284 = vunpack.c.l.b16 %v50
  %v285 = vunpack.c.h.b16 %v50
  %v286 = vunpack.c.l.b16 %v51
  %v287 = vunpack.c.h.b16 %v51
  %v288 = vunpack.c.l.b16 %v52
  %v289 = vpack.c.b16 %v240, %v233
  %v290 = vpack.c.b16 %v241, %v234
  %v291 = vpack.c.b16 %v242, %v235
  %v292 = vpack.c.b16 %v243, %v236
  %v293 = vpack.c.b16 %v244, %v237
  %v294 = vpack.c.b16 %v245, %v238
  %v295 = vpack.c.b16 %v246, %v239
  %v296 = vpack.c.b16 %v254, %v247
  %v297 = vpack.c.b16 %v255, %v248
  %v298 = vpack.c.b16 %v256, %v249
  %v299 = vpack.c.b16 %v257, %v250
  %v300 = vpack.c.b16 %v258, %v251
  %v301 = vpack.c.b16 %v259, %v252
  %v302 = vpack.c.b16 %v260, %v253
  %v303 = vpack.c.b16 %v268, %v261
  %v304 = vpack.c.b16 %v269, %v262
  %v305 = vpack.c.b16 %v270, %v263
  %v306 = vpack.c.b16 %v271, %v264
  %v307 = vpack.c.b16 %v272, %v265
  %v308 = vpack.c.b16 %v273, %v266
  %v309 = vpack.c.b16 %v274, %v267
  %v310 = vpack.c.b16 %v282, %v275
  %v311 = vpack.c.b16 %v283, %v276
  %v312 = vpack.c.b16 %v284, %v277
  %v313 = vpack.c.b16 %v285, %v278
  %v314 = vpack.c.b16 %v286, %v279
  %v315 = vpack.c.b16 %v287, %v280
  %v316 = vpack.c.b16 %v288, %v281
  %v441 = vunpack.c.l.b16 %v53
  %v442 = vunpack.c.l.b16 %v54
  %v443 = vunpack.c.l.b16 %v55
  %v444 = vunpack.c.l.b16 %v56
  %v445 = vunpack.c.l.b16 %v57
  %v446 = vunpack.c.l.b16 %v58
  %v447 = vunpack.c.l.b16 %v59
  %v448 = vunpack.c.l.b16 %v60
  %v449 = vunpack.c.l.b16 %v61
  %v450 = vunpack.c.l.b16 %v62
  %v451 = vunpack.c.l.b16 %v63
  %v452 = vunpack.c.l.b16 %v64
  %v453 = vunpack.c.l.b16 %v65
  %v454 = vunpack.c.l.b16 %v66
  %v455 = vunpack.c.l.b16 %v67
  %v456 = vunpack.c.l.b16 %v68
  %v457 = vunpack.c.l.b16 %v69
  %v458 = vunpack.c.l.b16 %v70
  %v459 = vunpack.c.l.b16 %v71
  %v460 = vunpack.c.l.b16 %v72
  %v461 = vunpack.c.l.b16 %v73
  %v462 = vunpack.c.l.b16 %v74
  %v463 = vunpack.c.l.b16 %v75
  %v464 = vunpack.c.l.b16 %v76
  %v465 = vunpack.c.l.b16 %v77
  %v466 = vunpack.c.l.b16 %v78
  %v467 = vunpack.c.l.b16 %v79
  %v468 = vunpack.c.l.b16 %v80
  %v469 = vunpack.c.l.b16 %v81
  %v470 = vunpack.c.l.b16 %v82
  %v471 = vunpack.c.l.b16 %v83
  %v472 = vunpack.c.l.b16 %v84
  %v473 = vunpack.c.l.b16 %v85
  %v474 = vunpack.c.l.b16 %v86
  %v475 = vunpack.c.l.b16 %v87
  %v476 = vunpack.c.l.b16 %v88
  %v477 = vunpack.c.l.b16 %v89
  %v478 = vunpack.c.l.b16 %v90
  %v479 = vunpack.c.l.b16 %v91
  %v480 = vunpack.c.l.b16 %v92
  %v481 = vunpack.c.l.b16 %v93
  %v482 = vunpack.c.l.b16 %v94
  %v483 = vunpack.c.l.b16 %v95
  %v484 = vunpack.c.l.b16 %v96
  %v485 = vunpack.c.l.b16 %v97
  %v486 = vunpack.c.l.b16 %v98
  %v487 = vunpack.c.l.b16 %v99
  %v488 = vunpack.c.l.b16 %v100
  %v489 = vunpack.c.l.b16 %v101
  %v490 = vunpack.c.l.b16 %v102
  %v491 = vunpack.c.l.b16 %v103
  %v492 = vunpack.c.l.b16 %v104
  %v493 = vunpack.c.l.b16 %v105
  %v494 = vunpack.c.l.b16 %v106
  %v495 = vunpack.c.l.b16 %v107
  %v496 = vunpack.c.l.b16 %v108
  %v497 = vunpack.c.l.b16 %v109
  %v498 = vunpack.c.l.b16 %v110
  %v499 = vunpack.c.l.b16 %v111
  %v500 = vunpack.c.l.b16 %v112
  %v501 = vunpack.c.l.b16 %v113
  %v502 = vunpack.c.l.b16 %v114
  %v503 = vunpack.c.l.b16 %v115
  %v504 = vunpack.c.l.b16 %v116
  %v505 = vunpack.c.l.b16 %v117
  %v506 = vunpack.c.l.b16 %v118
  %v507 = vunpack.c.l.b16 %v119
  %v508 = vunpack.c.l.b16 %v120
  %v509 = vunpack.c.l.b16 %v121
  %v510 = vunpack.c.l.b16 %v122
  %v511 = vunpack.c.l.b16 %v123
  %v512 = vunpack.c.l.b16 %v124
  %v513 = vunpack.c.l.b16 %v125
  %v514 = vunpack.c.l.b16 %v126
  %v515 = vunpack.c.l.b16 %v127
  %v516 = vunpack.c.l.b16 %v128
  %v517 = vunpack.c.l.b16 %v129
  %v518 = vunpack.c.l.b16 %v130
  %v519 = vunpack.c.l.b16 %v131
  %v520 = vunpack.c.l.b16 %v132
  %v521 = vunpack.c.l.b16 %v133
  %v522 = vunpack.c.l.b16 %v134
  %v523 = vunpack.c.l.b16 %v135
  %v524 = vunpack.c.l.b16 %v136
  %v525 = vunpack.c.l.b16 %v137
  %v526 = vunpack.c.l.b16 %v138
  %v527 = vunpack.c.l.b16 %v139
  %v528 = vunpack.c.l.b16 %v140
  %v529 = vunpack.c.l.b16 %v141
  %v530 = vunpack.c.l.b16 %v142
  %v531 = vunpack.c.l.b16 %v143
  %v532 = vunpack.c.l.b16 %v144
  %v533 = vunpack.c.l.b16 %v145
  %v534 = vunpack.c.l.b16 %v146
  %v535 = vunpack.c.l.b16 %v147
  %v536 = vunpack.c.l.b16 %v148
  %v537 = vunpack.c.l.b16 %v149
  %v538 = vunpack.c.l.b16 %v150
  %v539 = vunpack.c.l.b16 %v151
  %v540 = vunpack.c.l.b16 %v152
  %v541 = vpack.c.b16 %v442, %v441
  %v542 = vpack.c.b16 %v444, %v443
  %v543 = vpack.c.b16 %v446, %v445
  %v544 = vpack.c.b16 %v448, %v447
  %v545 = vpack.c.b16 %v450, %v449
  %v546 = vpack.c.b16 %v452, %v451
  %v547 = vpack.c.b16 %v454, %v453
  %v548 = vpack.c.b16 %v456, %v455
  %v549 = vpack.c.b16 %v458, %v457
  %v550 = vpack.c.b16 %v460, %v459
  %v551 = vpack.c.b16 %v462, %v461
  %v552 = vpack.c.b16 %v464, %v463
  %v553 = vpack.c.b16 %v466, %v465
  %v554 = vpack.c.b16 %v468, %v467
  %v555 = vpack.c.b16 %v470, %v469
  %v556 = vpack.c.b16 %v472, %v471
  %v557 = vpack.c.b16 %v474, %v473
  %v558 = vpack.c.b16 %v476, %v475
  %v559 = vpack.c.b16 %v478, %v477
  %v560 = vpack.c.b16 %v480, %v479
  %v561 = vpack.c.b16 %v482, %v481
  %v562 = vpack.c.b16 %v484, %v483
  %v563 = vpack.c.b16 %v486, %v485
  %v564 = vpack.c.b16 %v488, %v487
  %v565 = vpack.c.b16 %v490, %v489
  %v566 = vpack.c.b16 %v492, %v491
  %v567 = vpack.c.b16 %v494, %v493
  %v568 = vpack.c.b16 %v496, %v495
  %v569 = vpack.c.b16 %v498, %v497
  %v570 = vpack.c.b16 %v500, %v499
  %v571 = vpack.c.b16 %v502, %v501
  %v572 = vpack.c.b16 %v504, %v503
  %v573 = vpack.c.b16 %v506, %v505
  %v574 = vpack.c.b16 %v508, %v507
  %v575 = vpack.c.b16 %v510, %v509
  %v576 = vpack.c.b16 %v512, %v511
  %v577 = vpack.c.b16 %v514, %v513
  %v578 = vpack.c.b16 %v516, %v515
  %v579 = vpack.c.b16 %v518, %v517
  %v580 = vpack.c.b16 %v520, %v519
  %v581 = vpack.c.b16 %v522, %v521
  %v582 = vpack.c.b16 %v524, %v523
  %v583 = vpack.c.b16 %v526, %v525
  %v584 = vpack.c.b16 %v528, %v527
  %v585 = vpack.c.b16 %v530, %v529
  %v586 = vpack.c.b16 %v532, %v531
  %v587 = vpack.c.b16 %v534, %v533
  %v588 = vpack.c.b16 %v536, %v535
  %v589 = vpack.c.b16 %v538, %v537
  %v590 = vpack.c.b16 %v540, %v539
  %vm641 = vcmask 261120
  %v643 = vsel %vm641, %v295, 0
  %v646 = vsel %vm641, %v302, 0
  %v649 = vsel %vm641, %v309, 0
  %v652 = vsel %vm641, %v316, 0
  %654 = vmatprep.subr.bf16.mxu0 0
  %655 = vmatpush1.bf16.msra.mxu0 %v541
  %656 = vmatprep.subr.bf16.mxu0 0
  %657 = vmatpush1.bf16.msra.mxu0 %v542
  %658 = vmatprep.subr.bf16.mxu0 0
  %659 = vmatpush1.bf16.msra.mxu0 %v543
  %660 = vmatprep.subr.bf16.mxu0 0
  %661 = vmatpush1.bf16.msra.mxu0 %v544
  %662 = vmatprep.subr.bf16.mxu0 0
  %663 = vmatpush1.bf16.msra.mxu0 %v545
  %664 = vmatprep.subr.bf16.mxu0 0
  %665 = vmatpush1.bf16.msra.mxu0 %v546
  %666 = vmatprep.subr.bf16.mxu0 0
  %667 = vmatpush1.bf16.msra.mxu0 %v547
  %668 = vmatprep.subr.bf16.mxu0 0
  %669 = vmatpush1.bf16.msra.mxu0 %v548
  %670 = vmatprep.subr.bf16.mxu0 0
  %671 = vmatpush1.bf16.msra.mxu0 %v549
  %672 = vmatprep.subr.bf16.mxu0 0
  %673 = vmatpush1.bf16.msra.mxu0 %v550
  %674 = vmatprep.subr.bf16.mxu0 0
  %675 = vmatpush1.bf16.msra.mxu0 %v551
  %676 = vmatprep.subr.bf16.mxu0 0
  %677 = vmatpush1.bf16.msra.mxu0 %v552
  %678 = vmatprep.subr.bf16.mxu0 0
  %679 = vmatpush1.bf16.msra.mxu0 %v553
  %680 = vmatprep.subr.bf16.mxu0 0
  %681 = vmatpush1.bf16.msra.mxu0 %v554
  %682 = vmatprep.subr.bf16.mxu0 0
  %683 = vmatpush1.bf16.msra.mxu0 %v555
  %684 = vmatprep.subr.bf16.mxu0 0
  %685 = vmatpush1.bf16.msra.mxu0 %v556
  %686 = vmatprep.mubr.bf16.mxu0 %v290
  %687 = vmatmul.mubr.bf16.gmra.mrb[0].mxu0 %v289
  %v688 = vpop.f32.mrb[0].mxu0
  %v689 = vadd.f32 %v164, %v688
  %v690 = vpop.f32.mrb[0].mxu0
  %v691 = vpop.f32.mrb[0].mxu0
  %v692 = vadd.f32 %v169, %v691
  %v693 = vpop.f32.mrb[0].mxu0
  %694 = vmatprep.mubr.bf16.mxu0 %v297
  %695 = vmatmul.mubr.bf16.gmra.mrb[0].mxu0 %v296
  %v696 = vpop.f32.mrb[0].mxu0
  %v697 = vadd.f32 %v174, %v696
  %v698 = vpop.f32.mrb[0].mxu0
  %v699 = vpop.f32.mrb[0].mxu0
  %v700 = vadd.f32 %v179, %v699
  %v701 = vpop.f32.mrb[0].mxu0
  %702 = vmatprep.mubr.bf16.mxu0 %v304
  %703 = vmatmul.mubr.bf16.gmra.mrb[0].mxu0 %v303
  %v704 = vpop.f32.mrb[0].mxu0
  %v705 = vadd.f32 %v184, %v704
  %v706 = vpop.f32.mrb[0].mxu0
  %v707 = vpop.f32.mrb[0].mxu0
  %v708 = vadd.f32 %v189, %v707
  %v709 = vpop.f32.mrb[0].mxu0
  %710 = vmatprep.mubr.bf16.mxu0 %v311
  %711 = vmatmul.mubr.bf16.gmra.mrb[0].mxu0 %v310
  %v712 = vpop.f32.mrb[0].mxu0
  %v713 = vadd.f32 %v194, %v712
  %v714 = vpop.f32.mrb[0].mxu0
  %v715 = vpop.f32.mrb[0].mxu0
  %v716 = vadd.f32 %v199, %v715
  %v717 = vpop.f32.mrb[0].mxu0
  %718 = vdwg.mxu0
  %719 = vmatprep.subr.bf16.mxu0 0
  %720 = vmatpush1.bf16.msra.mxu0 %v557
  %721 = vmatprep.subr.bf16.mxu0 0
  %722 = vmatpush1.bf16.msra.mxu0 %v558
  %723 = vmatprep.subr.bf16.mxu0 0
  %724 = vmatpush1.bf16.msra.mxu0 %v559
  %725 = vmatprep.subr.bf16.mxu0 0
  %726 = vmatpush1.bf16.msra.mxu0 %v560
  %727 = vmatprep.subr.bf16.mxu0 0
  %728 = vmatpush1.bf16.msra.mxu0 %v561
  %729 = vmatprep.subr.bf16.mxu0 0
  %730 = vmatpush1.bf16.msra.mxu0 %v562
  %731 = vmatprep.subr.bf16.mxu0 0
  %732 = vmatpush1.bf16.msra.mxu0 %v563
  %733 = vmatprep.subr.bf16.mxu0 0
  %734 = vmatpush1.bf16.msra.mxu0 %v564
  %735 = vmatprep.subr.bf16.mxu0 0
  %736 = vmatpush1.bf16.msra.mxu0 %v565
  %737 = vmatprep.subr.bf16.mxu0 0
  %738 = vmatpush1.bf16.msra.mxu0 %v566
  %739 = vmatprep.subr.bf16.mxu0 0
  %740 = vmatpush1.bf16.msra.mxu0 %v567
  %741 = vmatprep.subr.bf16.mxu0 0
  %742 = vmatpush1.bf16.msra.mxu0 %v568
  %743 = vmatprep.subr.bf16.mxu0 0
  %744 = vmatpush1.bf16.msra.mxu0 %v569
  %745 = vmatprep.subr.bf16.mxu0 0
  %746 = vmatpush1.bf16.msra.mxu0 %v570
  %747 = vmatprep.subr.bf16.mxu0 0
  %748 = vmatpush1.bf16.msra.mxu0 %v571
  %749 = vmatprep.subr.bf16.mxu0 0
  %750 = vmatpush1.bf16.msra.mxu0 %v572
  %751 = vmatprep.mubr.bf16.mxu0 %v292
  %752 = vmatmul.mubr.bf16.gmra.mrb[0].mxu0 %v291
  %v753 = vpop.f32.mrb[0].mxu0
  %v754 = vadd.f32 %v689, %v753
  %v755 = vpop.f32.mrb[0].mxu0
  %v756 = vpop.f32.mrb[0].mxu0
  %v757 = vadd.f32 %v692, %v756
  %v758 = vpop.f32.mrb[0].mxu0
  %759 = vmatprep.mubr.bf16.mxu0 %v299
  %760 = vmatmul.mubr.bf16.gmra.mrb[0].mxu0 %v298
  %v761 = vpop.f32.mrb[0].mxu0
  %v762 = vadd.f32 %v697, %v761
  %v763 = vpop.f32.mrb[0].mxu0
  %v764 = vpop.f32.mrb[0].mxu0
  %v765 = vadd.f32 %v700, %v764
  %v766 = vpop.f32.mrb[0].mxu0
  %767 = vmatprep.mubr.bf16.mxu0 %v306
  %768 = vmatmul.mubr.bf16.gmra.mrb[0].mxu0 %v305
  %v769 = vpop.f32.mrb[0].mxu0
  %v770 = vadd.f32 %v705, %v769
  %v771 = vpop.f32.mrb[0].mxu0
  %v772 = vpop.f32.mrb[0].mxu0
  %v773 = vadd.f32 %v708, %v772
  %v774 = vpop.f32.mrb[0].mxu0
  %775 = vmatprep.mubr.bf16.mxu0 %v313
  %776 = vmatmul.mubr.bf16.gmra.mrb[0].mxu0 %v312
  %v777 = vpop.f32.mrb[0].mxu0
  %v778 = vadd.f32 %v713, %v777
  %v779 = vpop.f32.mrb[0].mxu0
  %v780 = vpop.f32.mrb[0].mxu0
  %v781 = vadd.f32 %v716, %v780
  %v782 = vpop.f32.mrb[0].mxu0
  %783 = vdwg.mxu0
  %784 = vmatprep.subr.bf16.mxu0 0
  %785 = vmatpush1.bf16.msra.mxu0 %v573
  %786 = vmatprep.subr.bf16.mxu0 0
  %787 = vmatpush1.bf16.msra.mxu0 %v574
  %788 = vmatprep.subr.bf16.mxu0 0
  %789 = vmatpush1.bf16.msra.mxu0 %v575
  %790 = vmatprep.subr.bf16.mxu0 0
  %791 = vmatpush1.bf16.msra.mxu0 %v576
  %792 = vmatprep.subr.bf16.mxu0 0
  %793 = vmatpush1.bf16.msra.mxu0 %v577
  %794 = vmatprep.subr.bf16.mxu0 0
  %795 = vmatpush1.bf16.msra.mxu0 %v578
  %796 = vmatprep.subr.bf16.mxu0 0
  %797 = vmatpush1.bf16.msra.mxu0 %v579
  %798 = vmatprep.subr.bf16.mxu0 0
  %799 = vmatpush1.bf16.msra.mxu0 %v580
  %800 = vmatprep.subr.bf16.mxu0 0
  %801 = vmatpush1.bf16.msra.mxu0 %v581
  %802 = vmatprep.subr.bf16.mxu0 0
  %803 = vmatpush1.bf16.msra.mxu0 %v582
  %804 = vmatprep.subr.bf16.mxu0 0
  %805 = vmatpush1.bf16.msra.mxu0 %v583
  %806 = vmatprep.subr.bf16.mxu0 0
  %807 = vmatpush1.bf16.msra.mxu0 %v584
  %808 = vmatprep.subr.bf16.mxu0 0
  %809 = vmatpush1.bf16.msra.mxu0 %v585
  %810 = vmatprep.subr.bf16.mxu0 0
  %811 = vmatpush1.bf16.msra.mxu0 %v586
  %812 = vmatprep.subr.bf16.mxu0 0
  %813 = vmatpush1.bf16.msra.mxu0 %v587
  %814 = vmatprep.subr.bf16.mxu0 0
  %815 = vmatpush1.bf16.msra.mxu0 %v588
  %816 = vmatprep.mubr.bf16.mxu0 %v294
  %817 = vmatmul.mubr.bf16.gmra.mrb[0].mxu0 %v293
  %v818 = vpop.f32.mrb[0].mxu0
  %v819 = vadd.f32 %v754, %v818
  %v820 = vpop.f32.mrb[0].mxu0
  %v821 = vpop.f32.mrb[0].mxu0
  %v822 = vadd.f32 %v757, %v821
  %v823 = vpop.f32.mrb[0].mxu0
  %824 = vmatprep.mubr.bf16.mxu0 %v301
  %825 = vmatmul.mubr.bf16.gmra.mrb[0].mxu0 %v300
  %v826 = vpop.f32.mrb[0].mxu0
  %v827 = vadd.f32 %v762, %v826
  %v828 = vpop.f32.mrb[0].mxu0
  %v829 = vpop.f32.mrb[0].mxu0
  %v830 = vadd.f32 %v765, %v829
  %v831 = vpop.f32.mrb[0].mxu0
  %832 = vmatprep.mubr.bf16.mxu0 %v308
  %833 = vmatmul.mubr.bf16.gmra.mrb[0].mxu0 %v307
  %v834 = vpop.f32.mrb[0].mxu0
  %v835 = vadd.f32 %v770, %v834
  %v836 = vpop.f32.mrb[0].mxu0
  %v837 = vpop.f32.mrb[0].mxu0
  %v838 = vadd.f32 %v773, %v837
  %v839 = vpop.f32.mrb[0].mxu0
  %840 = vmatprep.mubr.bf16.mxu0 %v315
  %841 = vmatmul.mubr.bf16.gmra.mrb[0].mxu0 %v314
  %v842 = vpop.f32.mrb[0].mxu0
  %v843 = vadd.f32 %v778, %v842
  %v844 = vpop.f32.mrb[0].mxu0
  %v845 = vpop.f32.mrb[0].mxu0
  %v846 = vadd.f32 %v781, %v845
  %v847 = vpop.f32.mrb[0].mxu0
  %848 = vdwg.mxu0
  %849 = vmatprep.subr.bf16.mxu0 0
  %850 = vmatpush1.bf16.msra.mxu0 %v589
  %851 = vmatprep.subr.bf16.mxu0 0
  %852 = vmatpush1.bf16.msra.mxu0 %v590
  %853 = vmatprep.subr.bf16.mxu0 0
  %854 = vmatpush1.bf16.msra.mxu0 0
  %855 = vmatprep.subr.bf16.mxu0 0
  %856 = vmatpush1.bf16.msra.mxu0 0
  %857 = vmatprep.subr.bf16.mxu0 0
  %858 = vmatpush1.bf16.msra.mxu0 0
  %859 = vmatprep.subr.bf16.mxu0 0
  %860 = vmatpush1.bf16.msra.mxu0 0
  %861 = vmatprep.subr.bf16.mxu0 0
  %862 = vmatpush1.bf16.msra.mxu0 0
  %863 = vmatprep.subr.bf16.mxu0 0
  %864 = vmatpush1.bf16.msra.mxu0 0
  %865 = vmatprep.subr.bf16.mxu0 0
  %866 = vmatpush1.bf16.msra.mxu0 0
  %867 = vmatprep.subr.bf16.mxu0 0
  %868 = vmatpush1.bf16.msra.mxu0 0
  %869 = vmatprep.subr.bf16.mxu0 0
  %870 = vmatpush1.bf16.msra.mxu0 0
  %871 = vmatprep.subr.bf16.mxu0 0
  %872 = vmatpush1.bf16.msra.mxu0 0
  %873 = vmatprep.subr.bf16.mxu0 0
  %874 = vmatpush1.bf16.msra.mxu0 0
  %875 = vmatprep.subr.bf16.mxu0 0
  %876 = vmatpush1.bf16.msra.mxu0 0
  %877 = vmatprep.subr.bf16.mxu0 0
  %878 = vmatpush1.bf16.msra.mxu0 0
  %879 = vmatprep.subr.bf16.mxu0 0
  %880 = vmatpush1.bf16.msra.mxu0 0
  %881 = vmatprep.mubr.bf16.mxu0 0
  %882 = vmatmul.mubr.bf16.gmra.mrb[0].mxu0 %v643
  %v883 = vpop.f32.mrb[0].mxu0
  %v884 = vadd.f32 %v819, %v883
  %v885 = vpop.f32.mrb[0].mxu0
  %v886 = vpop.f32.mrb[0].mxu0
  %v887 = vadd.f32 %v822, %v886
  %v888 = vpop.f32.mrb[0].mxu0
  %889 = vmatprep.mubr.bf16.mxu0 0
  %890 = vmatmul.mubr.bf16.gmra.mrb[0].mxu0 %v646
  %v891 = vpop.f32.mrb[0].mxu0
  %v892 = vadd.f32 %v827, %v891
  %v893 = vpop.f32.mrb[0].mxu0
  %v894 = vpop.f32.mrb[0].mxu0
  %v895 = vadd.f32 %v830, %v894
  %v896 = vpop.f32.mrb[0].mxu0
  %897 = vmatprep.mubr.bf16.mxu0 0
  %898 = vmatmul.mubr.bf16.gmra.mrb[0].mxu0 %v649
  %v899 = vpop.f32.mrb[0].mxu0
  %v900 = vadd.f32 %v835, %v899
  %v901 = vpop.f32.mrb[0].mxu0
  %v902 = vpop.f32.mrb[0].mxu0
  %v903 = vadd.f32 %v838, %v902
  %v904 = vpop.f32.mrb[0].mxu0
  %905 = vmatprep.mubr.bf16.mxu0 0
  %906 = vmatmul.mubr.bf16.gmra.mrb[0].mxu0 %v652
  %v907 = vpop.f32.mrb[0].mxu0
  %v908 = vadd.f32 %v843, %v907
  %v909 = vpop.f32.mrb[0].mxu0
  %v910 = vpop.f32.mrb[0].mxu0
  %v911 = vadd.f32 %v846, %v910
  %v912 = vpop.f32.mrb[0].mxu0
  %913 = vdwg.mxu0
  %v914 = vsel %vm641, %v884, 0.0
  %915 = vadd.xlane.f32.xlu0 %v914
  %v916 = vpop.xlane.xlu0 %915
  %v917 = vsel %vm641, %v887, 0.0
  %918 = vadd.xlane.f32.xlu0 %v917
  %v919 = vpop.xlane.xlu0 %918
  %v920 = vsel %vm641, %v892, 0.0
  %921 = vadd.xlane.f32.xlu0 %v920
  %v922 = vpop.xlane.xlu0 %921
  %v923 = vsel %vm641, %v895, 0.0
  %924 = vadd.xlane.f32.xlu0 %v923
  %v925 = vpop.xlane.xlu0 %924
  %v926 = vsel %vm641, %v900, 0.0
  %927 = vadd.xlane.f32.xlu0 %v926
  %v928 = vpop.xlane.xlu0 %927
  %v929 = vsel %vm641, %v903, 0.0
  %930 = vadd.xlane.f32.xlu0 %v929
  %v931 = vpop.xlane.xlu0 %930
  %v932 = vsel %vm641, %v908, 0.0
  %933 = vadd.xlane.f32.xlu0 %v932
  %v934 = vpop.xlane.xlu0 %933
  %v935 = vsel %vm641, %v911, 0.0
  %936 = vadd.xlane.f32.xlu0 %v935
  %v937 = vpop.xlane.xlu0 %936
  %v938 = vrcp.pop 32.0
  %v939 = vmul.f32 %v916, %v938
  %v940 = vmul.f32 %v919, %v938
  %v941 = vmul.f32 %v922, %v938
  %v942 = vmul.f32 %v925, %v938
  %v943 = vmul.f32 %v928, %v938
  %v944 = vmul.f32 %v931, %v938
  %v945 = vmul.f32 %v934, %v938
  %v946 = vmul.f32 %v937, %v938
  %v947 = vsub.f32 %v884, %v939
  %v948 = vsub.f32 %v887, %v940
  %v949 = vsub.f32 %v892, %v941
  %v950 = vsub.f32 %v895, %v942
  %v951 = vsub.f32 %v900, %v943
  %v952 = vsub.f32 %v903, %v944
  %v953 = vsub.f32 %v908, %v945
  %v954 = vsub.f32 %v911, %v946
  %v955 = vmul.f32 %v947, %v947
  %v956 = vmul.f32 %v948, %v948
  %v957 = vmul.f32 %v949, %v949
  %v958 = vmul.f32 %v950, %v950
  %v959 = vmul.f32 %v951, %v951
  %v960 = vmul.f32 %v952, %v952
  %v961 = vmul.f32 %v953, %v953
  %v962 = vmul.f32 %v954, %v954
  %v963 = vsel %vm641, %v955, 0.0
  %964 = vadd.xlane.f32.xlu0 %v963
  %v965 = vpop.xlane.xlu0 %964
  %v966 = vsel %vm641, %v956, 0.0
  %967 = vadd.xlane.f32.xlu0 %v966
  %v968 = vpop.xlane.xlu0 %967
  %v969 = vsel %vm641, %v957, 0.0
  %970 = vadd.xlane.f32.xlu0 %v969
  %v971 = vpop.xlane.xlu0 %970
  %v972 = vsel %vm641, %v958, 0.0
  %973 = vadd.xlane.f32.xlu0 %v972
  %v974 = vpop.xlane.xlu0 %973
  %v975 = vsel %vm641, %v959, 0.0
  %976 = vadd.xlane.f32.xlu0 %v975
  %v977 = vpop.xlane.xlu0 %976
  %v978 = vsel %vm641, %v960, 0.0
  %979 = vadd.xlane.f32.xlu0 %v978
  %v980 = vpop.xlane.xlu0 %979
  %v981 = vsel %vm641, %v961, 0.0
  %982 = vadd.xlane.f32.xlu0 %v981
  %v983 = vpop.xlane.xlu0 %982
  %v984 = vsel %vm641, %v962, 0.0
  %985 = vadd.xlane.f32.xlu0 %v984
  %v986 = vpop.xlane.xlu0 %985
  %v987 = vmul.f32 %v965, %v938
  %v988 = vmul.f32 %v968, %v938
  %v989 = vmul.f32 %v971, %v938
  %v990 = vmul.f32 %v974, %v938
  %v991 = vmul.f32 %v977, %v938
  %v992 = vmul.f32 %v980, %v938
  %v993 = vmul.f32 %v983, %v938
  %v994 = vmul.f32 %v986, %v938
  %v995 = vmax.f32 %v987, 0.0
  %v996 = vmax.f32 %v988, 0.0
  %v997 = vmax.f32 %v989, 0.0
  %v998 = vmax.f32 %v990, 0.0
  %v999 = vmax.f32 %v991, 0.0
  %v1000 = vmax.f32 %v992, 0.0
  %v1001 = vmax.f32 %v993, 0.0
  %v1002 = vmax.f32 %v994, 0.0
  %v1003 = vadd.f32 %v995, 1e-05
  %v1004 = vadd.f32 %v996, 1e-05
  %v1005 = vadd.f32 %v997, 1e-05
  %v1006 = vadd.f32 %v998, 1e-05
  %v1007 = vadd.f32 %v999, 1e-05
  %v1008 = vadd.f32 %v1000, 1e-05
  %v1009 = vadd.f32 %v1001, 1e-05
  %v1010 = vadd.f32 %v1002, 1e-05
  %v1011 = vrsqrt.pop %v1003
  %v1012 = vrsqrt.pop %v1004
  %v1013 = vrsqrt.pop %v1005
  %v1014 = vrsqrt.pop %v1006
  %v1015 = vrsqrt.pop %v1007
  %v1016 = vrsqrt.pop %v1008
  %v1017 = vrsqrt.pop %v1009
  %v1018 = vrsqrt.pop %v1010
  %v1019 = vld [vmem:[%s3] sm:$0xff]
  %v1020 = vld [vmem:[%s3 + $0x8] sm:$0xff]
  %v1021 = vld [vmem:[%s3 + $0x10] sm:$0xff]
  %v1022 = vld [vmem:[%s3 + $0x18] sm:$0xff]
  %v1023 = vld [vmem:[%s3 + $0x20] sm:$0xff]
  %v1024 = vld [vmem:[%s3 + $0x28] sm:$0xff]
  %v1025 = vld [vmem:[%s3 + $0x30] sm:$0xff]
  %v1026 = vld [vmem:[%s3 + $0x38] sm:$0xff]
  %v1027 = vmul.f32 %v1011, %v1019
  %v1028 = vmul.f32 %v1012, %v1020
  %v1029 = vmul.f32 %v1013, %v1021
  %v1030 = vmul.f32 %v1014, %v1022
  %v1031 = vmul.f32 %v1015, %v1023
  %v1032 = vmul.f32 %v1016, %v1024
  %v1033 = vmul.f32 %v1017, %v1025
  %v1034 = vmul.f32 %v1018, %v1026
  %1036 = vset.pattern.permute.xlu0 0
  %1037 = vperm.xlu0 %1036, %v1027
  %v1038 = vpop.permute.xlu0 %1037
  %1041 = vset.pattern.permute.xlu0 0
  %1042 = vperm.xlu0 %1041, %v1028
  %v1043 = vpop.permute.xlu0 %1042
  %1046 = vset.pattern.permute.xlu0 0
  %1047 = vperm.xlu0 %1046, %v1029
  %v1048 = vpop.permute.xlu0 %1047
  %1051 = vset.pattern.permute.xlu0 0
  %1052 = vperm.xlu0 %1051, %v1030
  %v1053 = vpop.permute.xlu0 %1052
  %1056 = vset.pattern.permute.xlu0 0
  %1057 = vperm.xlu0 %1056, %v1031
  %v1058 = vpop.permute.xlu0 %1057
  %1061 = vset.pattern.permute.xlu0 0
  %1062 = vperm.xlu0 %1061, %v1032
  %v1063 = vpop.permute.xlu0 %1062
  %1066 = vset.pattern.permute.xlu0 0
  %1067 = vperm.xlu0 %1066, %v1033
  %v1068 = vpop.permute.xlu0 %1067
  %1071 = vset.pattern.permute.xlu0 0
  %1072 = vperm.xlu0 %1071, %v1034
  %v1073 = vpop.permute.xlu0 %1072
  %v1075 = vmul.f32 %v947, %v1038
  %v1076 = vmul.f32 %v948, %v1043
  %v1077 = vmul.f32 %v949, %v1048
  %v1078 = vmul.f32 %v950, %v1053
  %v1079 = vmul.f32 %v951, %v1058
  %v1080 = vmul.f32 %v952, %v1063
  %v1081 = vmul.f32 %v953, %v1068
  %v1082 = vmul.f32 %v954, %v1073
  %v1083 = vld [vmem:[%s4] sm:$0xff]
  %v1084 = vld [vmem:[%s4 + $0x8] sm:$0xff]
  %v1085 = vld [vmem:[%s4 + $0x10] sm:$0xff]
  %v1086 = vld [vmem:[%s4 + $0x18] sm:$0xff]
  %v1087 = vld [vmem:[%s4 + $0x20] sm:$0xff]
  %v1088 = vld [vmem:[%s4 + $0x28] sm:$0xff]
  %v1089 = vld [vmem:[%s4 + $0x30] sm:$0xff]
  %v1090 = vld [vmem:[%s4 + $0x38] sm:$0xff]
  %1092 = vset.pattern.permute.xlu0 0
  %1093 = vperm.xlu0 %1092, %v1083
  %v1094 = vpop.permute.xlu0 %1093
  %1097 = vset.pattern.permute.xlu0 0
  %1098 = vperm.xlu0 %1097, %v1084
  %v1099 = vpop.permute.xlu0 %1098
  %1102 = vset.pattern.permute.xlu0 0
  %1103 = vperm.xlu0 %1102, %v1085
  %v1104 = vpop.permute.xlu0 %1103
  %1107 = vset.pattern.permute.xlu0 0
  %1108 = vperm.xlu0 %1107, %v1086
  %v1109 = vpop.permute.xlu0 %1108
  %1112 = vset.pattern.permute.xlu0 0
  %1113 = vperm.xlu0 %1112, %v1087
  %v1114 = vpop.permute.xlu0 %1113
  %1117 = vset.pattern.permute.xlu0 0
  %1118 = vperm.xlu0 %1117, %v1088
  %v1119 = vpop.permute.xlu0 %1118
  %1122 = vset.pattern.permute.xlu0 0
  %1123 = vperm.xlu0 %1122, %v1089
  %v1124 = vpop.permute.xlu0 %1123
  %1127 = vset.pattern.permute.xlu0 0
  %1128 = vperm.xlu0 %1127, %v1090
  %v1129 = vpop.permute.xlu0 %1128
  %v1131 = vadd.f32 %v1075, %v1094
  %v1132 = vadd.f32 %v1076, %v1099
  %v1133 = vadd.f32 %v1077, %v1104
  %v1134 = vadd.f32 %v1078, %v1109
  %v1135 = vadd.f32 %v1079, %v1114
  %v1136 = vadd.f32 %v1080, %v1119
  %v1137 = vadd.f32 %v1081, %v1124
  %v1138 = vadd.f32 %v1082, %v1129
  %vm1139 = vcmp.ge.f32.partialorder %v1131, 0.0
  %vm1140 = vcmp.ge.f32.partialorder %v1132, 0.0
  %vm1141 = vcmp.ge.f32.partialorder %v1133, 0.0
  %vm1142 = vcmp.ge.f32.partialorder %v1134, 0.0
  %vm1143 = vcmp.ge.f32.partialorder %v1135, 0.0
  %vm1144 = vcmp.ge.f32.partialorder %v1136, 0.0
  %vm1145 = vcmp.ge.f32.partialorder %v1137, 0.0
  %vm1146 = vcmp.ge.f32.partialorder %v1138, 0.0
  %v1147 = vmul.f32 %v1131, 0.2
  %v1148 = vmul.f32 %v1132, 0.2
  %v1149 = vmul.f32 %v1133, 0.2
  %v1150 = vmul.f32 %v1134, 0.2
  %v1151 = vmul.f32 %v1135, 0.2
  %v1152 = vmul.f32 %v1136, 0.2
  %v1153 = vmul.f32 %v1137, 0.2
  %v1154 = vmul.f32 %v1138, 0.2
  %v1155 = vsel %vm1139, %v1131, %v1147
  %v1156 = vsel %vm1140, %v1132, %v1148
  %v1157 = vsel %vm1141, %v1133, %v1149
  %v1158 = vsel %vm1142, %v1134, %v1150
  %v1159 = vsel %vm1143, %v1135, %v1151
  %v1160 = vsel %vm1144, %v1136, %v1152
  %v1161 = vsel %vm1145, %v1137, %v1153
  %v1162 = vsel %vm1146, %v1138, %v1154
  %v1163 = vpack.c.bf16 %v1156, %v1155
  %v1164 = vpack.c.bf16 %v1158, %v1157
  %v1165 = vpack.c.bf16 %v1160, %v1159
  %v1166 = vpack.c.bf16 %v1162, %v1161
  %v1171 = vunpack.c.l.b16 %v1163
  %v1172 = vunpack.c.h.b16 %v1163
  %v1173 = vunpack.c.l.b16 %v1164
  %v1174 = vunpack.c.h.b16 %v1164
  %v1175 = vunpack.c.l.b16 %v1165
  %v1176 = vunpack.c.h.b16 %v1165
  %v1177 = vunpack.c.l.b16 %v1166
  %v1178 = vunpack.c.h.b16 %v1166
  %v1179 = vpack.c.b16 %v1171, %v1171
  %v1180 = vpack.c.b16 %v1172, %v1172
  %v1181 = vpack.c.b16 %v1173, %v1173
  %v1182 = vpack.c.b16 %v1174, %v1174
  %v1183 = vpack.c.b16 %v1175, %v1175
  %v1184 = vpack.c.b16 %v1176, %v1176
  %v1185 = vpack.c.b16 %v1177, %v1177
  %v1186 = vpack.c.b16 %v1178, %v1178
  %vm1195 = vcmask 257024
  %1196 = vst.msk [vmem:[%s5] sm:$0xf] %vm1195, %v1179
  %1197 = vst.msk [vmem:[%s5 + $0x4] sm:$0xf] %vm1195, %v1180
  %1198 = vst.msk [vmem:[%s5 + $0x8] sm:$0xf] %vm1195, %v1181
  %1199 = vst.msk [vmem:[%s5 + $0xc] sm:$0xf] %vm1195, %v1182
  %1200 = vst.msk [vmem:[%s5 + $0x10] sm:$0xf] %vm1195, %v1183
  %1201 = vst.msk [vmem:[%s5 + $0x14] sm:$0xf] %vm1195, %v1184
  %1202 = vst.msk [vmem:[%s5 + $0x18] sm:$0xf] %vm1195, %v1185
  %1203 = vst.msk [vmem:[%s5 + $0x1c] sm:$0xf] %vm1195, %v1186
  // Predicated region
  $region22: #{discriminator_forward.7} parent=0 // pred_check
    _
  $region23: #{discriminator_forward.7} parent=0 // pred_check_branch
    %1205 = sbr.rel (0) target = $region25
  $region24: #{discriminator_forward.7} parent=0 // pred_region
    _
  $region25: #{discriminator_forward.7} parent=0 // pred_fallthru
    _
  // Predicated region
  $region26: #{discriminator_forward.7} parent=0 // pred_check
    _
  $region27: #{discriminator_forward.7} parent=0 // pred_check_branch
    %1207 = sbr.rel (0) target = $region29
  $region28: #{discriminator_forward.7} parent=0 // pred_region
    _
  $region29: #{discriminator_forward.7} parent=0 // pred_fallthru
    _

</llo_original>
